<compile_context>
chip_gen: v7x
topology: tpu7x:2x2x1
jax: 0.10.0
libtpu: 0.0.40
codegen_flags: <defaults>
</compile_context>

<pallas_src>
import functools

import jax
import jax.numpy as jnp
from jax.experimental import pallas as pl
from jax.experimental.pallas import tpu as pltpu


# ---------------------------------------------------------------------------
# Helpers
# ---------------------------------------------------------------------------
def _round_up(x, m):
    return (x + m - 1) // m * m


def _pick_div(n, candidates):
    for c in candidates:
        if n % c == 0:
            return c
    return n  # full extent (legal); only hit for the tiny, unpadded K of layer 1


@functools.lru_cache(maxsize=1)
def _vmem_cap_bytes():
    """On-chip VMEM capacity; conservative v7x value if the query fails."""
    try:
        info = pltpu.get_tpu_info()
        cap = int(getattr(info, "vmem_capacity_bytes", 0) or 0)
        if cap > 0:
            return cap
    except Exception:
        pass
    return 64 * 1024 * 1024


def _agg_plan(n_pad, dim, dw_in, dw_out, in_bytes, allow_resident=True):
    """Pick (tm, tk), support residency and a vmem limit for the agg kernels."""
    cap = _vmem_cap_bytes()
    budget = int(cap * 0.55)            # leave headroom for Mosaic internals

    tms = [c for c in (512, 256, 128) if n_pad % c == 0] or [n_pad]
    tks = [c for c in (1024, 512, 256, 128) if n_pad % c == 0] or [n_pad]
    # Prefer row tiles that leave >= 2 steps on the parallel axis so both v7x
    # TensorCores stay busy.
    tms = [t for t in tms if n_pad // t >= 2] + [t for t in tms if n_pad // t < 2]

    def est_bytes(tm, tk, resident):
        sup = 2 * n_pad * dw_in * in_bytes if resident else 2 * tk * dw_in * in_bytes
        return (2 * dim * tm * tk * in_bytes   # adj blocks, double-buffered
                + sup                          # support stream / resident copy
                + 2 * tm * dw_out * 4          # output blocks (f32 upper bound)
                + tm * dw_in * 4               # f32 accumulator scratch
                + 2 * dw_in * 4)               # bias

    tm, tk = min(tms), min(tks)
    found = False
    for cand_tm in tms:
        for cand_tk in tks:
            if est_bytes(cand_tm, cand_tk, False) <= budget:
                tm, tk, found = cand_tm, cand_tk, True
                break
        if found:
            break

    resident = allow_resident and est_bytes(tm, tk, True) <= budget
    est = est_bytes(tm, tk, resident)
    vmem_limit = int(min(cap, est + (16 << 20)))
    return tm, tk, resident, vmem_limit


# ---------------------------------------------------------------------------
# Kernel 1: generic tiled matmul  C = A @ B  (x @ W1cat, hcat @ W2cat)
# ---------------------------------------------------------------------------
def _matmul_kernel(a_ref, b_ref, o_ref, acc_ref):
    @pl.when(pl.program_id(2) == 0)
    def _():
        acc_ref[...] = jnp.zeros_like(acc_ref)

    acc_ref[...] += jnp.dot(a_ref[...], b_ref[...],
                            preferred_element_type=jnp.float32)

    @pl.when(pl.program_id(2) == pl.num_programs(2) - 1)
    def _():
        o_ref[...] = acc_ref[...].astype(o_ref.dtype)


def matmul(a, b, out_dtype=jnp.float32):
    """a: (M, K), b: (K, Nc) -> (M, Nc); f32 accumulation, out cast to out_dtype.

    M and Nc are lane/sublane padded by the caller; K may be tiny (nfeat) in
    which case the full-extent K block is used (legal and bounded).
    """
    M, K = a.shape
    _, Nc = b.shape
    tm = _pick_div(M, (512, 256, 128, 8))
    tn = _pick_div(Nc, (512, 256, 128))
    tk = _pick_div(K, (512, 256, 128))
    return pl.pallas_call(
        _matmul_kernel,
        out_shape=jax.ShapeDtypeStruct((M, Nc), out_dtype),
        grid_spec=pltpu.PrefetchScalarGridSpec(
            num_scalar_prefetch=0,
            grid=(M // tm, Nc // tn, K // tk),
            in_specs=[
                pl.BlockSpec((tm, tk), lambda i, j, k: (i, k)),
                pl.BlockSpec((tk, tn), lambda i, j, k: (k, j)),
            ],
            out_specs=pl.BlockSpec((tm, tn), lambda i, j, k: (i, j)),
            scratch_shapes=[pltpu.VMEM((tm, tn), jnp.float32)],
        ),
        compiler_params=pltpu.CompilerParams(
            dimension_semantics=("parallel", "parallel", "arbitrary")),
    )(a, b)


# ---------------------------------------------------------------------------
# Kernel 2: tiled per-relation aggregation, concatenated (layer-1) output
#   out[:, i*W:(i+1)*W] = ReLU(adj_i @ support[:, i*W:(i+1)*W] + b_i)
# ---------------------------------------------------------------------------
def _gcn_agg_kernel(sup_ref, adj_ref, b_ref, out_ref, acc_ref,
                    *, dim, width, tk, sup_resident):
    k = pl.program_id(1)

    @pl.when(k == 0)
    def _():
        acc_ref[...] = jnp.zeros_like(acc_ref)

    if sup_resident:
        row0 = pl.multiple_of(k * tk, tk)

    # Accumulate each relation into a lane-aligned slice of the f32 accumulator
    # (width is a multiple of 128, so no concatenation / lane shuffles per step).
    for i in range(dim):
        if sup_resident:
            sup_i = sup_ref[pl.ds(row0, tk), pl.ds(i * width, width)]
        else:
            sup_i = sup_ref[:, i * width:(i + 1) * width]
        acc_ref[:, i * width:(i + 1) * width] += jnp.dot(
            adj_ref[i], sup_i, preferred_element_type=jnp.float32)

    @pl.when(k == pl.num_programs(1) - 1)
    def _():
        out_ref[...] = jnp.maximum(
            acc_ref[...] + b_ref[...], 0.0).astype(out_ref.dtype)


def gcn_aggregate(support, adj, bcat, *, allow_resident=True):
    """support:(Np, dim*W), adj:(dim,Np,Np), bcat:(1, dim*W) -> (Np, dim*W)."""
    dim, n_pad, _ = adj.shape
    dw = support.shape[1]
    width = dw // dim
    in_bytes = jnp.dtype(support.dtype).itemsize
    tm, tk, resident, vmem_limit = _agg_plan(
        n_pad, dim, dw, dw, in_bytes, allow_resident)

    kernel = functools.partial(_gcn_agg_kernel, dim=dim, width=width,
                               tk=tk, sup_resident=resident)
    if resident:
        sup_spec = pl.BlockSpec((n_pad, dw), lambda m, k: (0, 0))   # DMA'd once
    else:
        sup_spec = pl.BlockSpec((tk, dw), lambda m, k: (k, 0))      # k-tile stream

    return pl.pallas_call(
        kernel,
        out_shape=jax.ShapeDtypeStruct((n_pad, dw), support.dtype),
        grid_spec=pltpu.PrefetchScalarGridSpec(
            num_scalar_prefetch=0,
            grid=(n_pad // tm, n_pad // tk),
            in_specs=[
                sup_spec,
                pl.BlockSpec((dim, tm, tk), lambda m, k: (0, m, k)),
                pl.BlockSpec((1, dw), lambda m, k: (0, 0)),
            ],
            out_specs=pl.BlockSpec((tm, dw), lambda m, k: (m, 0)),  # lane-dense slab
            scratch_shapes=[pltpu.VMEM((tm, dw), jnp.float32)],
        ),
        compiler_params=pltpu.CompilerParams(
            dimension_semantics=("parallel", "arbitrary"),
            vmem_limit_bytes=vmem_limit,
        ),
    )(support, adj, bcat)


# ---------------------------------------------------------------------------
# Kernel 3: tiled per-relation aggregation fused with pooling over relations
#   z_i = ReLU(adj_i @ support[:, i*W:(i+1)*W] + b_i);  out = pool_i z_i
# ---------------------------------------------------------------------------
def _gcn_agg_pool_kernel(sup_ref, adj_ref, b_ref, out_ref, acc_ref,
                         *, dim, width, tk, sup_resident, pooling):
    k = pl.program_id(1)

    @pl.when(k == 0)
    def _():
        acc_ref[...] = jnp.zeros_like(acc_ref)

    if sup_resident:
        row0 = pl.multiple_of(k * tk, tk)

    for i in range(dim):
        if sup_resident:
            sup_i = sup_ref[pl.ds(row0, tk), pl.ds(i * width, width)]
        else:
            sup_i = sup_ref[:, i * width:(i + 1) * width]
        acc_ref[:, i * width:(i + 1) * width] += jnp.dot(
            adj_ref[i], sup_i, preferred_element_type=jnp.float32)

    @pl.when(k == pl.num_programs(1) - 1)
    def _():
        z = jnp.maximum(acc_ref[...] + b_ref[...], 0.0)   # (tm, dim*width)
        pooled = z[:, 0:width]
        for i in range(1, dim):
            zi = z[:, i * width:(i + 1) * width]
            if pooling == "avg":
                pooled = pooled + zi
            elif pooling == "max":
                pooled = jnp.maximum(pooled, zi)
            else:  # 'min'
                pooled = jnp.minimum(pooled, zi)
        if pooling == "avg":
            pooled = pooled * (1.0 / dim)
        out_ref[...] = pooled.astype(out_ref.dtype)        # lane-dense (tm, 128k)


def gcn_aggregate_pooled(support, adj, bcat, pooling, *, allow_resident=True):
    """support:(Np, dim*C), adj:(dim,Np,Np), bcat:(1, dim*C) -> (Np, C), f32."""
    dim, n_pad, _ = adj.shape
    dw = support.shape[1]
    width = dw // dim
    in_bytes = jnp.dtype(support.dtype).itemsize
    tm, tk, resident, vmem_limit = _agg_plan(
        n_pad, dim, dw, width, in_bytes, allow_resident)

    kernel = functools.partial(_gcn_agg_pool_kernel, dim=dim, width=width,
                               tk=tk, sup_resident=resident, pooling=pooling)
    if resident:
        sup_spec = pl.BlockSpec((n_pad, dw), lambda m, k: (0, 0))
    else:
        sup_spec = pl.BlockSpec((tk, dw), lambda m, k: (k, 0))

    return pl.pallas_call(
        kernel,
        out_shape=jax.ShapeDtypeStruct((n_pad, width), jnp.float32),
        grid_spec=pltpu.PrefetchScalarGridSpec(
            num_scalar_prefetch=0,
            grid=(n_pad // tm, n_pad // tk),
            in_specs=[
                sup_spec,
                pl.BlockSpec((dim, tm, tk), lambda m, k: (0, m, k)),
                pl.BlockSpec((1, dw), lambda m, k: (0, 0)),
            ],
            out_specs=pl.BlockSpec((tm, width), lambda m, k: (m, 0)),
            scratch_shapes=[pltpu.VMEM((tm, dw), jnp.float32)],
        ),
        compiler_params=pltpu.CompilerParams(
            dimension_semantics=("parallel", "arbitrary"),
            vmem_limit_bytes=vmem_limit,
        ),
    )(support, adj, bcat)


# ---------------------------------------------------------------------------
# Parameter packing (done ONCE, outside the jitted forward)
# ---------------------------------------------------------------------------
def pack_params(params, compute_dtype=jnp.float32):
    """Concatenate per-relation weights, zero-padding widths to 128 lanes."""
    w1, b1, w2, b2 = params["w1"], params["b1"], params["w2"], params["b2"]
    dim, nfeat, nhid = w1.shape
    nclass = w2.shape[2]
    hp = _round_up(nhid, 128)
    cp = _round_up(nclass, 128)

    # Layer 1: (nfeat, dim*Hp) / (1, dim*Hp)
    w1p = jnp.pad(w1, ((0, 0), (0, 0), (0, hp - nhid)))
    w1cat = jnp.transpose(w1p, (1, 0, 2)).reshape(nfeat, dim * hp)
    b1p = jnp.pad(b1, ((0, 0), (0, 0), (0, hp - nhid)))
    b1cat = jnp.transpose(b1p, (1, 0, 2)).reshape(1, dim * hp)

    # Layer 2: scatter input rows (dim*nhid -> dim*Hp) to match the padded hcat
    # layout, pad output classes to Cp.
    w2r = w2.reshape(dim, dim, nhid, nclass)                       # (out, in, j, c)
    w2r = jnp.pad(w2r, ((0, 0), (0, 0), (0, hp - nhid), (0, cp - nclass)))
    w2cat = jnp.transpose(w2r, (1, 2, 0, 3)).reshape(dim * hp, dim * cp)
    b2p = jnp.pad(b2, ((0, 0), (0, 0), (0, cp - nclass)))
    b2cat = jnp.transpose(b2p, (1, 0, 2)).reshape(1, dim * cp)

    return {
        "w1cat": w1cat.astype(compute_dtype),
        "b1cat": b1cat.astype(jnp.float32),   # bias added to the f32 accumulator
        "w2cat": w2cat.astype(compute_dtype),
        "b2cat": b2cat.astype(jnp.float32),
    }


# ---------------------------------------------------------------------------
# MultiGCN forward
# ---------------------------------------------------------------------------
def multi_gcn_forward(x, adj, packed, *, pooling, nclass, allow_resident=True):
    w1cat, b1cat = packed["w1cat"], packed["b1cat"]
    w2cat, b2cat = packed["w2cat"], packed["b2cat"]
    dim, N, _ = adj.shape
    cdt = w1cat.dtype                       # compute dtype (f32 or bf16)

    # Pad node count so every block is (8,128)-aligned.  Zero-padded adjacency
    # rows/cols and feature rows contribute nothing; padded rows are sliced
    # away at the end.  (For repeated calls on the same graph this padding and
    # the adj dtype cast can be hoisted outside the forward.)
    n_pad = _round_up(max(N, 128), 128)
    pad = n_pad - N
    x = x.astype(cdt)
    adj = adj.astype(cdt)
    if pad:
        x = jnp.pad(x, ((0, pad), (0, 0)))
        adj = jnp.pad(adj, ((0, 0), (0, pad), (0, pad)))

    # Layer 1: one lane-dense support matmul + tiled aggregation; the output is
    # written directly in the concatenated layout, so stack/permute/reshape is
    # a no-op.
    support1 = matmul(x, w1cat, out_dtype=cdt)                       # (Np, dim*Hp)
    hcat = gcn_aggregate(support1, adj, b1cat,
                         allow_resident=allow_resident)              # (Np, dim*Hp)

    # Layer 2 + fused avg/max/min pooling over relations.
    support2 = matmul(hcat, w2cat, out_dtype=cdt)                    # (Np, dim*Cp)
    pooled = gcn_aggregate_pooled(support2, adj, b2cat, pooling,
                                  allow_resident=allow_resident)     # (Np, Cp) f32
    return pooled[:N, :nclass]


def multi_gcn_reference(x, adj, params, pooling):
    """Pure-JAX f32 reference (full-precision matmuls) for verification."""
    w1, b1, w2, b2 = params["w1"], params["b1"], params["w2"], params["b2"]
    dim, N, _ = adj.shape
    with jax.default_matmul_precision("float32"):
        h = jnp.stack(
            [jax.nn.relu(adj[i] @ (x @ w1[i]) + b1[i]) for i in range(dim)])
        hcat = jnp.transpose(h, (1, 0, 2)).reshape(N, -1)
        z = jnp.stack(
            [jax.nn.relu(adj[i] @ (hcat @ w2[i]) + b2[i]) for i in range(dim)])
    if pooling == "avg":
        return jnp.mean(z, 0)
    if pooling == "max":
        return jnp.max(z, 0)
    return jnp.min(z, 0)


# ---------------------------------------------------------------------------
# Self-test
# ---------------------------------------------------------------------------
def _make_case(N, nfeat, nhid, nclass, dim, seed=0):
    key = jax.random.PRNGKey(seed)
    kx, ka, k1, k2, k3, k4 = jax.random.split(key, 6)
    x = jax.random.normal(kx, (N, nfeat), dtype=jnp.float32)
    adj_raw = (jax.random.uniform(ka, (dim, N, N)) > 0.6).astype(jnp.float32)
    adj_raw = adj_raw + jnp.eye(N, dtype=jnp.float32)[None]
    adj = adj_raw / jnp.sum(adj_raw, axis=-1, keepdims=True)
    params = {
        "w1": jax.random.normal(k1, (dim, nfeat, nhid), jnp.float32) * 0.1,
        "b1": jax.random.normal(k2, (dim, 1, nhid), jnp.float32) * 0.1,
        "w2": jax.random.normal(k3, (dim, dim * nhid, nclass), jnp.float32) * 0.1,
        "b2": jax.random.normal(k4, (dim, 1, nclass), jnp.float32) * 0.1,
    }
    return x, adj, params


if __name__ == "__main__":
    nfeat, nhid, nclass, dim, pooling = 8, 32, 8, 3, "avg"
    fwd = jax.jit(multi_gcn_forward,
                  static_argnames=("pooling", "nclass", "allow_resident"))

    # --- Test A: tiny graph (N=16 -> padded to 128, single-tile grid), f32 ---
    xA, adjA, pA = _make_case(16, nfeat, nhid, nclass, dim, seed=0)
    packA = pack_params(pA, jnp.float32)
    outA = jax.block_until_ready(fwd(xA, adjA, packA, pooling=pooling, nclass=nclass))
    refA = multi_gcn_reference(xA, adjA, pA, pooling)
    assert outA.shape == (16, nclass), outA.shape
    assert jnp.allclose(outA, refA, atol=1e-4, rtol=1e-4), "f32 mismatch (tiny)"

    # --- Test B: N=300 -> padded to 384, multi-tile accumulator path, f32 ---
    xB, adjB, pB = _make_case(300, nfeat, nhid, nclass, dim, seed=1)
    packB = pack_params(pB, jnp.float32)
    refB = multi_gcn_reference(xB, adjB, pB, pooling)
    outB = jax.block_until_ready(fwd(xB, adjB, packB, pooling=pooling, nclass=nclass))
    assert outB.shape == (300, nclass), outB.shape
    assert jnp.allclose(outB, refB, atol=1e-4, rtol=1e-4), "f32 mismatch (tiled)"

    # --- Test B2: same graph, force the k-tiled (non-resident) support path ---
    outB2 = jax.block_until_ready(
        fwd(xB, adjB, packB, pooling=pooling, nclass=nclass, allow_resident=False))
    assert jnp.allclose(outB2, refB, atol=1e-4, rtol=1e-4), "f32 mismatch (streamed)"

    # --- Test C: bf16 adj/support/weights, f32 accumulation (perf path) ---
    packC = pack_params(pB, jnp.bfloat16)
    adjC = adjB.astype(jnp.bfloat16)   # pre-cast once, like the pre-packed weights
    outC = jax.block_until_ready(fwd(xB, adjC, packC, pooling=pooling, nclass=nclass))
    assert outC.shape == (300, nclass), outC.shape
    assert jnp.allclose(outC, refB, atol=5e-2, rtol=5e-2), "bf16 mismatch"

    print("KERNEL_OK")
</pallas_src>

<mosaic_0001>
module attributes {stable_mosaic.version = 11 : i64} {
  func.func @_matmul_kernel(%arg0: i32, %arg1: i32, %arg2: i32, %arg3: memref<128x8xf32, #tpu.memory_space<vmem>>, %arg4: memref<8x128xf32, #tpu.memory_space<vmem>>, %arg5: memref<128x128xf32, #tpu.memory_space<vmem>>, %arg6: memref<128x128xf32, #tpu.memory_space<vmem>>) attributes {dimension_semantics = [#tpu.dimension_semantics<parallel>, #tpu.dimension_semantics<parallel>, #tpu.dimension_semantics<arbitrary>], iteration_bounds = array<i64: 1, 3, 1>, scalar_prefetch = 0 : i64, scratch_operands = 1 : i64, tpu.core_type = #tpu.core_type<tc>, window_params = [{transform_indices = @transform_0, window_bounds = array<i64: 128, 8>}, {transform_indices = @transform_1, window_bounds = array<i64: 8, 128>}, {transform_indices = @transform_2, window_bounds = array<i64: 128, 128>}]} {
    %c0_i32 = arith.constant 0 : i32
    %0 = arith.cmpi eq, %arg2, %c0_i32 : i32
    %1 = arith.extui %0 : i1 to i32
    %c0_i32_0 = arith.constant 0 : i32
    %2 = arith.cmpi ne, %1, %c0_i32_0 : i32
    scf.if %2 {
      %cst_10 = arith.constant 0.000000e+00 : f32
      %12 = vector.broadcast %cst_10 : f32 to vector<128x128xf32>
      %c0_11 = arith.constant 0 : index
      %c0_12 = arith.constant 0 : index
      %13 = vector.load %arg6[%c0_11, %c0_12] : memref<128x128xf32, #tpu.memory_space<vmem>>, vector<128x128xf32>
      tpu.vector_store %arg6[%c0_11, %c0_12], %12 {strides = array<i32>} : memref<128x128xf32, #tpu.memory_space<vmem>>, vector<128x128xf32>,
    } else {
    }
    %c0 = arith.constant 0 : index
    %c0_1 = arith.constant 0 : index
    %3 = vector.load %arg6[%c0, %c0_1] : memref<128x128xf32, #tpu.memory_space<vmem>>, vector<128x128xf32>
    %c0_2 = arith.constant 0 : index
    %c0_3 = arith.constant 0 : index
    %4 = vector.load %arg3[%c0_2, %c0_3] : memref<128x8xf32, #tpu.memory_space<vmem>>, vector<128x8xf32>
    %c0_4 = arith.constant 0 : index
    %c0_5 = arith.constant 0 : index
    %5 = vector.load %arg4[%c0_4, %c0_5] : memref<8x128xf32, #tpu.memory_space<vmem>>, vector<8x128xf32>
    %cst = arith.constant dense<0.000000e+00> : vector<128x128xf32>
    %6 = tpu.matmul %4, %5, %cst {dimension_numbers = #tpu.dot_dimension_numbers<[1], [0], [0], [1], [0, 0, 1, 1], [], []>} : vector<128x8xf32>, vector<8x128xf32>, vector<128x128xf32> -> vector<128x128xf32>
    %7 = arith.addf %3, %6 : vector<128x128xf32>
    %c0_6 = arith.constant 0 : index
    %c0_7 = arith.constant 0 : index
    %8 = vector.load %arg6[%c0_6, %c0_7] : memref<128x128xf32, #tpu.memory_space<vmem>>, vector<128x128xf32>
    tpu.vector_store %arg6[%c0_6, %c0_7], %7 {strides = array<i32>} : memref<128x128xf32, #tpu.memory_space<vmem>>, vector<128x128xf32>,
    %c0_i32_8 = arith.constant 0 : i32
    %9 = arith.cmpi eq, %arg2, %c0_i32_8 : i32
    %10 = arith.extui %9 : i1 to i32
    %c0_i32_9 = arith.constant 0 : i32
    %11 = arith.cmpi ne, %10, %c0_i32_9 : i32
    scf.if %11 {
      %c0_10 = arith.constant 0 : index
      %c0_11 = arith.constant 0 : index
      %12 = vector.load %arg6[%c0_10, %c0_11] : memref<128x128xf32, #tpu.memory_space<vmem>>, vector<128x128xf32>
      %c0_12 = arith.constant 0 : index
      %c0_13 = arith.constant 0 : index
      %13 = vector.load %arg5[%c0_12, %c0_13] : memref<128x128xf32, #tpu.memory_space<vmem>>, vector<128x128xf32>
      tpu.vector_store %arg5[%c0_12, %c0_13], %12 {strides = array<i32>} : memref<128x128xf32, #tpu.memory_space<vmem>>, vector<128x128xf32>,
    } else {
    }
    return
  }
  func.func @transform_0(%arg0: i32, %arg1: i32, %arg2: i32) -> (i32, i32) {
    %c0_i32 = arith.constant 0 : i32
    return %arg0, %arg2 : i32, i32
  }
  func.func @transform_1(%arg0: i32, %arg1: i32, %arg2: i32) -> (i32, i32) {
    %c0_i32 = arith.constant 0 : i32
    return %arg2, %arg1 : i32, i32
  }
  func.func @transform_2(%arg0: i32, %arg1: i32, %arg2: i32) -> (i32, i32) {
    %c0_i32 = arith.constant 0 : i32
    return %arg0, %arg1 : i32, i32
  }
}

module attributes {stable_mosaic.version = 11 : i64} {
  func.func @_matmul_kernel(%arg0: i32, %arg1: i32, %arg2: i32, %arg3: memref<128x128xf32, #tpu.memory_space<vmem>>, %arg4: memref<128x128xf32, #tpu.memory_space<vmem>>, %arg5: memref<128x128xf32, #tpu.memory_space<vmem>>, %arg6: memref<128x128xf32, #tpu.memory_space<vmem>>) attributes {dimension_semantics = [#tpu.dimension_semantics<parallel>, #tpu.dimension_semantics<parallel>, #tpu.dimension_semantics<arbitrary>], iteration_bounds = array<i64: 1, 3, 3>, scalar_prefetch = 0 : i64, scratch_operands = 1 : i64, tpu.core_type = #tpu.core_type<tc>, window_params = [{transform_indices = @transform_0, window_bounds = array<i64: 128, 128>}, {transform_indices = @transform_1, window_bounds = array<i64: 128, 128>}, {transform_indices = @transform_2, window_bounds = array<i64: 128, 128>}]} {
    %c0_i32 = arith.constant 0 : i32
    %0 = arith.cmpi eq, %arg2, %c0_i32 : i32
    %1 = arith.extui %0 : i1 to i32
    %c0_i32_0 = arith.constant 0 : i32
    %2 = arith.cmpi ne, %1, %c0_i32_0 : i32
    scf.if %2 {
      %cst_9 = arith.constant 0.000000e+00 : f32
      %12 = vector.broadcast %cst_9 : f32 to vector<128x128xf32>
      %c0_10 = arith.constant 0 : index
      %c0_11 = arith.constant 0 : index
      %13 = vector.load %arg6[%c0_10, %c0_11] : memref<128x128xf32, #tpu.memory_space<vmem>>, vector<128x128xf32>
      tpu.vector_store %arg6[%c0_10, %c0_11], %12 {strides = array<i32>} : memref<128x128xf32, #tpu.memory_space<vmem>>, vector<128x128xf32>,
    } else {
    }
    %c0 = arith.constant 0 : index
    %c0_1 = arith.constant 0 : index
    %3 = vector.load %arg6[%c0, %c0_1] : memref<128x128xf32, #tpu.memory_space<vmem>>, vector<128x128xf32>
    %c0_2 = arith.constant 0 : index
    %c0_3 = arith.constant 0 : index
    %4 = vector.load %arg3[%c0_2, %c0_3] : memref<128x128xf32, #tpu.memory_space<vmem>>, vector<128x128xf32>
    %c0_4 = arith.constant 0 : index
    %c0_5 = arith.constant 0 : index
    %5 = vector.load %arg4[%c0_4, %c0_5] : memref<128x128xf32, #tpu.memory_space<vmem>>, vector<128x128xf32>
    %cst = arith.constant dense<0.000000e+00> : vector<128x128xf32>
    %6 = tpu.matmul %4, %5, %cst {dimension_numbers = #tpu.dot_dimension_numbers<[1], [0], [0], [1], [0, 0, 1, 1], [], []>} : vector<128x128xf32>, vector<128x128xf32>, vector<128x128xf32> -> vector<128x128xf32>
    %7 = arith.addf %3, %6 : vector<128x128xf32>
    %c0_6 = arith.constant 0 : index
    %c0_7 = arith.constant 0 : index
    %8 = vector.load %arg6[%c0_6, %c0_7] : memref<128x128xf32, #tpu.memory_space<vmem>>, vector<128x128xf32>
    tpu.vector_store %arg6[%c0_6, %c0_7], %7 {strides = array<i32>} : memref<128x128xf32, #tpu.memory_space<vmem>>, vector<128x128xf32>,
    %c2_i32 = arith.constant 2 : i32
    %9 = arith.cmpi eq, %arg2, %c2_i32 : i32
    %10 = arith.extui %9 : i1 to i32
    %c0_i32_8 = arith.constant 0 : i32
    %11 = arith.cmpi ne, %10, %c0_i32_8 : i32
    scf.if %11 {
      %c0_9 = arith.constant 0 : index
      %c0_10 = arith.constant 0 : index
      %12 = vector.load %arg6[%c0_9, %c0_10] : memref<128x128xf32, #tpu.memory_space<vmem>>, vector<128x128xf32>
      %c0_11 = arith.constant 0 : index
      %c0_12 = arith.constant 0 : index
      %13 = vector.load %arg5[%c0_11, %c0_12] : memref<128x128xf32, #tpu.memory_space<vmem>>, vector<128x128xf32>
      tpu.vector_store %arg5[%c0_11, %c0_12], %12 {strides = array<i32>} : memref<128x128xf32, #tpu.memory_space<vmem>>, vector<128x128xf32>,
    } else {
    }
    return
  }
  func.func @transform_0(%arg0: i32, %arg1: i32, %arg2: i32) -> (i32, i32) {
    %c0_i32 = arith.constant 0 : i32
    return %arg0, %arg2 : i32, i32
  }
  func.func @transform_1(%arg0: i32, %arg1: i32, %arg2: i32) -> (i32, i32) {
    %c0_i32 = arith.constant 0 : i32
    return %arg2, %arg1 : i32, i32
  }
  func.func @transform_2(%arg0: i32, %arg1: i32, %arg2: i32) -> (i32, i32) {
    %c0_i32 = arith.constant 0 : i32
    return %arg0, %arg1 : i32, i32
  }
}

module attributes {stable_mosaic.version = 11 : i64} {
  func.func @_gcn_agg_kernel(%arg0: i32, %arg1: i32, %arg2: memref<128x384xf32, #tpu.memory_space<vmem>>, %arg3: memref<3x128x128xf32, #tpu.memory_space<vmem>>, %arg4: memref<1x384xf32, #tpu.memory_space<vmem>>, %arg5: memref<128x384xf32, #tpu.memory_space<vmem>>, %arg6: memref<128x384xf32, #tpu.memory_space<vmem>>) attributes {dimension_semantics = [#tpu.dimension_semantics<parallel>, #tpu.dimension_semantics<arbitrary>], iteration_bounds = array<i64: 1, 1>, scalar_prefetch = 0 : i64, scratch_operands = 1 : i64, tpu.core_type = #tpu.core_type<tc>, window_params = [{pipeline_mode = #tpu.pipeline_mode<synchronous>, transform_indices = @transform_0, window_bounds = array<i64: 128, 384>}, {transform_indices = @transform_1, window_bounds = array<i64: 3, 128, 128>}, {pipeline_mode = #tpu.pipeline_mode<synchronous>, transform_indices = @transform_2, window_bounds = array<i64: 1, 384>}, {transform_indices = @transform_3, window_bounds = array<i64: 128, 384>}]} {
    %c0_i32 = arith.constant 0 : i32
    %0 = arith.cmpi eq, %arg1, %c0_i32 : i32
    %1 = arith.extui %0 : i1 to i32
    %c0_i32_0 = arith.constant 0 : i32
    %2 = arith.cmpi ne, %1, %c0_i32_0 : i32
    scf.if %2 {
      %cst_24 = arith.constant 0.000000e+00 : f32
      %32 = vector.broadcast %cst_24 : f32 to vector<128x384xf32>
      %c0_25 = arith.constant 0 : index
      %c0_26 = arith.constant 0 : index
      %33 = vector.load %arg6[%c0_25, %c0_26] : memref<128x384xf32, #tpu.memory_space<vmem>>, vector<128x384xf32>
      tpu.vector_store %arg6[%c0_25, %c0_26], %32 {strides = array<i32>} : memref<128x384xf32, #tpu.memory_space<vmem>>, vector<128x384xf32>,
    } else {
    }
    %c128_i32 = arith.constant 128 : i32
    %3 = arith.muli %arg1, %c128_i32 : i32
    %4 = tpu.assume_multiple %3, 128 : i32
    %5 = arith.index_cast %4 : i32 to index
    %c0 = arith.constant 0 : index
    %6 = vector.load %arg2[%5, %c0] : memref<128x384xf32, #tpu.memory_space<vmem>>, vector<128x128xf32>
    %c0_1 = arith.constant 0 : index
    %c0_2 = arith.constant 0 : index
    %7 = vector.load %arg6[%c0_1, %c0_2] : memref<128x384xf32, #tpu.memory_space<vmem>>, vector<128x128xf32>
    %c0_3 = arith.constant 0 : index
    %c0_4 = arith.constant 0 : index
    %c0_5 = arith.constant 0 : index
    %8 = vector.load %arg3[%c0_3, %c0_4, %c0_5] : memref<3x128x128xf32, #tpu.memory_space<vmem>>, vector<1x128x128xf32>
    %9 = vector.shape_cast %8 : vector<1x128x128xf32> to vector<128x128xf32>
    %cst = arith.constant dense<0.000000e+00> : vector<128x128xf32>
    %10 = tpu.matmul %9, %6, %cst {dimension_numbers = #tpu.dot_dimension_numbers<[1], [0], [0], [1], [0, 0, 1, 1], [], []>} : vector<128x128xf32>, vector<128x128xf32>, vector<128x128xf32> -> vector<128x128xf32>
    %11 = arith.addf %7, %10 : vector<128x128xf32>
    %c0_6 = arith.constant 0 : index
    %c0_7 = arith.constant 0 : index
    %12 = vector.load %arg6[%c0_6, %c0_7] : memref<128x384xf32, #tpu.memory_space<vmem>>, vector<128x128xf32>
    tpu.vector_store %arg6[%c0_6, %c0_7], %11 {strides = array<i32>} : memref<128x384xf32, #tpu.memory_space<vmem>>, vector<128x128xf32>,
    %13 = arith.index_cast %4 : i32 to index
    %c128 = arith.constant 128 : index
    %14 = vector.load %arg2[%13, %c128] : memref<128x384xf32, #tpu.memory_space<vmem>>, vector<128x128xf32>
    %c0_8 = arith.constant 0 : index
    %c128_9 = arith.constant 128 : index
    %15 = vector.load %arg6[%c0_8, %c128_9] : memref<128x384xf32, #tpu.memory_space<vmem>>, vector<128x128xf32>
    %c1 = arith.constant 1 : index
    %c0_10 = arith.constant 0 : index
    %c0_11 = arith.constant 0 : index
    %16 = vector.load %arg3[%c1, %c0_10, %c0_11] : memref<3x128x128xf32, #tpu.memory_space<vmem>>, vector<1x128x128xf32>
    %17 = vector.shape_cast %16 : vector<1x128x128xf32> to vector<128x128xf32>
    %cst_12 = arith.constant dense<0.000000e+00> : vector<128x128xf32>
    %18 = tpu.matmul %17, %14, %cst_12 {dimension_numbers = #tpu.dot_dimension_numbers<[1], [0], [0], [1], [0, 0, 1, 1], [], []>} : vector<128x128xf32>, vector<128x128xf32>, vector<128x128xf32> -> vector<128x128xf32>
    %19 = arith.addf %15, %18 : vector<128x128xf32>
    %c0_13 = arith.constant 0 : index
    %c128_14 = arith.constant 128 : index
    %20 = vector.load %arg6[%c0_13, %c128_14] : memref<128x384xf32, #tpu.memory_space<vmem>>, vector<128x128xf32>
    tpu.vector_store %arg6[%c0_13, %c128_14], %19 {strides = array<i32>} : memref<128x384xf32, #tpu.memory_space<vmem>>, vector<128x128xf32>,
    %21 = arith.index_cast %4 : i32 to index
    %c256 = arith.constant 256 : index
    %22 = vector.load %arg2[%21, %c256] : memref<128x384xf32, #tpu.memory_space<vmem>>, vector<128x128xf32>
    %c0_15 = arith.constant 0 : index
    %c256_16 = arith.constant 256 : index
    %23 = vector.load %arg6[%c0_15, %c256_16] : memref<128x384xf32, #tpu.memory_space<vmem>>, vector<128x128xf32>
    %c2 = arith.constant 2 : index
    %c0_17 = arith.constant 0 : index
    %c0_18 = arith.constant 0 : index
    %24 = vector.load %arg3[%c2, %c0_17, %c0_18] : memref<3x128x128xf32, #tpu.memory_space<vmem>>, vector<1x128x128xf32>
    %25 = vector.shape_cast %24 : vector<1x128x128xf32> to vector<128x128xf32>
    %cst_19 = arith.constant dense<0.000000e+00> : vector<128x128xf32>
    %26 = tpu.matmul %25, %22, %cst_19 {dimension_numbers = #tpu.dot_dimension_numbers<[1], [0], [0], [1], [0, 0, 1, 1], [], []>} : vector<128x128xf32>, vector<128x128xf32>, vector<128x128xf32> -> vector<128x128xf32>
    %27 = arith.addf %23, %26 : vector<128x128xf32>
    %c0_20 = arith.constant 0 : index
    %c256_21 = arith.constant 256 : index
    %28 = vector.load %arg6[%c0_20, %c256_21] : memref<128x384xf32, #tpu.memory_space<vmem>>, vector<128x128xf32>
    tpu.vector_store %arg6[%c0_20, %c256_21], %27 {strides = array<i32>} : memref<128x384xf32, #tpu.memory_space<vmem>>, vector<128x128xf32>,
    %c0_i32_22 = arith.constant 0 : i32
    %29 = arith.cmpi eq, %arg1, %c0_i32_22 : i32
    %30 = arith.extui %29 : i1 to i32
    %c0_i32_23 = arith.constant 0 : i32
    %31 = arith.cmpi ne, %30, %c0_i32_23 : i32
    scf.if %31 {
      %c0_24 = arith.constant 0 : index
      %c0_25 = arith.constant 0 : index
      %32 = vector.load %arg6[%c0_24, %c0_25] : memref<128x384xf32, #tpu.memory_space<vmem>>, vector<128x384xf32>
      %c0_26 = arith.constant 0 : index
      %c0_27 = arith.constant 0 : index
      %33 = vector.load %arg4[%c0_26, %c0_27] : memref<1x384xf32, #tpu.memory_space<vmem>>, vector<1x384xf32>
      %34 = vector.broadcast %33 : vector<1x384xf32> to vector<128x384xf32>
      %35 = arith.addf %32, %34 : vector<128x384xf32>
      %cst_28 = arith.constant 0.000000e+00 : f32
      %36 = vector.broadcast %cst_28 : f32 to vector<128x384xf32>
      %37 = arith.maximumf %35, %36 : vector<128x384xf32>
      %c0_29 = arith.constant 0 : index
      %c0_30 = arith.constant 0 : index
      %38 = vector.load %arg5[%c0_29, %c0_30] : memref<128x384xf32, #tpu.memory_space<vmem>>, vector<128x384xf32>
      tpu.vector_store %arg5[%c0_29, %c0_30], %37 {strides = array<i32>} : memref<128x384xf32, #tpu.memory_space<vmem>>, vector<128x384xf32>,
    } else {
    }
    return
  }
  func.func @transform_0(%arg0: i32, %arg1: i32) -> (i32, i32) {
    %c0_i32 = arith.constant 0 : i32
    %c0_i32_0 = arith.constant 0 : i32
    %c0_i32_1 = arith.constant 0 : i32
    return %c0_i32, %c0_i32_0 : i32, i32
  }
  func.func @transform_1(%arg0: i32, %arg1: i32) -> (i32, i32, i32) {
    %c0_i32 = arith.constant 0 : i32
    %c0_i32_0 = arith.constant 0 : i32
    return %c0_i32, %arg0, %arg1 : i32, i32, i32
  }
  func.func @transform_2(%arg0: i32, %arg1: i32) -> (i32, i32) {
    %c0_i32 = arith.constant 0 : i32
    %c0_i32_0 = arith.constant 0 : i32
    %c0_i32_1 = arith.constant 0 : i32
    return %c0_i32, %c0_i32_0 : i32, i32
  }
  func.func @transform_3(%arg0: i32, %arg1: i32) -> (i32, i32) {
    %c0_i32 = arith.constant 0 : i32
    %c0_i32_0 = arith.constant 0 : i32
    return %arg0, %c0_i32 : i32, i32
  }
}

module attributes {stable_mosaic.version = 11 : i64} {
  func.func @_gcn_agg_pool_kernel(%arg0: i32, %arg1: i32, %arg2: memref<128x384xf32, #tpu.memory_space<vmem>>, %arg3: memref<3x128x128xf32, #tpu.memory_space<vmem>>, %arg4: memref<1x384xf32, #tpu.memory_space<vmem>>, %arg5: memref<128x128xf32, #tpu.memory_space<vmem>>, %arg6: memref<128x384xf32, #tpu.memory_space<vmem>>) attributes {dimension_semantics = [#tpu.dimension_semantics<parallel>, #tpu.dimension_semantics<arbitrary>], iteration_bounds = array<i64: 1, 1>, scalar_prefetch = 0 : i64, scratch_operands = 1 : i64, tpu.core_type = #tpu.core_type<tc>, window_params = [{pipeline_mode = #tpu.pipeline_mode<synchronous>, transform_indices = @transform_0, window_bounds = array<i64: 128, 384>}, {transform_indices = @transform_1, window_bounds = array<i64: 3, 128, 128>}, {pipeline_mode = #tpu.pipeline_mode<synchronous>, transform_indices = @transform_2, window_bounds = array<i64: 1, 384>}, {transform_indices = @transform_3, window_bounds = array<i64: 128, 128>}]} {
    %c0_i32 = arith.constant 0 : i32
    %0 = arith.cmpi eq, %arg1, %c0_i32 : i32
    %1 = arith.extui %0 : i1 to i32
    %c0_i32_0 = arith.constant 0 : i32
    %2 = arith.cmpi ne, %1, %c0_i32_0 : i32
    scf.if %2 {
      %cst_24 = arith.constant 0.000000e+00 : f32
      %32 = vector.broadcast %cst_24 : f32 to vector<128x384xf32>
      %c0_25 = arith.constant 0 : index
      %c0_26 = arith.constant 0 : index
      %33 = vector.load %arg6[%c0_25, %c0_26] : memref<128x384xf32, #tpu.memory_space<vmem>>, vector<128x384xf32>
      tpu.vector_store %arg6[%c0_25, %c0_26], %32 {strides = array<i32>} : memref<128x384xf32, #tpu.memory_space<vmem>>, vector<128x384xf32>,
    } else {
    }
    %c128_i32 = arith.constant 128 : i32
    %3 = arith.muli %arg1, %c128_i32 : i32
    %4 = tpu.assume_multiple %3, 128 : i32
    %5 = arith.index_cast %4 : i32 to index
    %c0 = arith.constant 0 : index
    %6 = vector.load %arg2[%5, %c0] : memref<128x384xf32, #tpu.memory_space<vmem>>, vector<128x128xf32>
    %c0_1 = arith.constant 0 : index
    %c0_2 = arith.constant 0 : index
    %7 = vector.load %arg6[%c0_1, %c0_2] : memref<128x384xf32, #tpu.memory_space<vmem>>, vector<128x128xf32>
    %c0_3 = arith.constant 0 : index
    %c0_4 = arith.constant 0 : index
    %c0_5 = arith.constant 0 : index
    %8 = vector.load %arg3[%c0_3, %c0_4, %c0_5] : memref<3x128x128xf32, #tpu.memory_space<vmem>>, vector<1x128x128xf32>
    %9 = vector.shape_cast %8 : vector<1x128x128xf32> to vector<128x128xf32>
    %cst = arith.constant dense<0.000000e+00> : vector<128x128xf32>
    %10 = tpu.matmul %9, %6, %cst {dimension_numbers = #tpu.dot_dimension_numbers<[1], [0], [0], [1], [0, 0, 1, 1], [], []>} : vector<128x128xf32>, vector<128x128xf32>, vector<128x128xf32> -> vector<128x128xf32>
    %11 = arith.addf %7, %10 : vector<128x128xf32>
    %c0_6 = arith.constant 0 : index
    %c0_7 = arith.constant 0 : index
    %12 = vector.load %arg6[%c0_6, %c0_7] : memref<128x384xf32, #tpu.memory_space<vmem>>, vector<128x128xf32>
    tpu.vector_store %arg6[%c0_6, %c0_7], %11 {strides = array<i32>} : memref<128x384xf32, #tpu.memory_space<vmem>>, vector<128x128xf32>,
    %13 = arith.index_cast %4 : i32 to index
    %c128 = arith.constant 128 : index
    %14 = vector.load %arg2[%13, %c128] : memref<128x384xf32, #tpu.memory_space<vmem>>, vector<128x128xf32>
    %c0_8 = arith.constant 0 : index
    %c128_9 = arith.constant 128 : index
    %15 = vector.load %arg6[%c0_8, %c128_9] : memref<128x384xf32, #tpu.memory_space<vmem>>, vector<128x128xf32>
    %c1 = arith.constant 1 : index
    %c0_10 = arith.constant 0 : index
    %c0_11 = arith.constant 0 : index
    %16 = vector.load %arg3[%c1, %c0_10, %c0_11] : memref<3x128x128xf32, #tpu.memory_space<vmem>>, vector<1x128x128xf32>
    %17 = vector.shape_cast %16 : vector<1x128x128xf32> to vector<128x128xf32>
    %cst_12 = arith.constant dense<0.000000e+00> : vector<128x128xf32>
    %18 = tpu.matmul %17, %14, %cst_12 {dimension_numbers = #tpu.dot_dimension_numbers<[1], [0], [0], [1], [0, 0, 1, 1], [], []>} : vector<128x128xf32>, vector<128x128xf32>, vector<128x128xf32> -> vector<128x128xf32>
    %19 = arith.addf %15, %18 : vector<128x128xf32>
    %c0_13 = arith.constant 0 : index
    %c128_14 = arith.constant 128 : index
    %20 = vector.load %arg6[%c0_13, %c128_14] : memref<128x384xf32, #tpu.memory_space<vmem>>, vector<128x128xf32>
    tpu.vector_store %arg6[%c0_13, %c128_14], %19 {strides = array<i32>} : memref<128x384xf32, #tpu.memory_space<vmem>>, vector<128x128xf32>,
    %21 = arith.index_cast %4 : i32 to index
    %c256 = arith.constant 256 : index
    %22 = vector.load %arg2[%21, %c256] : memref<128x384xf32, #tpu.memory_space<vmem>>, vector<128x128xf32>
    %c0_15 = arith.constant 0 : index
    %c256_16 = arith.constant 256 : index
    %23 = vector.load %arg6[%c0_15, %c256_16] : memref<128x384xf32, #tpu.memory_space<vmem>>, vector<128x128xf32>
    %c2 = arith.constant 2 : index
    %c0_17 = arith.constant 0 : index
    %c0_18 = arith.constant 0 : index
    %24 = vector.load %arg3[%c2, %c0_17, %c0_18] : memref<3x128x128xf32, #tpu.memory_space<vmem>>, vector<1x128x128xf32>
    %25 = vector.shape_cast %24 : vector<1x128x128xf32> to vector<128x128xf32>
    %cst_19 = arith.constant dense<0.000000e+00> : vector<128x128xf32>
    %26 = tpu.matmul %25, %22, %cst_19 {dimension_numbers = #tpu.dot_dimension_numbers<[1], [0], [0], [1], [0, 0, 1, 1], [], []>} : vector<128x128xf32>, vector<128x128xf32>, vector<128x128xf32> -> vector<128x128xf32>
    %27 = arith.addf %23, %26 : vector<128x128xf32>
    %c0_20 = arith.constant 0 : index
    %c256_21 = arith.constant 256 : index
    %28 = vector.load %arg6[%c0_20, %c256_21] : memref<128x384xf32, #tpu.memory_space<vmem>>, vector<128x128xf32>
    tpu.vector_store %arg6[%c0_20, %c256_21], %27 {strides = array<i32>} : memref<128x384xf32, #tpu.memory_space<vmem>>, vector<128x128xf32>,
    %c0_i32_22 = arith.constant 0 : i32
    %29 = arith.cmpi eq, %arg1, %c0_i32_22 : i32
    %30 = arith.extui %29 : i1 to i32
    %c0_i32_23 = arith.constant 0 : i32
    %31 = arith.cmpi ne, %30, %c0_i32_23 : i32
    scf.if %31 {
      %c0_24 = arith.constant 0 : index
      %c0_25 = arith.constant 0 : index
      %32 = vector.load %arg6[%c0_24, %c0_25] : memref<128x384xf32, #tpu.memory_space<vmem>>, vector<128x384xf32>
      %c0_26 = arith.constant 0 : index
      %c0_27 = arith.constant 0 : index
      %33 = vector.load %arg4[%c0_26, %c0_27] : memref<1x384xf32, #tpu.memory_space<vmem>>, vector<1x384xf32>
      %34 = vector.broadcast %33 : vector<1x384xf32> to vector<128x384xf32>
      %35 = arith.addf %32, %34 : vector<128x384xf32>
      %cst_28 = arith.constant 0.000000e+00 : f32
      %36 = vector.broadcast %cst_28 : f32 to vector<128x384xf32>
      %37 = arith.maximumf %35, %36 : vector<128x384xf32>
      %38 = vector.extract_strided_slice %37 {offsets = [0, 0], sizes = [128, 128], strides = [1, 1]} : vector<128x384xf32> to vector<128x128xf32>
      %39 = vector.extract_strided_slice %37 {offsets = [0, 128], sizes = [128, 128], strides = [1, 1]} : vector<128x384xf32> to vector<128x128xf32>
      %40 = arith.addf %38, %39 : vector<128x128xf32>
      %41 = vector.extract_strided_slice %37 {offsets = [0, 256], sizes = [128, 128], strides = [1, 1]} : vector<128x384xf32> to vector<128x128xf32>
      %42 = arith.addf %40, %41 : vector<128x128xf32>
      %cst_29 = arith.constant 0.333333343 : f32
      %43 = vector.broadcast %cst_29 : f32 to vector<128x128xf32>
      %44 = arith.mulf %42, %43 : vector<128x128xf32>
      %c0_30 = arith.constant 0 : index
      %c0_31 = arith.constant 0 : index
      %45 = vector.load %arg5[%c0_30, %c0_31] : memref<128x128xf32, #tpu.memory_space<vmem>>, vector<128x128xf32>
      tpu.vector_store %arg5[%c0_30, %c0_31], %44 {strides = array<i32>} : memref<128x128xf32, #tpu.memory_space<vmem>>, vector<128x128xf32>,
    } else {
    }
    return
  }
  func.func @transform_0(%arg0: i32, %arg1: i32) -> (i32, i32) {
    %c0_i32 = arith.constant 0 : i32
    %c0_i32_0 = arith.constant 0 : i32
    %c0_i32_1 = arith.constant 0 : i32
    return %c0_i32, %c0_i32_0 : i32, i32
  }
  func.func @transform_1(%arg0: i32, %arg1: i32) -> (i32, i32, i32) {
    %c0_i32 = arith.constant 0 : i32
    %c0_i32_0 = arith.constant 0 : i32
    return %c0_i32, %arg0, %arg1 : i32, i32, i32
  }
  func.func @transform_2(%arg0: i32, %arg1: i32) -> (i32, i32) {
    %c0_i32 = arith.constant 0 : i32
    %c0_i32_0 = arith.constant 0 : i32
    %c0_i32_1 = arith.constant 0 : i32
    return %c0_i32, %c0_i32_0 : i32, i32
  }
  func.func @transform_3(%arg0: i32, %arg1: i32) -> (i32, i32) {
    %c0_i32 = arith.constant 0 : i32
    %c0_i32_0 = arith.constant 0 : i32
    return %arg0, %c0_i32 : i32, i32
  }
}

</mosaic_0001>

<llo_original>
// kernel: multi_gcn_forward.4
$region0: #{multi_gcn_forward.4}
  #allocation0 [shape = 'u32[]', space=smem, size = 0x4, offset = 0x4, fixed_abs, tag = 'smem constant byte address 0x4 - core index']
  #allocation1 [shape = 'u32[144,128]{1,0:T(1,128)}', space=vmem, size = 0x12000, scoped, tag = 'internal scratch']
  #allocation2 [shape = 'f32[128,128]{1,0:T(8,128)}', space=vmem, size = 0x10000, scoped, tag = 'scratch operand']
  %s0 = inlined_call_operand.vmem [shape: f32[128,8], index: 0, kind: input, shape index: {}]
  %s1 = inlined_call_operand.vmem [shape: f32[8,384], index: 1, kind: input, shape index: {}]
  %s2 = inlined_call_operand.vmem [shape: f32[128,384], index: 2, kind: output, shape index: {}]
  %s3 = sld [smem:[#allocation0]]
  $region83: #{multi_gcn_forward.4} parent=0
    _
  %s5 = ssub.s32 1, %s3
  %s6 = scalar_select 0, %s5, %s3
  $region1: #{multi_gcn_forward.4} parent=0
    #allocation3 [shape = 'u8[131072]{0}', space=vmem, size = 0x20000, scoped, tag = 'output window, operand 0']
    loop: start=0, step=1, limit=5
    $region2: #{multi_gcn_forward.4} parent=1 // loop_pre_header
      _
    $region3: #{multi_gcn_forward.4} parent=1 // loop_header
      %s8 = sphi 0, %s12
      %p9 = scmp.ge.s32.totalorder %s8, 5
      %s15 = sphi 0, %s34
      %s16 = sphi 0, %s30
      %s17 = sphi 0, %s26
      %s18 = sphi 0, %s15
      %s19 = sphi 0, %s16
      %s20 = sphi 0, %s17
      %s21 = sphi 0, %s18
      %s22 = sphi 0, %s19
      %s23 = sphi 0, %s20
      %s39 = sphi 0, %s41
      %s42 = sphi 0, %s39
      %s43 = sphi 0, %s42
      %s59 = sphi 0, %s43
      %s67 = sphi 0, %s69
      %s70 = sphi 0, %s67
      %s71 = sphi 0, %s70
      %s87 = sphi 0, %s71
      %s95 = sphi 0, %s97
      %s98 = sphi 0, %s95
      %s99 = sphi 0, %s98
      %s115 = sphi 0, %s99
    $region4: #{multi_gcn_forward.4} parent=1 // loop_header_branch
      %11 = sbr.rel (%p9) target = $region8
    $region5: #{multi_gcn_forward.4} parent=1 // loop_body
      %s13 = ssub.s32 %s8, 1
      %s14 = ssub.s32 %s8, 2
      %s24 = sadd.s32 1, %s17
      %p25 = scmp.ge.s32.totalorder %s24, 1
      %s26 = scalar_select %p25, 0, %s24
      %s27 = sadd.s32 1, %s16
      %s28 = scalar_select %p25, %s27, %s16
      %p29 = scmp.ge.s32.totalorder %s28, 3
      %s30 = scalar_select %p29, 0, %s28
      %s31 = sadd.s32 1, %s15
      %s32 = scalar_select %p29, %s31, %s15
      %p33 = scmp.ge.s32.totalorder %s32, 1
      %s34 = scalar_select %p33, 0, %s32
      %s35 = ssub.s32 %s15, %s34
      %s36 = ssub.s32 %s17, %s26
      %s37 = sor.u32 %s35, %s36
      %p38 = scmp.eq.s32.totalorder %s37, 0
      %s40 = sadd.s32 %s39, 1
      %s41 = scalar_select %p38, %s39, %s40
      %p44 = pneg %p38
      %p45 = scmp.eq.s32.totalorder %s8, 2
      %p46 = por %p44, %p45
      %p47 = scmp.ne.s32.totalorder %s39, %s42
      %p48 = scmp.eq.s32.totalorder %s8, 0
      %p49 = por %p47, %p48
      %p50 = scmp.ne.s32.totalorder %s39, %s42
      %p51 = scmp.eq.s32.totalorder %s13, 2
      %p52 = por %p50, %p51
      %p53 = scmp.ne.s32.totalorder %s42, %s43
      %p54 = scmp.eq.s32.totalorder %s13, 0
      %p55 = por %p53, %p54
      %p56 = scmp.ne.s32.totalorder %s42, %s43
      %p57 = scmp.eq.s32.totalorder %s14, 2
      %p58 = por %p56, %p57
      %p60 = scmp.ne.s32.totalorder %s43, %s59
      %p61 = scmp.eq.s32.totalorder %s14, 0
      %p62 = por %p60, %p61
      %s63 = ssub.s32 %s17, %s26
      %s64 = ssub.s32 %s16, %s30
      %s65 = sor.u32 %s63, %s64
      %p66 = scmp.eq.s32.totalorder %s65, 0
      %s68 = sadd.s32 %s67, 1
      %s69 = scalar_select %p66, %s67, %s68
      %p72 = pneg %p66
      %p73 = scmp.eq.s32.totalorder %s8, 2
      %p74 = por %p72, %p73
      %p75 = scmp.ne.s32.totalorder %s67, %s70
      %p76 = scmp.eq.s32.totalorder %s8, 0
      %p77 = por %p75, %p76
      %p78 = scmp.ne.s32.totalorder %s67, %s70
      %p79 = scmp.eq.s32.totalorder %s13, 2
      %p80 = por %p78, %p79
      %p81 = scmp.ne.s32.totalorder %s70, %s71
      %p82 = scmp.eq.s32.totalorder %s13, 0
      %p83 = por %p81, %p82
      %p84 = scmp.ne.s32.totalorder %s70, %s71
      %p85 = scmp.eq.s32.totalorder %s14, 2
      %p86 = por %p84, %p85
      %p88 = scmp.ne.s32.totalorder %s71, %s87
      %p89 = scmp.eq.s32.totalorder %s14, 0
      %p90 = por %p88, %p89
      %s91 = ssub.s32 %s15, %s34
      %s92 = ssub.s32 %s16, %s30
      %s93 = sor.u32 %s91, %s92
      %p94 = scmp.eq.s32.totalorder %s93, 0
      %s96 = sadd.s32 %s95, 1
      %s97 = scalar_select %p94, %s95, %s96
      %p100 = pneg %p94
      %p101 = scmp.eq.s32.totalorder %s8, 2
      %p102 = por %p100, %p101
      %p103 = scmp.ne.s32.totalorder %s95, %s98
      %p104 = scmp.eq.s32.totalorder %s8, 0
      %p105 = por %p103, %p104
      %p106 = scmp.ne.s32.totalorder %s95, %s98
      %p107 = scmp.eq.s32.totalorder %s13, 2
      %p108 = por %p106, %p107
      %p109 = scmp.ne.s32.totalorder %s98, %s99
      %p110 = scmp.eq.s32.totalorder %s13, 0
      %p111 = por %p109, %p110
      %p112 = scmp.ne.s32.totalorder %s98, %s99
      %p113 = scmp.eq.s32.totalorder %s14, 2
      %p114 = por %p112, %p113
      %p116 = scmp.ne.s32.totalorder %s99, %s115
      %p117 = scmp.eq.s32.totalorder %s14, 0
      %p118 = por %p116, %p117
      %p119 = scmp.le.s32.totalorder 1, %s8
      %p120 = scmp.lt.s32.totalorder %s8, 4
      %p121 = pnand %p119, %p120
      %p122 = pneg %p121
      // Predicated region
      $region9: #{multi_gcn_forward.4} parent=5 // pred_check
        _
      $region10: #{multi_gcn_forward.4} parent=5 // pred_check_branch
        %124 = sbr.rel (%p121) target = $region12
      $region11: #{multi_gcn_forward.4} parent=5 // pred_region
        %s125 = ssub.s32 %s8, 1
        // Predicated region
        $region13: #{multi_gcn_forward.4} parent=11 // pred_check
          %p126 = pneg %p55
        $region14: #{multi_gcn_forward.4} parent=11 // pred_check_branch
          %128 = sbr.rel (%p126) target = $region16
        $region15: #{multi_gcn_forward.4} parent=11 // pred_region
          %s129 = smul.u32 16, %s18
          %p130 = scmp.lt.s32.totalorder %s129, 15
          %s131 = scalar_select %p130, %s129, 15
          %p132 = scmp.lt.s32.totalorder %s20, 0
          %s133 = scalar_select %p132, %s20, 0
          %s134 = sadd.s32 %s133, %s131
          %s135 = smul.addr %s134, 8
          %s136 = scalar_lea.vmem %s0, %s135
          %s137 = smul.u32 16, %s18
        $region16: #{multi_gcn_forward.4} parent=11 // pred_fallthru
          _
      $region12: #{multi_gcn_forward.4} parent=5 // pred_fallthru
        _
      %p138 = scmp.lt.s32.totalorder %s8, 3
      // Predicated region
      $region17: #{multi_gcn_forward.4} parent=5 // pred_check
        %p139 = pneg %p138
      $region18: #{multi_gcn_forward.4} parent=5 // pred_check_branch
        %141 = sbr.rel (%p139) target = $region20
      $region19: #{multi_gcn_forward.4} parent=5 // pred_region
        // Predicated region
        $region21: #{multi_gcn_forward.4} parent=19 // pred_check
          %p142 = pneg %p77
        $region22: #{multi_gcn_forward.4} parent=19 // pred_check_branch
          %144 = sbr.rel (%p142) target = $region24
        $region23: #{multi_gcn_forward.4} parent=19 // pred_region
          %p145 = scmp.lt.s32.totalorder %s17, 0
          %s146 = scalar_select %p145, %s17, 0
          %p147 = scmp.lt.s32.totalorder %s16, 2
          %s148 = scalar_select %p147, %s16, 2
          %s149 = smul.addr %s146, 3
          %s150 = sadd.s32 %s148, %s149
          %s151 = smul.addr %s150, 8
          %s152 = scalar_lea.vmem %s1, %s151
        $region24: #{multi_gcn_forward.4} parent=19 // pred_fallthru
          _
      $region20: #{multi_gcn_forward.4} parent=5 // pred_fallthru
        _
      %p153 = scmp.le.s32.totalorder 1, %s8
      %p154 = scmp.lt.s32.totalorder %s8, 4
      %p155 = pnand %p153, %p154
      %p156 = pneg %p155
      // Predicated region
      $region25: #{multi_gcn_forward.4} parent=5 // pred_check
        _
      $region26: #{multi_gcn_forward.4} parent=5 // pred_check_branch
        %158 = sbr.rel (%p155) target = $region28
      $region27: #{multi_gcn_forward.4} parent=5 // pred_region
        %s159 = ssub.s32 %s8, 1
        %s160 = smul.u32 16, %s18
        %p161 = scmp.lt.s32.totalorder %s160, 15
        %s162 = scalar_select %p161, %s160, 15
        %p163 = scmp.lt.s32.totalorder %s20, 0
        %s164 = scalar_select %p163, %s20, 0
        %s165 = sadd.s32 %s164, %s162
        %s166 = smul.addr %s165, 8
        %s167 = scalar_lea.vmem %s0, %s166
        %p168 = pneg %p55
        %p169 = pneg %p52
        %p170 = scmp.lt.s32.totalorder %s20, 0
        %s171 = scalar_select %p170, %s20, 0
        %p172 = scmp.lt.s32.totalorder %s19, 2
        %s173 = scalar_select %p172, %s19, 2
        %s174 = smul.addr %s171, 3
        %s175 = sadd.s32 %s173, %s174
        %s176 = smul.addr %s175, 8
        %s177 = scalar_lea.vmem %s1, %s176
        %p178 = pneg %p83
        %p179 = pneg %p80
        %p180 = pneg %p111
        %p181 = pneg %p108
        %s182 = sand.u32 %s98, 1
        %s183 = sand.u32 %s98, 1
        %s184 = smul.addr %s183, 128
        %s185 = scalar_lea.vmem [#allocation3], %s184
        %s186 = smul.u32 16, %s18
        %p187 = scmp.lt.s32.totalorder %s186, 15
        %s188 = scalar_select %p187, %s186, 15
        %p189 = scmp.lt.s32.totalorder %s20, 0
        %s190 = scalar_select %p189, %s20, 0
        %s191 = sadd.s32 %s190, %s188
        %s192 = smul.addr %s191, 8
        %s193 = scalar_lea.vmem %s0, %s192
        %s194 = smul.u32 16, %s18
        %p195 = scmp.lt.s32.totalorder %s20, 0
        %s196 = scalar_select %p195, %s20, 0
        %p197 = scmp.lt.s32.totalorder %s19, 2
        %s198 = scalar_select %p197, %s19, 2
        %s199 = smul.addr %s196, 3
        %s200 = sadd.s32 %s198, %s199
        %s201 = smul.addr %s200, 8
        %s202 = scalar_lea.vmem %s1, %s201
        %s203 = smul.u32 16, %s18
        %p204 = scmp.eq.s32.totalorder %s20, 0
        // Predicated region
        $region29: #{multi_gcn_forward.4} parent=27 // pred_check
          %p205 = pneg %p204
        $region30: #{multi_gcn_forward.4} parent=27 // pred_check_branch
          %207 = sbr.rel (%p205) target = $region32
        $region31: #{multi_gcn_forward.4} parent=27 // pred_region
          %208 = vst [vmem:[#allocation2] sm:$0xff] 0.0
          %209 = vst [vmem:[#allocation2 + $0x8] sm:$0xff] 0.0
          %210 = vst [vmem:[#allocation2 + $0x10] sm:$0xff] 0.0
          %211 = vst [vmem:[#allocation2 + $0x18] sm:$0xff] 0.0
          %212 = vst [vmem:[#allocation2 + $0x20] sm:$0xff] 0.0
          %213 = vst [vmem:[#allocation2 + $0x28] sm:$0xff] 0.0
          %214 = vst [vmem:[#allocation2 + $0x30] sm:$0xff] 0.0
          %215 = vst [vmem:[#allocation2 + $0x38] sm:$0xff] 0.0
          %216 = vst [vmem:[#allocation2 + $0x40] sm:$0xff] 0.0
          %217 = vst [vmem:[#allocation2 + $0x48] sm:$0xff] 0.0
          %218 = vst [vmem:[#allocation2 + $0x50] sm:$0xff] 0.0
          %219 = vst [vmem:[#allocation2 + $0x58] sm:$0xff] 0.0
          %220 = vst [vmem:[#allocation2 + $0x60] sm:$0xff] 0.0
          %221 = vst [vmem:[#allocation2 + $0x68] sm:$0xff] 0.0
          %222 = vst [vmem:[#allocation2 + $0x70] sm:$0xff] 0.0
          %223 = vst [vmem:[#allocation2 + $0x78] sm:$0xff] 0.0
        $region32: #{multi_gcn_forward.4} parent=27 // pred_fallthru
          _
        %v224 = vld [vmem:[#allocation2] sm:$0xff]
        %v225 = vld [vmem:[#allocation2 + $0x8] sm:$0xff]
        %v226 = vld [vmem:[#allocation2 + $0x10] sm:$0xff]
        %v227 = vld [vmem:[#allocation2 + $0x18] sm:$0xff]
        %v228 = vld [vmem:[#allocation2 + $0x20] sm:$0xff]
        %v229 = vld [vmem:[#allocation2 + $0x28] sm:$0xff]
        %v230 = vld [vmem:[#allocation2 + $0x30] sm:$0xff]
        %v231 = vld [vmem:[#allocation2 + $0x38] sm:$0xff]
        %v232 = vld [vmem:[#allocation2 + $0x40] sm:$0xff]
        %v233 = vld [vmem:[#allocation2 + $0x48] sm:$0xff]
        %v234 = vld [vmem:[#allocation2 + $0x50] sm:$0xff]
        %v235 = vld [vmem:[#allocation2 + $0x58] sm:$0xff]
        %v236 = vld [vmem:[#allocation2 + $0x60] sm:$0xff]
        %v237 = vld [vmem:[#allocation2 + $0x68] sm:$0xff]
        %v238 = vld [vmem:[#allocation2 + $0x70] sm:$0xff]
        %v239 = vld [vmem:[#allocation2 + $0x78] sm:$0xff]
        %v240 = vld [vmem:[%s193] sm:$0xff]
        %v241 = vld [vmem:[%s193 + $0x8] sm:$0xff]
        %v242 = vld [vmem:[%s193 + $0x10] sm:$0xff]
        %v243 = vld [vmem:[%s193 + $0x18] sm:$0xff]
        %v244 = vld [vmem:[%s193 + $0x20] sm:$0xff]
        %v245 = vld [vmem:[%s193 + $0x28] sm:$0xff]
        %v246 = vld [vmem:[%s193 + $0x30] sm:$0xff]
        %v247 = vld [vmem:[%s193 + $0x38] sm:$0xff]
        %v248 = vld [vmem:[%s193 + $0x40] sm:$0xff]
        %v249 = vld [vmem:[%s193 + $0x48] sm:$0xff]
        %v250 = vld [vmem:[%s193 + $0x50] sm:$0xff]
        %v251 = vld [vmem:[%s193 + $0x58] sm:$0xff]
        %v252 = vld [vmem:[%s193 + $0x60] sm:$0xff]
        %v253 = vld [vmem:[%s193 + $0x68] sm:$0xff]
        %v254 = vld [vmem:[%s193 + $0x70] sm:$0xff]
        %v255 = vld [vmem:[%s193 + $0x78] sm:$0xff]
        %v256 = vld [vmem:[%s202] sm:$0xff]
        %vm257 = vcmask 64512
        %v259 = vsel %vm257, %v240, 0
        %v262 = vsel %vm257, %v241, 0
        %v265 = vsel %vm257, %v242, 0
        %v268 = vsel %vm257, %v243, 0
        %v271 = vsel %vm257, %v244, 0
        %v274 = vsel %vm257, %v245, 0
        %v277 = vsel %vm257, %v246, 0
        %v280 = vsel %vm257, %v247, 0
        %v283 = vsel %vm257, %v248, 0
        %v286 = vsel %vm257, %v249, 0
        %v289 = vsel %vm257, %v250, 0
        %v292 = vsel %vm257, %v251, 0
        %v295 = vsel %vm257, %v252, 0
        %v298 = vsel %vm257, %v253, 0
        %v301 = vsel %vm257, %v254, 0
        %v304 = vsel %vm257, %v255, 0
        %306 = vmatprep.subr.mxu0 0.0
        %307 = vmatpush1.msra.mxu0 %v256
        %308 = vmatprep.subr.mxu0 0.0
        %309 = vmatpush1.msra.mxu0 0.0
        %310 = vmatprep.subr.mxu0 0.0
        %311 = vmatpush1.msra.mxu0 0.0
        %312 = vmatprep.subr.mxu0 0.0
        %313 = vmatpush1.msra.mxu0 0.0
        %314 = vmatprep.subr.mxu0 0.0
        %315 = vmatpush1.msra.mxu0 0.0
        %316 = vmatprep.subr.mxu0 0.0
        %317 = vmatpush1.msra.mxu0 0.0
        %318 = vmatprep.subr.mxu0 0.0
        %319 = vmatpush1.msra.mxu0 0.0
        %320 = vmatprep.subr.mxu0 0.0
        %321 = vmatpush1.msra.mxu0 0.0
        %322 = vmatprep.subr.mxu0 0.0
        %323 = vmatpush1.msra.mxu0 0.0
        %324 = vmatprep.subr.mxu0 0.0
        %325 = vmatpush1.msra.mxu0 0.0
        %326 = vmatprep.subr.mxu0 0.0
        %327 = vmatpush1.msra.mxu0 0.0
        %328 = vmatprep.subr.mxu0 0.0
        %329 = vmatpush1.msra.mxu0 0.0
        %330 = vmatprep.subr.mxu0 0.0
        %331 = vmatpush1.msra.mxu0 0.0
        %332 = vmatprep.subr.mxu0 0.0
        %333 = vmatpush1.msra.mxu0 0.0
        %334 = vmatprep.subr.mxu0 0.0
        %335 = vmatpush1.msra.mxu0 0.0
        %336 = vmatprep.subr.mxu0 0.0
        %337 = vmatpush1.msra.mxu0 0.0
        %338 = vmatprep.subr.mxu0 0.0
        %339 = vmatpush1.msra.mxu0 0.0
        %340 = vmatprep.subr.mxu0 0.0
        %341 = vmatpush1.msra.mxu0 0.0
        %342 = vmatprep.subr.mxu0 0.0
        %343 = vmatpush1.msra.mxu0 0.0
        %344 = vmatprep.subr.mxu0 0.0
        %345 = vmatpush1.msra.mxu0 0.0
        %346 = vmatprep.subr.mxu0 0.0
        %347 = vmatpush1.msra.mxu0 0.0
        %348 = vmatprep.subr.mxu0 0.0
        %349 = vmatpush1.msra.mxu0 0.0
        %350 = vmatprep.subr.mxu0 0.0
        %351 = vmatpush1.msra.mxu0 0.0
        %352 = vmatprep.subr.mxu0 0.0
        %353 = vmatpush1.msra.mxu0 0.0
        %354 = vmatprep.subr.mxu0 0.0
        %355 = vmatpush1.msra.mxu0 0.0
        %356 = vmatprep.subr.mxu0 0.0
        %357 = vmatpush1.msra.mxu0 0.0
        %358 = vmatprep.subr.mxu0 0.0
        %359 = vmatpush1.msra.mxu0 0.0
        %360 = vmatprep.subr.mxu0 0.0
        %361 = vmatpush1.msra.mxu0 0.0
        %362 = vmatprep.subr.mxu0 0.0
        %363 = vmatpush1.msra.mxu0 0.0
        %364 = vmatprep.subr.mxu0 0.0
        %365 = vmatpush1.msra.mxu0 0.0
        %366 = vmatprep.subr.mxu0 0.0
        %367 = vmatpush1.msra.mxu0 0.0
        %368 = vmatprep.subr.mxu0 0.0
        %369 = vmatpush1.msra.mxu0 0.0
        %370 = vmatprep.mubr.f32.mxu0 0.0
        %371 = vmatmul.mubr.f32.gmra.mrb[0].mxu0 %v259
        %v372 = vpop.f32.mrb[0].mxu0
        %v373 = vadd.f32 0.0, %v372
        %v374 = vpop.f32.mrb[0].mxu0
        %375 = vmatprep.mubr.f32.mxu0 0.0
        %376 = vmatmul.mubr.f32.gmra.mrb[0].mxu0 %v262
        %v377 = vpop.f32.mrb[0].mxu0
        %v378 = vadd.f32 0.0, %v377
        %v379 = vpop.f32.mrb[0].mxu0
        %380 = vmatprep.mubr.f32.mxu0 0.0
        %381 = vmatmul.mubr.f32.gmra.mrb[0].mxu0 %v265
        %v382 = vpop.f32.mrb[0].mxu0
        %v383 = vadd.f32 0.0, %v382
        %v384 = vpop.f32.mrb[0].mxu0
        %385 = vmatprep.mubr.f32.mxu0 0.0
        %386 = vmatmul.mubr.f32.gmra.mrb[0].mxu0 %v268
        %v387 = vpop.f32.mrb[0].mxu0
        %v388 = vadd.f32 0.0, %v387
        %v389 = vpop.f32.mrb[0].mxu0
        %390 = vmatprep.mubr.f32.mxu0 0.0
        %391 = vmatmul.mubr.f32.gmra.mrb[0].mxu0 %v271
        %v392 = vpop.f32.mrb[0].mxu0
        %v393 = vadd.f32 0.0, %v392
        %v394 = vpop.f32.mrb[0].mxu0
        %395 = vmatprep.mubr.f32.mxu0 0.0
        %396 = vmatmul.mubr.f32.gmra.mrb[0].mxu0 %v274
        %v397 = vpop.f32.mrb[0].mxu0
        %v398 = vadd.f32 0.0, %v397
        %v399 = vpop.f32.mrb[0].mxu0
        %400 = vmatprep.mubr.f32.mxu0 0.0
        %401 = vmatmul.mubr.f32.gmra.mrb[0].mxu0 %v277
        %v402 = vpop.f32.mrb[0].mxu0
        %v403 = vadd.f32 0.0, %v402
        %v404 = vpop.f32.mrb[0].mxu0
        %405 = vmatprep.mubr.f32.mxu0 0.0
        %406 = vmatmul.mubr.f32.gmra.mrb[0].mxu0 %v280
        %v407 = vpop.f32.mrb[0].mxu0
        %v408 = vadd.f32 0.0, %v407
        %v409 = vpop.f32.mrb[0].mxu0
        %410 = vmatprep.mubr.f32.mxu0 0.0
        %411 = vmatmul.mubr.f32.gmra.mrb[0].mxu0 %v283
        %v412 = vpop.f32.mrb[0].mxu0
        %v413 = vadd.f32 0.0, %v412
        %v414 = vpop.f32.mrb[0].mxu0
        %415 = vmatprep.mubr.f32.mxu0 0.0
        %416 = vmatmul.mubr.f32.gmra.mrb[0].mxu0 %v286
        %v417 = vpop.f32.mrb[0].mxu0
        %v418 = vadd.f32 0.0, %v417
        %v419 = vpop.f32.mrb[0].mxu0
        %420 = vmatprep.mubr.f32.mxu0 0.0
        %421 = vmatmul.mubr.f32.gmra.mrb[0].mxu0 %v289
        %v422 = vpop.f32.mrb[0].mxu0
        %v423 = vadd.f32 0.0, %v422
        %v424 = vpop.f32.mrb[0].mxu0
        %425 = vmatprep.mubr.f32.mxu0 0.0
        %426 = vmatmul.mubr.f32.gmra.mrb[0].mxu0 %v292
        %v427 = vpop.f32.mrb[0].mxu0
        %v428 = vadd.f32 0.0, %v427
        %v429 = vpop.f32.mrb[0].mxu0
        %430 = vmatprep.mubr.f32.mxu0 0.0
        %431 = vmatmul.mubr.f32.gmra.mrb[0].mxu0 %v295
        %v432 = vpop.f32.mrb[0].mxu0
        %v433 = vadd.f32 0.0, %v432
        %v434 = vpop.f32.mrb[0].mxu0
        %435 = vmatprep.mubr.f32.mxu0 0.0
        %436 = vmatmul.mubr.f32.gmra.mrb[0].mxu0 %v298
        %v437 = vpop.f32.mrb[0].mxu0
        %v438 = vadd.f32 0.0, %v437
        %v439 = vpop.f32.mrb[0].mxu0
        %440 = vmatprep.mubr.f32.mxu0 0.0
        %441 = vmatmul.mubr.f32.gmra.mrb[0].mxu0 %v301
        %v442 = vpop.f32.mrb[0].mxu0
        %v443 = vadd.f32 0.0, %v442
        %v444 = vpop.f32.mrb[0].mxu0
        %445 = vmatprep.mubr.f32.mxu0 0.0
        %446 = vmatmul.mubr.f32.gmra.mrb[0].mxu0 %v304
        %v447 = vpop.f32.mrb[0].mxu0
        %v448 = vadd.f32 0.0, %v447
        %v449 = vpop.f32.mrb[0].mxu0
        %450 = vdwg.mxu0
        %v451 = vadd.f32 %v224, %v373
        %v452 = vadd.f32 %v225, %v378
        %v453 = vadd.f32 %v226, %v383
        %v454 = vadd.f32 %v227, %v388
        %v455 = vadd.f32 %v228, %v393
        %v456 = vadd.f32 %v229, %v398
        %v457 = vadd.f32 %v230, %v403
        %v458 = vadd.f32 %v231, %v408
        %v459 = vadd.f32 %v232, %v413
        %v460 = vadd.f32 %v233, %v418
        %v461 = vadd.f32 %v234, %v423
        %v462 = vadd.f32 %v235, %v428
        %v463 = vadd.f32 %v236, %v433
        %v464 = vadd.f32 %v237, %v438
        %v465 = vadd.f32 %v238, %v443
        %v466 = vadd.f32 %v239, %v448
        %467 = vst [vmem:[#allocation2] sm:$0xff] %v451
        %468 = vst [vmem:[#allocation2 + $0x8] sm:$0xff] %v452
        %469 = vst [vmem:[#allocation2 + $0x10] sm:$0xff] %v453
        %470 = vst [vmem:[#allocation2 + $0x18] sm:$0xff] %v454
        %471 = vst [vmem:[#allocation2 + $0x20] sm:$0xff] %v455
        %472 = vst [vmem:[#allocation2 + $0x28] sm:$0xff] %v456
        %473 = vst [vmem:[#allocation2 + $0x30] sm:$0xff] %v457
        %474 = vst [vmem:[#allocation2 + $0x38] sm:$0xff] %v458
        %475 = vst [vmem:[#allocation2 + $0x40] sm:$0xff] %v459
        %476 = vst [vmem:[#allocation2 + $0x48] sm:$0xff] %v460
        %477 = vst [vmem:[#allocation2 + $0x50] sm:$0xff] %v461
        %478 = vst [vmem:[#allocation2 + $0x58] sm:$0xff] %v462
        %479 = vst [vmem:[#allocation2 + $0x60] sm:$0xff] %v463
        %480 = vst [vmem:[#allocation2 + $0x68] sm:$0xff] %v464
        %481 = vst [vmem:[#allocation2 + $0x70] sm:$0xff] %v465
        %482 = vst [vmem:[#allocation2 + $0x78] sm:$0xff] %v466
        // Predicated region
        $region33: #{multi_gcn_forward.4} parent=27 // pred_check
          %p483 = pneg %p204
        $region34: #{multi_gcn_forward.4} parent=27 // pred_check_branch
          %485 = sbr.rel (%p483) target = $region36
        $region35: #{multi_gcn_forward.4} parent=27 // pred_region
          %v486 = vld [vmem:[#allocation2] sm:$0xff]
          %v487 = vld [vmem:[#allocation2 + $0x8] sm:$0xff]
          %v488 = vld [vmem:[#allocation2 + $0x10] sm:$0xff]
          %v489 = vld [vmem:[#allocation2 + $0x18] sm:$0xff]
          %v490 = vld [vmem:[#allocation2 + $0x20] sm:$0xff]
          %v491 = vld [vmem:[#allocation2 + $0x28] sm:$0xff]
          %v492 = vld [vmem:[#allocation2 + $0x30] sm:$0xff]
          %v493 = vld [vmem:[#allocation2 + $0x38] sm:$0xff]
          %v494 = vld [vmem:[#allocation2 + $0x40] sm:$0xff]
          %v495 = vld [vmem:[#allocation2 + $0x48] sm:$0xff]
          %v496 = vld [vmem:[#allocation2 + $0x50] sm:$0xff]
          %v497 = vld [vmem:[#allocation2 + $0x58] sm:$0xff]
          %v498 = vld [vmem:[#allocation2 + $0x60] sm:$0xff]
          %v499 = vld [vmem:[#allocation2 + $0x68] sm:$0xff]
          %v500 = vld [vmem:[#allocation2 + $0x70] sm:$0xff]
          %v501 = vld [vmem:[#allocation2 + $0x78] sm:$0xff]
          %502 = vst [vmem:[%s185] sm:$0xff] %v486
          %503 = vst [vmem:[%s185 + $0x8] sm:$0xff] %v487
          %504 = vst [vmem:[%s185 + $0x10] sm:$0xff] %v488
          %505 = vst [vmem:[%s185 + $0x18] sm:$0xff] %v489
          %506 = vst [vmem:[%s185 + $0x20] sm:$0xff] %v490
          %507 = vst [vmem:[%s185 + $0x28] sm:$0xff] %v491
          %508 = vst [vmem:[%s185 + $0x30] sm:$0xff] %v492
          %509 = vst [vmem:[%s185 + $0x38] sm:$0xff] %v493
          %510 = vst [vmem:[%s185 + $0x40] sm:$0xff] %v494
          %511 = vst [vmem:[%s185 + $0x48] sm:$0xff] %v495
          %512 = vst [vmem:[%s185 + $0x50] sm:$0xff] %v496
          %513 = vst [vmem:[%s185 + $0x58] sm:$0xff] %v497
          %514 = vst [vmem:[%s185 + $0x60] sm:$0xff] %v498
          %515 = vst [vmem:[%s185 + $0x68] sm:$0xff] %v499
          %516 = vst [vmem:[%s185 + $0x70] sm:$0xff] %v500
          %517 = vst [vmem:[%s185 + $0x78] sm:$0xff] %v501
        $region36: #{multi_gcn_forward.4} parent=27 // pred_fallthru
          _
        %s518 = sand.u32 %s98, 1
        %s519 = sand.u32 %s98, 1
        %s520 = smul.addr %s519, 128
        %s521 = scalar_lea.vmem [#allocation3], %s520
        // Predicated region
        $region37: #{multi_gcn_forward.4} parent=27 // pred_check
          %p522 = pneg %p108
        $region38: #{multi_gcn_forward.4} parent=27 // pred_check_branch
          %524 = sbr.rel (%p522) target = $region40
        $region39: #{multi_gcn_forward.4} parent=27 // pred_region
          %s525 = smul.u32 16, %s18
          %s526 = smul.addr %s525, 3
          %s527 = sadd.s32 %s19, %s526
          %s528 = smul.addr %s527, 8
          %s529 = scalar_lea.vmem %s2, %s528
          // Predicated region
          $region41: #{multi_gcn_forward.4} parent=39 // pred_check
            _
          $region42: #{multi_gcn_forward.4} parent=39 // pred_check_branch
            %531 = sbr.rel (0) target = $region44
          $region43: #{multi_gcn_forward.4} parent=39 // pred_region
            // Predicated region
            $region45: #{multi_gcn_forward.4} parent=43 // pred_check
              _
            $region46: #{multi_gcn_forward.4} parent=43 // pred_check_branch
              %533 = sbr.rel (0) target = $region48
            $region47: #{multi_gcn_forward.4} parent=43 // pred_region
              // Predicated region
              $region60: #{multi_gcn_forward.4} parent=47 // pred_check
                _
              $region61: #{multi_gcn_forward.4} parent=47 // pred_check_branch
                %578 = sbr.rel (0) target = $region63
              $region62: #{multi_gcn_forward.4} parent=47 // pred_region
                loop: start=0, step=1, limit=1
                $region64: #{multi_gcn_forward.4} parent=62 // loop_pre_header
                  _
                $region65: #{multi_gcn_forward.4} parent=62 // loop_header
                  %s580 = sphi 0, %s584
                  %p581 = scmp.ge.s32.totalorder %s580, 1
                  %s585 = sphi %s521, %s521
                  %s586 = sphi %s529, %s529
                $region66: #{multi_gcn_forward.4} parent=62 // loop_header_branch
                  %583 = sbr.rel (%p581) target = $region70
                $region67: #{multi_gcn_forward.4} parent=62 // loop_body
                  %v587 = vld [vmem:[%s585] sm:$0xff]
                  %588 = vst [vmem:[%s586] sm:$0xff] %v587
                  %v589 = vld [vmem:[%s585 + $0x8] sm:$0xff]
                  %590 = vst [vmem:[%s586 + $0x18] sm:$0xff] %v589
                  %v591 = vld [vmem:[%s585 + $0x10] sm:$0xff]
                  %592 = vst [vmem:[%s586 + $0x30] sm:$0xff] %v591
                  %v593 = vld [vmem:[%s585 + $0x18] sm:$0xff]
                  %594 = vst [vmem:[%s586 + $0x48] sm:$0xff] %v593
                  %v595 = vld [vmem:[%s585 + $0x20] sm:$0xff]
                  %596 = vst [vmem:[%s586 + $0x60] sm:$0xff] %v595
                  %v597 = vld [vmem:[%s585 + $0x28] sm:$0xff]
                  %598 = vst [vmem:[%s586 + $0x78] sm:$0xff] %v597
                  %v599 = vld [vmem:[%s585 + $0x30] sm:$0xff]
                  %600 = vst [vmem:[%s586 + $0x90] sm:$0xff] %v599
                  %v601 = vld [vmem:[%s585 + $0x38] sm:$0xff]
                  %602 = vst [vmem:[%s586 + $0xa8] sm:$0xff] %v601
                  %v603 = vld [vmem:[%s585 + $0x40] sm:$0xff]
                  %604 = vst [vmem:[%s586 + $0xc0] sm:$0xff] %v603
                  %v605 = vld [vmem:[%s585 + $0x48] sm:$0xff]
                  %606 = vst [vmem:[%s586 + $0xd8] sm:$0xff] %v605
                  %v607 = vld [vmem:[%s585 + $0x50] sm:$0xff]
                  %608 = vst [vmem:[%s586 + $0xf0] sm:$0xff] %v607
                  %v609 = vld [vmem:[%s585 + $0x58] sm:$0xff]
                  %610 = vst [vmem:[%s586 + $0x108] sm:$0xff] %v609
                  %v611 = vld [vmem:[%s585 + $0x60] sm:$0xff]
                  %612 = vst [vmem:[%s586 + $0x120] sm:$0xff] %v611
                  %v613 = vld [vmem:[%s585 + $0x68] sm:$0xff]
                  %614 = vst [vmem:[%s586 + $0x138] sm:$0xff] %v613
                  %v615 = vld [vmem:[%s585 + $0x70] sm:$0xff]
                  %616 = vst [vmem:[%s586 + $0x150] sm:$0xff] %v615
                  %v617 = vld [vmem:[%s585 + $0x78] sm:$0xff]
                  %618 = vst [vmem:[%s586 + $0x168] sm:$0xff] %v617
                $region68: #{multi_gcn_forward.4} parent=62 // loop_footer
                  %s584 = sadd.s32 1, %s580
                $region69: #{multi_gcn_forward.4} parent=62 // loop_footer_branch
                  %579 = sbr.rel target = $region65
                $region70: #{multi_gcn_forward.4} parent=62 // loop_exit
                  _
              $region63: #{multi_gcn_forward.4} parent=47 // pred_fallthru
                _
              // Predicated region
              $region71: #{multi_gcn_forward.4} parent=47 // pred_check
                _
              $region72: #{multi_gcn_forward.4} parent=47 // pred_check_branch
                %620 = sbr.rel target = $region74
              $region73: #{multi_gcn_forward.4} parent=47 // pred_region
                _
              $region74: #{multi_gcn_forward.4} parent=47 // pred_fallthru
                _
            $region48: #{multi_gcn_forward.4} parent=43 // pred_fallthru
              _
            // Predicated region
            $region49: #{multi_gcn_forward.4} parent=43 // pred_check
              _
            $region50: #{multi_gcn_forward.4} parent=43 // pred_check_branch
              %535 = sbr.rel target = $region52
            $region51: #{multi_gcn_forward.4} parent=43 // pred_region
              loop: start=0, step=1, limit=1
              $region53: #{multi_gcn_forward.4} parent=51 // loop_pre_header
                _
              $region54: #{multi_gcn_forward.4} parent=51 // loop_header
                %s538 = sphi 0, %s542
                %p539 = scmp.ge.s32.totalorder %s538, 1
                %s543 = sphi %s521, %s521
                %s544 = sphi %s529, %s529
              $region55: #{multi_gcn_forward.4} parent=51 // loop_header_branch
                %541 = sbr.rel (%p539) target = $region59
              $region56: #{multi_gcn_forward.4} parent=51 // loop_body
                %v545 = vld [vmem:[%s543] sm:$0xff]
                %546 = vst [vmem:[%s544] sm:$0xff] %v545
                %v547 = vld [vmem:[%s543 + $0x8] sm:$0xff]
                %548 = vst [vmem:[%s544 + $0x18] sm:$0xff] %v547
                %v549 = vld [vmem:[%s543 + $0x10] sm:$0xff]
                %550 = vst [vmem:[%s544 + $0x30] sm:$0xff] %v549
                %v551 = vld [vmem:[%s543 + $0x18] sm:$0xff]
                %552 = vst [vmem:[%s544 + $0x48] sm:$0xff] %v551
                %v553 = vld [vmem:[%s543 + $0x20] sm:$0xff]
                %554 = vst [vmem:[%s544 + $0x60] sm:$0xff] %v553
                %v555 = vld [vmem:[%s543 + $0x28] sm:$0xff]
                %556 = vst [vmem:[%s544 + $0x78] sm:$0xff] %v555
                %v557 = vld [vmem:[%s543 + $0x30] sm:$0xff]
                %558 = vst [vmem:[%s544 + $0x90] sm:$0xff] %v557
                %v559 = vld [vmem:[%s543 + $0x38] sm:$0xff]
                %560 = vst [vmem:[%s544 + $0xa8] sm:$0xff] %v559
                %v561 = vld [vmem:[%s543 + $0x40] sm:$0xff]
                %562 = vst [vmem:[%s544 + $0xc0] sm:$0xff] %v561
                %v563 = vld [vmem:[%s543 + $0x48] sm:$0xff]
                %564 = vst [vmem:[%s544 + $0xd8] sm:$0xff] %v563
                %v565 = vld [vmem:[%s543 + $0x50] sm:$0xff]
                %566 = vst [vmem:[%s544 + $0xf0] sm:$0xff] %v565
                %v567 = vld [vmem:[%s543 + $0x58] sm:$0xff]
                %568 = vst [vmem:[%s544 + $0x108] sm:$0xff] %v567
                %v569 = vld [vmem:[%s543 + $0x60] sm:$0xff]
                %570 = vst [vmem:[%s544 + $0x120] sm:$0xff] %v569
                %v571 = vld [vmem:[%s543 + $0x68] sm:$0xff]
                %572 = vst [vmem:[%s544 + $0x138] sm:$0xff] %v571
                %v573 = vld [vmem:[%s543 + $0x70] sm:$0xff]
                %574 = vst [vmem:[%s544 + $0x150] sm:$0xff] %v573
                %v575 = vld [vmem:[%s543 + $0x78] sm:$0xff]
                %576 = vst [vmem:[%s544 + $0x168] sm:$0xff] %v575
              $region57: #{multi_gcn_forward.4} parent=51 // loop_footer
                %s542 = sadd.s32 1, %s538
              $region58: #{multi_gcn_forward.4} parent=51 // loop_footer_branch
                %537 = sbr.rel target = $region54
              $region59: #{multi_gcn_forward.4} parent=51 // loop_exit
                _
            $region52: #{multi_gcn_forward.4} parent=43 // pred_fallthru
              _
          $region44: #{multi_gcn_forward.4} parent=39 // pred_fallthru
            _
          %621 = vnop
        $region40: #{multi_gcn_forward.4} parent=27 // pred_fallthru
          _
      $region28: #{multi_gcn_forward.4} parent=5 // pred_fallthru
        _
      %p622 = scmp.le.s32.totalorder 2, %s8
      // Predicated region
      $region75: #{multi_gcn_forward.4} parent=5 // pred_check
        %p623 = pneg %p622
      $region76: #{multi_gcn_forward.4} parent=5 // pred_check_branch
        %625 = sbr.rel (%p623) target = $region78
      $region77: #{multi_gcn_forward.4} parent=5 // pred_region
        %s626 = ssub.s32 %s8, 2
        // Predicated region
        $region79: #{multi_gcn_forward.4} parent=77 // pred_check
          %p627 = pneg %p114
        $region80: #{multi_gcn_forward.4} parent=77 // pred_check_branch
          %629 = sbr.rel (%p627) target = $region82
        $region81: #{multi_gcn_forward.4} parent=77 // pred_region
          %s630 = sand.u32 %s99, 1
          %s631 = sand.u32 %s99, 1
          %s632 = smul.addr %s631, 128
          %s633 = scalar_lea.vmem [#allocation3], %s632
        $region82: #{multi_gcn_forward.4} parent=77 // pred_fallthru
          _
      $region78: #{multi_gcn_forward.4} parent=5 // pred_fallthru
        _
    $region6: #{multi_gcn_forward.4} parent=1 // loop_footer
      %s12 = sadd.s32 1, %s8
    $region7: #{multi_gcn_forward.4} parent=1 // loop_footer_branch
      %7 = sbr.rel target = $region3
    $region8: #{multi_gcn_forward.4} parent=1 // loop_exit
      _

// kernel: multi_gcn_forward.6
$region0: #{multi_gcn_forward.6}
  #allocation0 [shape = 'u32[]', space=smem, size = 0x4, offset = 0x4, fixed_abs, tag = 'smem constant byte address 0x4 - core index']
  #allocation1 [shape = 'u32[144,128]{1,0:T(1,128)}', space=vmem, size = 0x12000, scoped, tag = 'internal scratch']
  #allocation2 [shape = 'f32[128,128]{1,0:T(8,128)}', space=vmem, size = 0x10000, scoped, tag = 'scratch operand']
  %s0 = inlined_call_operand.vmem [shape: f32[128,384], index: 0, kind: input, shape index: {}]
  %s1 = inlined_call_operand.vmem [shape: f32[384,384], index: 1, kind: input, shape index: {}]
  %s2 = inlined_call_operand.vmem [shape: f32[128,384], index: 2, kind: output, shape index: {}]
  %s3 = sld [smem:[#allocation0]]
  $region159: #{multi_gcn_forward.6} parent=0
    _
  %s5 = ssub.s32 1, %s3
  %s6 = scalar_select 0, %s5, %s3
  $region1: #{multi_gcn_forward.6} parent=0
    #allocation3 [shape = 'u8[131072]{0}', space=vmem, size = 0x20000, scoped, tag = 'input window, operand 0']
    #allocation4 [shape = 'u8[131072]{0}', space=vmem, size = 0x20000, scoped, tag = 'input window, operand 1']
    #allocation5 [shape = 'u8[131072]{0}', space=vmem, size = 0x20000, scoped, tag = 'output window, operand 0']
    loop: start=0, step=1, limit=11
    $region2: #{multi_gcn_forward.6} parent=1 // loop_pre_header
      _
    $region3: #{multi_gcn_forward.6} parent=1 // loop_header
      %s8 = sphi 0, %s12
      %p9 = scmp.ge.s32.totalorder %s8, 11
      %s15 = sphi 0, %s34
      %s16 = sphi 0, %s30
      %s17 = sphi 0, %s26
      %s18 = sphi 0, %s15
      %s19 = sphi 0, %s16
      %s20 = sphi 0, %s17
      %s21 = sphi 0, %s18
      %s22 = sphi 0, %s19
      %s23 = sphi 0, %s20
      %s39 = sphi 0, %s41
      %s42 = sphi 0, %s39
      %s43 = sphi 0, %s42
      %s59 = sphi 0, %s43
      %s67 = sphi 0, %s69
      %s70 = sphi 0, %s67
      %s71 = sphi 0, %s70
      %s87 = sphi 0, %s71
      %s95 = sphi 0, %s97
      %s98 = sphi 0, %s95
      %s99 = sphi 0, %s98
      %s115 = sphi 0, %s99
    $region4: #{multi_gcn_forward.6} parent=1 // loop_header_branch
      %11 = sbr.rel (%p9) target = $region8
    $region5: #{multi_gcn_forward.6} parent=1 // loop_body
      %s13 = ssub.s32 %s8, 1
      %s14 = ssub.s32 %s8, 2
      %s24 = sadd.s32 1, %s17
      %p25 = scmp.ge.s32.totalorder %s24, 3
      %s26 = scalar_select %p25, 0, %s24
      %s27 = sadd.s32 1, %s16
      %s28 = scalar_select %p25, %s27, %s16
      %p29 = scmp.ge.s32.totalorder %s28, 3
      %s30 = scalar_select %p29, 0, %s28
      %s31 = sadd.s32 1, %s15
      %s32 = scalar_select %p29, %s31, %s15
      %p33 = scmp.ge.s32.totalorder %s32, 1
      %s34 = scalar_select %p33, 0, %s32
      %s35 = ssub.s32 %s15, %s34
      %s36 = ssub.s32 %s17, %s26
      %s37 = sor.u32 %s35, %s36
      %p38 = scmp.eq.s32.totalorder %s37, 0
      %s40 = sadd.s32 %s39, 1
      %s41 = scalar_select %p38, %s39, %s40
      %p44 = pneg %p38
      %p45 = scmp.eq.s32.totalorder %s8, 8
      %p46 = por %p44, %p45
      %p47 = scmp.ne.s32.totalorder %s39, %s42
      %p48 = scmp.eq.s32.totalorder %s8, 0
      %p49 = por %p47, %p48
      %p50 = scmp.ne.s32.totalorder %s39, %s42
      %p51 = scmp.eq.s32.totalorder %s13, 8
      %p52 = por %p50, %p51
      %p53 = scmp.ne.s32.totalorder %s42, %s43
      %p54 = scmp.eq.s32.totalorder %s13, 0
      %p55 = por %p53, %p54
      %p56 = scmp.ne.s32.totalorder %s42, %s43
      %p57 = scmp.eq.s32.totalorder %s14, 8
      %p58 = por %p56, %p57
      %p60 = scmp.ne.s32.totalorder %s43, %s59
      %p61 = scmp.eq.s32.totalorder %s14, 0
      %p62 = por %p60, %p61
      %s63 = ssub.s32 %s17, %s26
      %s64 = ssub.s32 %s16, %s30
      %s65 = sor.u32 %s63, %s64
      %p66 = scmp.eq.s32.totalorder %s65, 0
      %s68 = sadd.s32 %s67, 1
      %s69 = scalar_select %p66, %s67, %s68
      %p72 = pneg %p66
      %p73 = scmp.eq.s32.totalorder %s8, 8
      %p74 = por %p72, %p73
      %p75 = scmp.ne.s32.totalorder %s67, %s70
      %p76 = scmp.eq.s32.totalorder %s8, 0
      %p77 = por %p75, %p76
      %p78 = scmp.ne.s32.totalorder %s67, %s70
      %p79 = scmp.eq.s32.totalorder %s13, 8
      %p80 = por %p78, %p79
      %p81 = scmp.ne.s32.totalorder %s70, %s71
      %p82 = scmp.eq.s32.totalorder %s13, 0
      %p83 = por %p81, %p82
      %p84 = scmp.ne.s32.totalorder %s70, %s71
      %p85 = scmp.eq.s32.totalorder %s14, 8
      %p86 = por %p84, %p85
      %p88 = scmp.ne.s32.totalorder %s71, %s87
      %p89 = scmp.eq.s32.totalorder %s14, 0
      %p90 = por %p88, %p89
      %s91 = ssub.s32 %s15, %s34
      %s92 = ssub.s32 %s16, %s30
      %s93 = sor.u32 %s91, %s92
      %p94 = scmp.eq.s32.totalorder %s93, 0
      %s96 = sadd.s32 %s95, 1
      %s97 = scalar_select %p94, %s95, %s96
      %p100 = pneg %p94
      %p101 = scmp.eq.s32.totalorder %s8, 8
      %p102 = por %p100, %p101
      %p103 = scmp.ne.s32.totalorder %s95, %s98
      %p104 = scmp.eq.s32.totalorder %s8, 0
      %p105 = por %p103, %p104
      %p106 = scmp.ne.s32.totalorder %s95, %s98
      %p107 = scmp.eq.s32.totalorder %s13, 8
      %p108 = por %p106, %p107
      %p109 = scmp.ne.s32.totalorder %s98, %s99
      %p110 = scmp.eq.s32.totalorder %s13, 0
      %p111 = por %p109, %p110
      %p112 = scmp.ne.s32.totalorder %s98, %s99
      %p113 = scmp.eq.s32.totalorder %s14, 8
      %p114 = por %p112, %p113
      %p116 = scmp.ne.s32.totalorder %s99, %s115
      %p117 = scmp.eq.s32.totalorder %s14, 0
      %p118 = por %p116, %p117
      %p119 = scmp.le.s32.totalorder 1, %s8
      %p120 = scmp.lt.s32.totalorder %s8, 10
      %p121 = pnand %p119, %p120
      %p122 = pneg %p121
      // Predicated region
      $region9: #{multi_gcn_forward.6} parent=5 // pred_check
        _
      $region10: #{multi_gcn_forward.6} parent=5 // pred_check_branch
        %124 = sbr.rel (%p121) target = $region12
      $region11: #{multi_gcn_forward.6} parent=5 // pred_region
        %s125 = ssub.s32 %s8, 1
      $region12: #{multi_gcn_forward.6} parent=5 // pred_fallthru
        _
      %p126 = scmp.lt.s32.totalorder %s8, 9
      // Predicated region
      $region13: #{multi_gcn_forward.6} parent=5 // pred_check
        %p127 = pneg %p126
      $region14: #{multi_gcn_forward.6} parent=5 // pred_check_branch
        %129 = sbr.rel (%p127) target = $region16
      $region15: #{multi_gcn_forward.6} parent=5 // pred_region
        // Predicated region
        $region17: #{multi_gcn_forward.6} parent=15 // pred_check
          %p130 = pneg %p49
        $region18: #{multi_gcn_forward.6} parent=15 // pred_check_branch
          %132 = sbr.rel (%p130) target = $region20
        $region19: #{multi_gcn_forward.6} parent=15 // pred_region
          %s133 = sand.u32 %s39, 1
          %s134 = sand.u32 %s39, 1
          %s135 = smul.addr %s134, 128
          %s136 = scalar_lea.vmem [#allocation3], %s135
          %s137 = smul.u32 16, %s15
          %s138 = smul.addr %s137, 3
          %s139 = sadd.s32 %s17, %s138
          %s140 = smul.addr %s139, 8
          %s141 = scalar_lea.vmem %s0, %s140
          // Predicated region
          $region21: #{multi_gcn_forward.6} parent=19 // pred_check
            _
          $region22: #{multi_gcn_forward.6} parent=19 // pred_check_branch
            %143 = sbr.rel (0) target = $region24
          $region23: #{multi_gcn_forward.6} parent=19 // pred_region
            // Predicated region
            $region25: #{multi_gcn_forward.6} parent=23 // pred_check
              _
            $region26: #{multi_gcn_forward.6} parent=23 // pred_check_branch
              %145 = sbr.rel (0) target = $region28
            $region27: #{multi_gcn_forward.6} parent=23 // pred_region
              // Predicated region
              $region40: #{multi_gcn_forward.6} parent=27 // pred_check
                _
              $region41: #{multi_gcn_forward.6} parent=27 // pred_check_branch
                %190 = sbr.rel (0) target = $region43
              $region42: #{multi_gcn_forward.6} parent=27 // pred_region
                loop: start=0, step=1, limit=1
                $region44: #{multi_gcn_forward.6} parent=42 // loop_pre_header
                  _
                $region45: #{multi_gcn_forward.6} parent=42 // loop_header
                  %s192 = sphi 0, %s196
                  %p193 = scmp.ge.s32.totalorder %s192, 1
                  %s197 = sphi %s141, %s141
                  %s198 = sphi %s136, %s136
                $region46: #{multi_gcn_forward.6} parent=42 // loop_header_branch
                  %195 = sbr.rel (%p193) target = $region50
                $region47: #{multi_gcn_forward.6} parent=42 // loop_body
                  %v199 = vld [vmem:[%s197] sm:$0xff]
                  %200 = vst [vmem:[%s198] sm:$0xff] %v199
                  %v201 = vld [vmem:[%s197 + $0x18] sm:$0xff]
                  %202 = vst [vmem:[%s198 + $0x8] sm:$0xff] %v201
                  %v203 = vld [vmem:[%s197 + $0x30] sm:$0xff]
                  %204 = vst [vmem:[%s198 + $0x10] sm:$0xff] %v203
                  %v205 = vld [vmem:[%s197 + $0x48] sm:$0xff]
                  %206 = vst [vmem:[%s198 + $0x18] sm:$0xff] %v205
                  %v207 = vld [vmem:[%s197 + $0x60] sm:$0xff]
                  %208 = vst [vmem:[%s198 + $0x20] sm:$0xff] %v207
                  %v209 = vld [vmem:[%s197 + $0x78] sm:$0xff]
                  %210 = vst [vmem:[%s198 + $0x28] sm:$0xff] %v209
                  %v211 = vld [vmem:[%s197 + $0x90] sm:$0xff]
                  %212 = vst [vmem:[%s198 + $0x30] sm:$0xff] %v211
                  %v213 = vld [vmem:[%s197 + $0xa8] sm:$0xff]
                  %214 = vst [vmem:[%s198 + $0x38] sm:$0xff] %v213
                  %v215 = vld [vmem:[%s197 + $0xc0] sm:$0xff]
                  %216 = vst [vmem:[%s198 + $0x40] sm:$0xff] %v215
                  %v217 = vld [vmem:[%s197 + $0xd8] sm:$0xff]
                  %218 = vst [vmem:[%s198 + $0x48] sm:$0xff] %v217
                  %v219 = vld [vmem:[%s197 + $0xf0] sm:$0xff]
                  %220 = vst [vmem:[%s198 + $0x50] sm:$0xff] %v219
                  %v221 = vld [vmem:[%s197 + $0x108] sm:$0xff]
                  %222 = vst [vmem:[%s198 + $0x58] sm:$0xff] %v221
                  %v223 = vld [vmem:[%s197 + $0x120] sm:$0xff]
                  %224 = vst [vmem:[%s198 + $0x60] sm:$0xff] %v223
                  %v225 = vld [vmem:[%s197 + $0x138] sm:$0xff]
                  %226 = vst [vmem:[%s198 + $0x68] sm:$0xff] %v225
                  %v227 = vld [vmem:[%s197 + $0x150] sm:$0xff]
                  %228 = vst [vmem:[%s198 + $0x70] sm:$0xff] %v227
                  %v229 = vld [vmem:[%s197 + $0x168] sm:$0xff]
                  %230 = vst [vmem:[%s198 + $0x78] sm:$0xff] %v229
                $region48: #{multi_gcn_forward.6} parent=42 // loop_footer
                  %s196 = sadd.s32 1, %s192
                $region49: #{multi_gcn_forward.6} parent=42 // loop_footer_branch
                  %191 = sbr.rel target = $region45
                $region50: #{multi_gcn_forward.6} parent=42 // loop_exit
                  _
              $region43: #{multi_gcn_forward.6} parent=27 // pred_fallthru
                _
              // Predicated region
              $region51: #{multi_gcn_forward.6} parent=27 // pred_check
                _
              $region52: #{multi_gcn_forward.6} parent=27 // pred_check_branch
                %232 = sbr.rel target = $region54
              $region53: #{multi_gcn_forward.6} parent=27 // pred_region
                _
              $region54: #{multi_gcn_forward.6} parent=27 // pred_fallthru
                _
            $region28: #{multi_gcn_forward.6} parent=23 // pred_fallthru
              _
            // Predicated region
            $region29: #{multi_gcn_forward.6} parent=23 // pred_check
              _
            $region30: #{multi_gcn_forward.6} parent=23 // pred_check_branch
              %147 = sbr.rel target = $region32
            $region31: #{multi_gcn_forward.6} parent=23 // pred_region
              loop: start=0, step=1, limit=1
              $region33: #{multi_gcn_forward.6} parent=31 // loop_pre_header
                _
              $region34: #{multi_gcn_forward.6} parent=31 // loop_header
                %s150 = sphi 0, %s154
                %p151 = scmp.ge.s32.totalorder %s150, 1
                %s155 = sphi %s141, %s141
                %s156 = sphi %s136, %s136
              $region35: #{multi_gcn_forward.6} parent=31 // loop_header_branch
                %153 = sbr.rel (%p151) target = $region39
              $region36: #{multi_gcn_forward.6} parent=31 // loop_body
                %v157 = vld [vmem:[%s155] sm:$0xff]
                %158 = vst [vmem:[%s156] sm:$0xff] %v157
                %v159 = vld [vmem:[%s155 + $0x18] sm:$0xff]
                %160 = vst [vmem:[%s156 + $0x8] sm:$0xff] %v159
                %v161 = vld [vmem:[%s155 + $0x30] sm:$0xff]
                %162 = vst [vmem:[%s156 + $0x10] sm:$0xff] %v161
                %v163 = vld [vmem:[%s155 + $0x48] sm:$0xff]
                %164 = vst [vmem:[%s156 + $0x18] sm:$0xff] %v163
                %v165 = vld [vmem:[%s155 + $0x60] sm:$0xff]
                %166 = vst [vmem:[%s156 + $0x20] sm:$0xff] %v165
                %v167 = vld [vmem:[%s155 + $0x78] sm:$0xff]
                %168 = vst [vmem:[%s156 + $0x28] sm:$0xff] %v167
                %v169 = vld [vmem:[%s155 + $0x90] sm:$0xff]
                %170 = vst [vmem:[%s156 + $0x30] sm:$0xff] %v169
                %v171 = vld [vmem:[%s155 + $0xa8] sm:$0xff]
                %172 = vst [vmem:[%s156 + $0x38] sm:$0xff] %v171
                %v173 = vld [vmem:[%s155 + $0xc0] sm:$0xff]
                %174 = vst [vmem:[%s156 + $0x40] sm:$0xff] %v173
                %v175 = vld [vmem:[%s155 + $0xd8] sm:$0xff]
                %176 = vst [vmem:[%s156 + $0x48] sm:$0xff] %v175
                %v177 = vld [vmem:[%s155 + $0xf0] sm:$0xff]
                %178 = vst [vmem:[%s156 + $0x50] sm:$0xff] %v177
                %v179 = vld [vmem:[%s155 + $0x108] sm:$0xff]
                %180 = vst [vmem:[%s156 + $0x58] sm:$0xff] %v179
                %v181 = vld [vmem:[%s155 + $0x120] sm:$0xff]
                %182 = vst [vmem:[%s156 + $0x60] sm:$0xff] %v181
                %v183 = vld [vmem:[%s155 + $0x138] sm:$0xff]
                %184 = vst [vmem:[%s156 + $0x68] sm:$0xff] %v183
                %v185 = vld [vmem:[%s155 + $0x150] sm:$0xff]
                %186 = vst [vmem:[%s156 + $0x70] sm:$0xff] %v185
                %v187 = vld [vmem:[%s155 + $0x168] sm:$0xff]
                %188 = vst [vmem:[%s156 + $0x78] sm:$0xff] %v187
              $region37: #{multi_gcn_forward.6} parent=31 // loop_footer
                %s154 = sadd.s32 1, %s150
              $region38: #{multi_gcn_forward.6} parent=31 // loop_footer_branch
                %149 = sbr.rel target = $region34
              $region39: #{multi_gcn_forward.6} parent=31 // loop_exit
                _
            $region32: #{multi_gcn_forward.6} parent=23 // pred_fallthru
              _
          $region24: #{multi_gcn_forward.6} parent=19 // pred_fallthru
            _
          %233 = vnop
        $region20: #{multi_gcn_forward.6} parent=15 // pred_fallthru
          _
        // Predicated region
        $region55: #{multi_gcn_forward.6} parent=15 // pred_check
          %p234 = pneg %p77
        $region56: #{multi_gcn_forward.6} parent=15 // pred_check_branch
          %236 = sbr.rel (%p234) target = $region58
        $region57: #{multi_gcn_forward.6} parent=15 // pred_region
          %s237 = sand.u32 %s67, 1
          %s238 = sand.u32 %s67, 1
          %s239 = smul.addr %s238, 128
          %s240 = scalar_lea.vmem [#allocation4], %s239
          %s241 = smul.u32 16, %s17
          %s242 = smul.addr %s241, 3
          %s243 = sadd.s32 %s16, %s242
          %s244 = smul.addr %s243, 8
          %s245 = scalar_lea.vmem %s1, %s244
          // Predicated region
          $region59: #{multi_gcn_forward.6} parent=57 // pred_check
            _
          $region60: #{multi_gcn_forward.6} parent=57 // pred_check_branch
            %247 = sbr.rel (0) target = $region62
          $region61: #{multi_gcn_forward.6} parent=57 // pred_region
            // Predicated region
            $region63: #{multi_gcn_forward.6} parent=61 // pred_check
              _
            $region64: #{multi_gcn_forward.6} parent=61 // pred_check_branch
              %249 = sbr.rel (0) target = $region66
            $region65: #{multi_gcn_forward.6} parent=61 // pred_region
              // Predicated region
              $region78: #{multi_gcn_forward.6} parent=65 // pred_check
                _
              $region79: #{multi_gcn_forward.6} parent=65 // pred_check_branch
                %294 = sbr.rel (0) target = $region81
              $region80: #{multi_gcn_forward.6} parent=65 // pred_region
                loop: start=0, step=1, limit=1
                $region82: #{multi_gcn_forward.6} parent=80 // loop_pre_header
                  _
                $region83: #{multi_gcn_forward.6} parent=80 // loop_header
                  %s296 = sphi 0, %s300
                  %p297 = scmp.ge.s32.totalorder %s296, 1
                  %s301 = sphi %s245, %s245
                  %s302 = sphi %s240, %s240
                $region84: #{multi_gcn_forward.6} parent=80 // loop_header_branch
                  %299 = sbr.rel (%p297) target = $region88
                $region85: #{multi_gcn_forward.6} parent=80 // loop_body
                  %v303 = vld [vmem:[%s301] sm:$0xff]
                  %304 = vst [vmem:[%s302] sm:$0xff] %v303
                  %v305 = vld [vmem:[%s301 + $0x18] sm:$0xff]
                  %306 = vst [vmem:[%s302 + $0x8] sm:$0xff] %v305
                  %v307 = vld [vmem:[%s301 + $0x30] sm:$0xff]
                  %308 = vst [vmem:[%s302 + $0x10] sm:$0xff] %v307
                  %v309 = vld [vmem:[%s301 + $0x48] sm:$0xff]
                  %310 = vst [vmem:[%s302 + $0x18] sm:$0xff] %v309
                  %v311 = vld [vmem:[%s301 + $0x60] sm:$0xff]
                  %312 = vst [vmem:[%s302 + $0x20] sm:$0xff] %v311
                  %v313 = vld [vmem:[%s301 + $0x78] sm:$0xff]
                  %314 = vst [vmem:[%s302 + $0x28] sm:$0xff] %v313
                  %v315 = vld [vmem:[%s301 + $0x90] sm:$0xff]
                  %316 = vst [vmem:[%s302 + $0x30] sm:$0xff] %v315
                  %v317 = vld [vmem:[%s301 + $0xa8] sm:$0xff]
                  %318 = vst [vmem:[%s302 + $0x38] sm:$0xff] %v317
                  %v319 = vld [vmem:[%s301 + $0xc0] sm:$0xff]
                  %320 = vst [vmem:[%s302 + $0x40] sm:$0xff] %v319
                  %v321 = vld [vmem:[%s301 + $0xd8] sm:$0xff]
                  %322 = vst [vmem:[%s302 + $0x48] sm:$0xff] %v321
                  %v323 = vld [vmem:[%s301 + $0xf0] sm:$0xff]
                  %324 = vst [vmem:[%s302 + $0x50] sm:$0xff] %v323
                  %v325 = vld [vmem:[%s301 + $0x108] sm:$0xff]
                  %326 = vst [vmem:[%s302 + $0x58] sm:$0xff] %v325
                  %v327 = vld [vmem:[%s301 + $0x120] sm:$0xff]
                  %328 = vst [vmem:[%s302 + $0x60] sm:$0xff] %v327
                  %v329 = vld [vmem:[%s301 + $0x138] sm:$0xff]
                  %330 = vst [vmem:[%s302 + $0x68] sm:$0xff] %v329
                  %v331 = vld [vmem:[%s301 + $0x150] sm:$0xff]
                  %332 = vst [vmem:[%s302 + $0x70] sm:$0xff] %v331
                  %v333 = vld [vmem:[%s301 + $0x168] sm:$0xff]
                  %334 = vst [vmem:[%s302 + $0x78] sm:$0xff] %v333
                $region86: #{multi_gcn_forward.6} parent=80 // loop_footer
                  %s300 = sadd.s32 1, %s296
                $region87: #{multi_gcn_forward.6} parent=80 // loop_footer_branch
                  %295 = sbr.rel target = $region83
                $region88: #{multi_gcn_forward.6} parent=80 // loop_exit
                  _
              $region81: #{multi_gcn_forward.6} parent=65 // pred_fallthru
                _
              // Predicated region
              $region89: #{multi_gcn_forward.6} parent=65 // pred_check
                _
              $region90: #{multi_gcn_forward.6} parent=65 // pred_check_branch
                %336 = sbr.rel target = $region92
              $region91: #{multi_gcn_forward.6} parent=65 // pred_region
                _
              $region92: #{multi_gcn_forward.6} parent=65 // pred_fallthru
                _
            $region66: #{multi_gcn_forward.6} parent=61 // pred_fallthru
              _
            // Predicated region
            $region67: #{multi_gcn_forward.6} parent=61 // pred_check
              _
            $region68: #{multi_gcn_forward.6} parent=61 // pred_check_branch
              %251 = sbr.rel target = $region70
            $region69: #{multi_gcn_forward.6} parent=61 // pred_region
              loop: start=0, step=1, limit=1
              $region71: #{multi_gcn_forward.6} parent=69 // loop_pre_header
                _
              $region72: #{multi_gcn_forward.6} parent=69 // loop_header
                %s254 = sphi 0, %s258
                %p255 = scmp.ge.s32.totalorder %s254, 1
                %s259 = sphi %s245, %s245
                %s260 = sphi %s240, %s240
              $region73: #{multi_gcn_forward.6} parent=69 // loop_header_branch
                %257 = sbr.rel (%p255) target = $region77
              $region74: #{multi_gcn_forward.6} parent=69 // loop_body
                %v261 = vld [vmem:[%s259] sm:$0xff]
                %262 = vst [vmem:[%s260] sm:$0xff] %v261
                %v263 = vld [vmem:[%s259 + $0x18] sm:$0xff]
                %264 = vst [vmem:[%s260 + $0x8] sm:$0xff] %v263
                %v265 = vld [vmem:[%s259 + $0x30] sm:$0xff]
                %266 = vst [vmem:[%s260 + $0x10] sm:$0xff] %v265
                %v267 = vld [vmem:[%s259 + $0x48] sm:$0xff]
                %268 = vst [vmem:[%s260 + $0x18] sm:$0xff] %v267
                %v269 = vld [vmem:[%s259 + $0x60] sm:$0xff]
                %270 = vst [vmem:[%s260 + $0x20] sm:$0xff] %v269
                %v271 = vld [vmem:[%s259 + $0x78] sm:$0xff]
                %272 = vst [vmem:[%s260 + $0x28] sm:$0xff] %v271
                %v273 = vld [vmem:[%s259 + $0x90] sm:$0xff]
                %274 = vst [vmem:[%s260 + $0x30] sm:$0xff] %v273
                %v275 = vld [vmem:[%s259 + $0xa8] sm:$0xff]
                %276 = vst [vmem:[%s260 + $0x38] sm:$0xff] %v275
                %v277 = vld [vmem:[%s259 + $0xc0] sm:$0xff]
                %278 = vst [vmem:[%s260 + $0x40] sm:$0xff] %v277
                %v279 = vld [vmem:[%s259 + $0xd8] sm:$0xff]
                %280 = vst [vmem:[%s260 + $0x48] sm:$0xff] %v279
                %v281 = vld [vmem:[%s259 + $0xf0] sm:$0xff]
                %282 = vst [vmem:[%s260 + $0x50] sm:$0xff] %v281
                %v283 = vld [vmem:[%s259 + $0x108] sm:$0xff]
                %284 = vst [vmem:[%s260 + $0x58] sm:$0xff] %v283
                %v285 = vld [vmem:[%s259 + $0x120] sm:$0xff]
                %286 = vst [vmem:[%s260 + $0x60] sm:$0xff] %v285
                %v287 = vld [vmem:[%s259 + $0x138] sm:$0xff]
                %288 = vst [vmem:[%s260 + $0x68] sm:$0xff] %v287
                %v289 = vld [vmem:[%s259 + $0x150] sm:$0xff]
                %290 = vst [vmem:[%s260 + $0x70] sm:$0xff] %v289
                %v291 = vld [vmem:[%s259 + $0x168] sm:$0xff]
                %292 = vst [vmem:[%s260 + $0x78] sm:$0xff] %v291
              $region75: #{multi_gcn_forward.6} parent=69 // loop_footer
                %s258 = sadd.s32 1, %s254
              $region76: #{multi_gcn_forward.6} parent=69 // loop_footer_branch
                %253 = sbr.rel target = $region72
              $region77: #{multi_gcn_forward.6} parent=69 // loop_exit
                _
            $region70: #{multi_gcn_forward.6} parent=61 // pred_fallthru
              _
          $region62: #{multi_gcn_forward.6} parent=57 // pred_fallthru
            _
          %337 = vnop
        $region58: #{multi_gcn_forward.6} parent=15 // pred_fallthru
          _
      $region16: #{multi_gcn_forward.6} parent=5 // pred_fallthru
        _
      %p338 = scmp.le.s32.totalorder 1, %s8
      %p339 = scmp.lt.s32.totalorder %s8, 10
      %p340 = pnand %p338, %p339
      %p341 = pneg %p340
      // Predicated region
      $region93: #{multi_gcn_forward.6} parent=5 // pred_check
        _
      $region94: #{multi_gcn_forward.6} parent=5 // pred_check_branch
        %343 = sbr.rel (%p340) target = $region96
      $region95: #{multi_gcn_forward.6} parent=5 // pred_region
        %s344 = ssub.s32 %s8, 1
        %s345 = sand.u32 %s42, 1
        %s346 = sand.u32 %s42, 1
        %s347 = smul.addr %s346, 128
        %s348 = scalar_lea.vmem [#allocation3], %s347
        // Predicated region
        $region97: #{multi_gcn_forward.6} parent=95 // pred_check
          %p349 = pneg %p55
        $region98: #{multi_gcn_forward.6} parent=95 // pred_check_branch
          %351 = sbr.rel (%p349) target = $region100
        $region99: #{multi_gcn_forward.6} parent=95 // pred_region
          _
        $region100: #{multi_gcn_forward.6} parent=95 // pred_fallthru
          _
        %s352 = sand.u32 %s70, 1
        %s353 = sand.u32 %s70, 1
        %s354 = smul.addr %s353, 128
        %s355 = scalar_lea.vmem [#allocation4], %s354
        // Predicated region
        $region101: #{multi_gcn_forward.6} parent=95 // pred_check
          %p356 = pneg %p83
        $region102: #{multi_gcn_forward.6} parent=95 // pred_check_branch
          %358 = sbr.rel (%p356) target = $region104
        $region103: #{multi_gcn_forward.6} parent=95 // pred_region
          _
        $region104: #{multi_gcn_forward.6} parent=95 // pred_fallthru
          _
        %s359 = sand.u32 %s42, 1
        %s360 = sand.u32 %s42, 1
        %s361 = smul.addr %s360, 128
        %s362 = scalar_lea.vmem [#allocation3], %s361
        %p363 = pneg %p55
        %p364 = pneg %p52
        %s365 = sand.u32 %s70, 1
        %s366 = sand.u32 %s70, 1
        %s367 = smul.addr %s366, 128
        %s368 = scalar_lea.vmem [#allocation4], %s367
        %p369 = pneg %p83
        %p370 = pneg %p80
        %p371 = pneg %p111
        %p372 = pneg %p108
        %s373 = sand.u32 %s98, 1
        %s374 = sand.u32 %s98, 1
        %s375 = smul.addr %s374, 128
        %s376 = scalar_lea.vmem [#allocation5], %s375
        %s377 = smul.u32 16, %s18
        %s378 = smul.u32 16, %s20
        %s379 = smul.u32 16, %s18
        %p380 = scmp.eq.s32.totalorder %s20, 0
        // Predicated region
        $region105: #{multi_gcn_forward.6} parent=95 // pred_check
          %p381 = pneg %p380
        $region106: #{multi_gcn_forward.6} parent=95 // pred_check_branch
          %383 = sbr.rel (%p381) target = $region108
        $region107: #{multi_gcn_forward.6} parent=95 // pred_region
          %384 = vst [vmem:[#allocation2] sm:$0xff] 0.0
          %385 = vst [vmem:[#allocation2 + $0x8] sm:$0xff] 0.0
          %386 = vst [vmem:[#allocation2 + $0x10] sm:$0xff] 0.0
          %387 = vst [vmem:[#allocation2 + $0x18] sm:$0xff] 0.0
          %388 = vst [vmem:[#allocation2 + $0x20] sm:$0xff] 0.0
          %389 = vst [vmem:[#allocation2 + $0x28] sm:$0xff] 0.0
          %390 = vst [vmem:[#allocation2 + $0x30] sm:$0xff] 0.0
          %391 = vst [vmem:[#allocation2 + $0x38] sm:$0xff] 0.0
          %392 = vst [vmem:[#allocation2 + $0x40] sm:$0xff] 0.0
          %393 = vst [vmem:[#allocation2 + $0x48] sm:$0xff] 0.0
          %394 = vst [vmem:[#allocation2 + $0x50] sm:$0xff] 0.0
          %395 = vst [vmem:[#allocation2 + $0x58] sm:$0xff] 0.0
          %396 = vst [vmem:[#allocation2 + $0x60] sm:$0xff] 0.0
          %397 = vst [vmem:[#allocation2 + $0x68] sm:$0xff] 0.0
          %398 = vst [vmem:[#allocation2 + $0x70] sm:$0xff] 0.0
          %399 = vst [vmem:[#allocation2 + $0x78] sm:$0xff] 0.0
        $region108: #{multi_gcn_forward.6} parent=95 // pred_fallthru
          _
        %v400 = vld [vmem:[#allocation2] sm:$0xff]
        %v401 = vld [vmem:[#allocation2 + $0x8] sm:$0xff]
        %v402 = vld [vmem:[#allocation2 + $0x10] sm:$0xff]
        %v403 = vld [vmem:[#allocation2 + $0x18] sm:$0xff]
        %v404 = vld [vmem:[#allocation2 + $0x20] sm:$0xff]
        %v405 = vld [vmem:[#allocation2 + $0x28] sm:$0xff]
        %v406 = vld [vmem:[#allocation2 + $0x30] sm:$0xff]
        %v407 = vld [vmem:[#allocation2 + $0x38] sm:$0xff]
        %v408 = vld [vmem:[#allocation2 + $0x40] sm:$0xff]
        %v409 = vld [vmem:[#allocation2 + $0x48] sm:$0xff]
        %v410 = vld [vmem:[#allocation2 + $0x50] sm:$0xff]
        %v411 = vld [vmem:[#allocation2 + $0x58] sm:$0xff]
        %v412 = vld [vmem:[#allocation2 + $0x60] sm:$0xff]
        %v413 = vld [vmem:[#allocation2 + $0x68] sm:$0xff]
        %v414 = vld [vmem:[#allocation2 + $0x70] sm:$0xff]
        %v415 = vld [vmem:[#allocation2 + $0x78] sm:$0xff]
        %v416 = vld [vmem:[%s348] sm:$0xff]
        %v417 = vld [vmem:[%s348 + $0x8] sm:$0xff]
        %v418 = vld [vmem:[%s348 + $0x10] sm:$0xff]
        %v419 = vld [vmem:[%s348 + $0x18] sm:$0xff]
        %v420 = vld [vmem:[%s348 + $0x20] sm:$0xff]
        %v421 = vld [vmem:[%s348 + $0x28] sm:$0xff]
        %v422 = vld [vmem:[%s348 + $0x30] sm:$0xff]
        %v423 = vld [vmem:[%s348 + $0x38] sm:$0xff]
        %v424 = vld [vmem:[%s348 + $0x40] sm:$0xff]
        %v425 = vld [vmem:[%s348 + $0x48] sm:$0xff]
        %v426 = vld [vmem:[%s348 + $0x50] sm:$0xff]
        %v427 = vld [vmem:[%s348 + $0x58] sm:$0xff]
        %v428 = vld [vmem:[%s348 + $0x60] sm:$0xff]
        %v429 = vld [vmem:[%s348 + $0x68] sm:$0xff]
        %v430 = vld [vmem:[%s348 + $0x70] sm:$0xff]
        %v431 = vld [vmem:[%s348 + $0x78] sm:$0xff]
        %v432 = vld [vmem:[%s355] sm:$0xff]
        %v433 = vld [vmem:[%s355 + $0x8] sm:$0xff]
        %v434 = vld [vmem:[%s355 + $0x10] sm:$0xff]
        %v435 = vld [vmem:[%s355 + $0x18] sm:$0xff]
        %v436 = vld [vmem:[%s355 + $0x20] sm:$0xff]
        %v437 = vld [vmem:[%s355 + $0x28] sm:$0xff]
        %v438 = vld [vmem:[%s355 + $0x30] sm:$0xff]
        %v439 = vld [vmem:[%s355 + $0x38] sm:$0xff]
        %v440 = vld [vmem:[%s355 + $0x40] sm:$0xff]
        %v441 = vld [vmem:[%s355 + $0x48] sm:$0xff]
        %v442 = vld [vmem:[%s355 + $0x50] sm:$0xff]
        %v443 = vld [vmem:[%s355 + $0x58] sm:$0xff]
        %v444 = vld [vmem:[%s355 + $0x60] sm:$0xff]
        %v445 = vld [vmem:[%s355 + $0x68] sm:$0xff]
        %v446 = vld [vmem:[%s355 + $0x70] sm:$0xff]
        %v447 = vld [vmem:[%s355 + $0x78] sm:$0xff]
        %448 = vmatprep.subr.mxu0 0.0
        %449 = vmatpush1.msra.mxu0 %v432
        %450 = vmatprep.subr.mxu0 0.0
        %451 = vmatpush1.msra.mxu0 %v433
        %452 = vmatprep.subr.mxu0 0.0
        %453 = vmatpush1.msra.mxu0 %v434
        %454 = vmatprep.subr.mxu0 0.0
        %455 = vmatpush1.msra.mxu0 %v435
        %456 = vmatprep.subr.mxu0 0.0
        %457 = vmatpush1.msra.mxu0 %v436
        %458 = vmatprep.subr.mxu0 0.0
        %459 = vmatpush1.msra.mxu0 %v437
        %460 = vmatprep.subr.mxu0 0.0
        %461 = vmatpush1.msra.mxu0 %v438
        %462 = vmatprep.subr.mxu0 0.0
        %463 = vmatpush1.msra.mxu0 %v439
        %464 = vmatprep.subr.mxu0 0.0
        %465 = vmatpush1.msra.mxu0 %v440
        %466 = vmatprep.subr.mxu0 0.0
        %467 = vmatpush1.msra.mxu0 %v441
        %468 = vmatprep.subr.mxu0 0.0
        %469 = vmatpush1.msra.mxu0 %v442
        %470 = vmatprep.subr.mxu0 0.0
        %471 = vmatpush1.msra.mxu0 %v443
        %472 = vmatprep.subr.mxu0 0.0
        %473 = vmatpush1.msra.mxu0 %v444
        %474 = vmatprep.subr.mxu0 0.0
        %475 = vmatpush1.msra.mxu0 %v445
        %476 = vmatprep.subr.mxu0 0.0
        %477 = vmatpush1.msra.mxu0 %v446
        %478 = vmatprep.subr.mxu0 0.0
        %479 = vmatpush1.msra.mxu0 %v447
        %480 = vmatprep.subr.mxu0 0.0
        %481 = vmatpush1.msra.mxu0 0.0
        %482 = vmatprep.subr.mxu0 0.0
        %483 = vmatpush1.msra.mxu0 0.0
        %484 = vmatprep.subr.mxu0 0.0
        %485 = vmatpush1.msra.mxu0 0.0
        %486 = vmatprep.subr.mxu0 0.0
        %487 = vmatpush1.msra.mxu0 0.0
        %488 = vmatprep.subr.mxu0 0.0
        %489 = vmatpush1.msra.mxu0 0.0
        %490 = vmatprep.subr.mxu0 0.0
        %491 = vmatpush1.msra.mxu0 0.0
        %492 = vmatprep.subr.mxu0 0.0
        %493 = vmatpush1.msra.mxu0 0.0
        %494 = vmatprep.subr.mxu0 0.0
        %495 = vmatpush1.msra.mxu0 0.0
        %496 = vmatprep.subr.mxu0 0.0
        %497 = vmatpush1.msra.mxu0 0.0
        %498 = vmatprep.subr.mxu0 0.0
        %499 = vmatpush1.msra.mxu0 0.0
        %500 = vmatprep.subr.mxu0 0.0
        %501 = vmatpush1.msra.mxu0 0.0
        %502 = vmatprep.subr.mxu0 0.0
        %503 = vmatpush1.msra.mxu0 0.0
        %504 = vmatprep.subr.mxu0 0.0
        %505 = vmatpush1.msra.mxu0 0.0
        %506 = vmatprep.subr.mxu0 0.0
        %507 = vmatpush1.msra.mxu0 0.0
        %508 = vmatprep.subr.mxu0 0.0
        %509 = vmatpush1.msra.mxu0 0.0
        %510 = vmatprep.subr.mxu0 0.0
        %511 = vmatpush1.msra.mxu0 0.0
        %512 = vmatprep.mubr.f32.mxu0 0.0
        %513 = vmatmul.mubr.f32.gmra.mrb[0].mxu0 %v416
        %v514 = vpop.f32.mrb[0].mxu0
        %v515 = vadd.f32 0.0, %v514
        %v516 = vpop.f32.mrb[0].mxu0
        %517 = vmatprep.mubr.f32.mxu0 0.0
        %518 = vmatmul.mubr.f32.gmra.mrb[0].mxu0 %v417
        %v519 = vpop.f32.mrb[0].mxu0
        %v520 = vadd.f32 0.0, %v519
        %v521 = vpop.f32.mrb[0].mxu0
        %522 = vmatprep.mubr.f32.mxu0 0.0
        %523 = vmatmul.mubr.f32.gmra.mrb[0].mxu0 %v418
        %v524 = vpop.f32.mrb[0].mxu0
        %v525 = vadd.f32 0.0, %v524
        %v526 = vpop.f32.mrb[0].mxu0
        %527 = vmatprep.mubr.f32.mxu0 0.0
        %528 = vmatmul.mubr.f32.gmra.mrb[0].mxu0 %v419
        %v529 = vpop.f32.mrb[0].mxu0
        %v530 = vadd.f32 0.0, %v529
        %v531 = vpop.f32.mrb[0].mxu0
        %532 = vmatprep.mubr.f32.mxu0 0.0
        %533 = vmatmul.mubr.f32.gmra.mrb[0].mxu0 %v420
        %v534 = vpop.f32.mrb[0].mxu0
        %v535 = vadd.f32 0.0, %v534
        %v536 = vpop.f32.mrb[0].mxu0
        %537 = vmatprep.mubr.f32.mxu0 0.0
        %538 = vmatmul.mubr.f32.gmra.mrb[0].mxu0 %v421
        %v539 = vpop.f32.mrb[0].mxu0
        %v540 = vadd.f32 0.0, %v539
        %v541 = vpop.f32.mrb[0].mxu0
        %542 = vmatprep.mubr.f32.mxu0 0.0
        %543 = vmatmul.mubr.f32.gmra.mrb[0].mxu0 %v422
        %v544 = vpop.f32.mrb[0].mxu0
        %v545 = vadd.f32 0.0, %v544
        %v546 = vpop.f32.mrb[0].mxu0
        %547 = vmatprep.mubr.f32.mxu0 0.0
        %548 = vmatmul.mubr.f32.gmra.mrb[0].mxu0 %v423
        %v549 = vpop.f32.mrb[0].mxu0
        %v550 = vadd.f32 0.0, %v549
        %v551 = vpop.f32.mrb[0].mxu0
        %552 = vmatprep.mubr.f32.mxu0 0.0
        %553 = vmatmul.mubr.f32.gmra.mrb[0].mxu0 %v424
        %v554 = vpop.f32.mrb[0].mxu0
        %v555 = vadd.f32 0.0, %v554
        %v556 = vpop.f32.mrb[0].mxu0
        %557 = vmatprep.mubr.f32.mxu0 0.0
        %558 = vmatmul.mubr.f32.gmra.mrb[0].mxu0 %v425
        %v559 = vpop.f32.mrb[0].mxu0
        %v560 = vadd.f32 0.0, %v559
        %v561 = vpop.f32.mrb[0].mxu0
        %562 = vmatprep.mubr.f32.mxu0 0.0
        %563 = vmatmul.mubr.f32.gmra.mrb[0].mxu0 %v426
        %v564 = vpop.f32.mrb[0].mxu0
        %v565 = vadd.f32 0.0, %v564
        %v566 = vpop.f32.mrb[0].mxu0
        %567 = vmatprep.mubr.f32.mxu0 0.0
        %568 = vmatmul.mubr.f32.gmra.mrb[0].mxu0 %v427
        %v569 = vpop.f32.mrb[0].mxu0
        %v570 = vadd.f32 0.0, %v569
        %v571 = vpop.f32.mrb[0].mxu0
        %572 = vmatprep.mubr.f32.mxu0 0.0
        %573 = vmatmul.mubr.f32.gmra.mrb[0].mxu0 %v428
        %v574 = vpop.f32.mrb[0].mxu0
        %v575 = vadd.f32 0.0, %v574
        %v576 = vpop.f32.mrb[0].mxu0
        %577 = vmatprep.mubr.f32.mxu0 0.0
        %578 = vmatmul.mubr.f32.gmra.mrb[0].mxu0 %v429
        %v579 = vpop.f32.mrb[0].mxu0
        %v580 = vadd.f32 0.0, %v579
        %v581 = vpop.f32.mrb[0].mxu0
        %582 = vmatprep.mubr.f32.mxu0 0.0
        %583 = vmatmul.mubr.f32.gmra.mrb[0].mxu0 %v430
        %v584 = vpop.f32.mrb[0].mxu0
        %v585 = vadd.f32 0.0, %v584
        %v586 = vpop.f32.mrb[0].mxu0
        %587 = vmatprep.mubr.f32.mxu0 0.0
        %588 = vmatmul.mubr.f32.gmra.mrb[0].mxu0 %v431
        %v589 = vpop.f32.mrb[0].mxu0
        %v590 = vadd.f32 0.0, %v589
        %v591 = vpop.f32.mrb[0].mxu0
        %592 = vdwg.mxu0
        %v593 = vadd.f32 %v400, %v515
        %v594 = vadd.f32 %v401, %v520
        %v595 = vadd.f32 %v402, %v525
        %v596 = vadd.f32 %v403, %v530
        %v597 = vadd.f32 %v404, %v535
        %v598 = vadd.f32 %v405, %v540
        %v599 = vadd.f32 %v406, %v545
        %v600 = vadd.f32 %v407, %v550
        %v601 = vadd.f32 %v408, %v555
        %v602 = vadd.f32 %v409, %v560
        %v603 = vadd.f32 %v410, %v565
        %v604 = vadd.f32 %v411, %v570
        %v605 = vadd.f32 %v412, %v575
        %v606 = vadd.f32 %v413, %v580
        %v607 = vadd.f32 %v414, %v585
        %v608 = vadd.f32 %v415, %v590
        %609 = vst [vmem:[#allocation2] sm:$0xff] %v593
        %610 = vst [vmem:[#allocation2 + $0x8] sm:$0xff] %v594
        %611 = vst [vmem:[#allocation2 + $0x10] sm:$0xff] %v595
        %612 = vst [vmem:[#allocation2 + $0x18] sm:$0xff] %v596
        %613 = vst [vmem:[#allocation2 + $0x20] sm:$0xff] %v597
        %614 = vst [vmem:[#allocation2 + $0x28] sm:$0xff] %v598
        %615 = vst [vmem:[#allocation2 + $0x30] sm:$0xff] %v599
        %616 = vst [vmem:[#allocation2 + $0x38] sm:$0xff] %v600
        %617 = vst [vmem:[#allocation2 + $0x40] sm:$0xff] %v601
        %618 = vst [vmem:[#allocation2 + $0x48] sm:$0xff] %v602
        %619 = vst [vmem:[#allocation2 + $0x50] sm:$0xff] %v603
        %620 = vst [vmem:[#allocation2 + $0x58] sm:$0xff] %v604
        %621 = vst [vmem:[#allocation2 + $0x60] sm:$0xff] %v605
        %622 = vst [vmem:[#allocation2 + $0x68] sm:$0xff] %v606
        %623 = vst [vmem:[#allocation2 + $0x70] sm:$0xff] %v607
        %624 = vst [vmem:[#allocation2 + $0x78] sm:$0xff] %v608
        %p625 = scmp.eq.s32.totalorder %s20, 2
        // Predicated region
        $region109: #{multi_gcn_forward.6} parent=95 // pred_check
          %p626 = pneg %p625
        $region110: #{multi_gcn_forward.6} parent=95 // pred_check_branch
          %628 = sbr.rel (%p626) target = $region112
        $region111: #{multi_gcn_forward.6} parent=95 // pred_region
          %v629 = vld [vmem:[#allocation2] sm:$0xff]
          %v630 = vld [vmem:[#allocation2 + $0x8] sm:$0xff]
          %v631 = vld [vmem:[#allocation2 + $0x10] sm:$0xff]
          %v632 = vld [vmem:[#allocation2 + $0x18] sm:$0xff]
          %v633 = vld [vmem:[#allocation2 + $0x20] sm:$0xff]
          %v634 = vld [vmem:[#allocation2 + $0x28] sm:$0xff]
          %v635 = vld [vmem:[#allocation2 + $0x30] sm:$0xff]
          %v636 = vld [vmem:[#allocation2 + $0x38] sm:$0xff]
          %v637 = vld [vmem:[#allocation2 + $0x40] sm:$0xff]
          %v638 = vld [vmem:[#allocation2 + $0x48] sm:$0xff]
          %v639 = vld [vmem:[#allocation2 + $0x50] sm:$0xff]
          %v640 = vld [vmem:[#allocation2 + $0x58] sm:$0xff]
          %v641 = vld [vmem:[#allocation2 + $0x60] sm:$0xff]
          %v642 = vld [vmem:[#allocation2 + $0x68] sm:$0xff]
          %v643 = vld [vmem:[#allocation2 + $0x70] sm:$0xff]
          %v644 = vld [vmem:[#allocation2 + $0x78] sm:$0xff]
          %645 = vst [vmem:[%s376] sm:$0xff] %v629
          %646 = vst [vmem:[%s376 + $0x8] sm:$0xff] %v630
          %647 = vst [vmem:[%s376 + $0x10] sm:$0xff] %v631
          %648 = vst [vmem:[%s376 + $0x18] sm:$0xff] %v632
          %649 = vst [vmem:[%s376 + $0x20] sm:$0xff] %v633
          %650 = vst [vmem:[%s376 + $0x28] sm:$0xff] %v634
          %651 = vst [vmem:[%s376 + $0x30] sm:$0xff] %v635
          %652 = vst [vmem:[%s376 + $0x38] sm:$0xff] %v636
          %653 = vst [vmem:[%s376 + $0x40] sm:$0xff] %v637
          %654 = vst [vmem:[%s376 + $0x48] sm:$0xff] %v638
          %655 = vst [vmem:[%s376 + $0x50] sm:$0xff] %v639
          %656 = vst [vmem:[%s376 + $0x58] sm:$0xff] %v640
          %657 = vst [vmem:[%s376 + $0x60] sm:$0xff] %v641
          %658 = vst [vmem:[%s376 + $0x68] sm:$0xff] %v642
          %659 = vst [vmem:[%s376 + $0x70] sm:$0xff] %v643
          %660 = vst [vmem:[%s376 + $0x78] sm:$0xff] %v644
        $region112: #{multi_gcn_forward.6} parent=95 // pred_fallthru
          _
        %s661 = sand.u32 %s98, 1
        %s662 = sand.u32 %s98, 1
        %s663 = smul.addr %s662, 128
        %s664 = scalar_lea.vmem [#allocation5], %s663
        // Predicated region
        $region113: #{multi_gcn_forward.6} parent=95 // pred_check
          %p665 = pneg %p108
        $region114: #{multi_gcn_forward.6} parent=95 // pred_check_branch
          %667 = sbr.rel (%p665) target = $region116
        $region115: #{multi_gcn_forward.6} parent=95 // pred_region
          %s668 = smul.u32 16, %s18
          %s669 = smul.addr %s668, 3
          %s670 = sadd.s32 %s19, %s669
          %s671 = smul.addr %s670, 8
          %s672 = scalar_lea.vmem %s2, %s671
          // Predicated region
          $region117: #{multi_gcn_forward.6} parent=115 // pred_check
            _
          $region118: #{multi_gcn_forward.6} parent=115 // pred_check_branch
            %674 = sbr.rel (0) target = $region120
          $region119: #{multi_gcn_forward.6} parent=115 // pred_region
            // Predicated region
            $region121: #{multi_gcn_forward.6} parent=119 // pred_check
              _
            $region122: #{multi_gcn_forward.6} parent=119 // pred_check_branch
              %676 = sbr.rel (0) target = $region124
            $region123: #{multi_gcn_forward.6} parent=119 // pred_region
              // Predicated region
              $region136: #{multi_gcn_forward.6} parent=123 // pred_check
                _
              $region137: #{multi_gcn_forward.6} parent=123 // pred_check_branch
                %721 = sbr.rel (0) target = $region139
              $region138: #{multi_gcn_forward.6} parent=123 // pred_region
                loop: start=0, step=1, limit=1
                $region140: #{multi_gcn_forward.6} parent=138 // loop_pre_header
                  _
                $region141: #{multi_gcn_forward.6} parent=138 // loop_header
                  %s723 = sphi 0, %s727
                  %p724 = scmp.ge.s32.totalorder %s723, 1
                  %s728 = sphi %s664, %s664
                  %s729 = sphi %s672, %s672
                $region142: #{multi_gcn_forward.6} parent=138 // loop_header_branch
                  %726 = sbr.rel (%p724) target = $region146
                $region143: #{multi_gcn_forward.6} parent=138 // loop_body
                  %v730 = vld [vmem:[%s728] sm:$0xff]
                  %731 = vst [vmem:[%s729] sm:$0xff] %v730
                  %v732 = vld [vmem:[%s728 + $0x8] sm:$0xff]
                  %733 = vst [vmem:[%s729 + $0x18] sm:$0xff] %v732
                  %v734 = vld [vmem:[%s728 + $0x10] sm:$0xff]
                  %735 = vst [vmem:[%s729 + $0x30] sm:$0xff] %v734
                  %v736 = vld [vmem:[%s728 + $0x18] sm:$0xff]
                  %737 = vst [vmem:[%s729 + $0x48] sm:$0xff] %v736
                  %v738 = vld [vmem:[%s728 + $0x20] sm:$0xff]
                  %739 = vst [vmem:[%s729 + $0x60] sm:$0xff] %v738
                  %v740 = vld [vmem:[%s728 + $0x28] sm:$0xff]
                  %741 = vst [vmem:[%s729 + $0x78] sm:$0xff] %v740
                  %v742 = vld [vmem:[%s728 + $0x30] sm:$0xff]
                  %743 = vst [vmem:[%s729 + $0x90] sm:$0xff] %v742
                  %v744 = vld [vmem:[%s728 + $0x38] sm:$0xff]
                  %745 = vst [vmem:[%s729 + $0xa8] sm:$0xff] %v744
                  %v746 = vld [vmem:[%s728 + $0x40] sm:$0xff]
                  %747 = vst [vmem:[%s729 + $0xc0] sm:$0xff] %v746
                  %v748 = vld [vmem:[%s728 + $0x48] sm:$0xff]
                  %749 = vst [vmem:[%s729 + $0xd8] sm:$0xff] %v748
                  %v750 = vld [vmem:[%s728 + $0x50] sm:$0xff]
                  %751 = vst [vmem:[%s729 + $0xf0] sm:$0xff] %v750
                  %v752 = vld [vmem:[%s728 + $0x58] sm:$0xff]
                  %753 = vst [vmem:[%s729 + $0x108] sm:$0xff] %v752
                  %v754 = vld [vmem:[%s728 + $0x60] sm:$0xff]
                  %755 = vst [vmem:[%s729 + $0x120] sm:$0xff] %v754
                  %v756 = vld [vmem:[%s728 + $0x68] sm:$0xff]
                  %757 = vst [vmem:[%s729 + $0x138] sm:$0xff] %v756
                  %v758 = vld [vmem:[%s728 + $0x70] sm:$0xff]
                  %759 = vst [vmem:[%s729 + $0x150] sm:$0xff] %v758
                  %v760 = vld [vmem:[%s728 + $0x78] sm:$0xff]
                  %761 = vst [vmem:[%s729 + $0x168] sm:$0xff] %v760
                $region144: #{multi_gcn_forward.6} parent=138 // loop_footer
                  %s727 = sadd.s32 1, %s723
                $region145: #{multi_gcn_forward.6} parent=138 // loop_footer_branch
                  %722 = sbr.rel target = $region141
                $region146: #{multi_gcn_forward.6} parent=138 // loop_exit
                  _
              $region139: #{multi_gcn_forward.6} parent=123 // pred_fallthru
                _
              // Predicated region
              $region147: #{multi_gcn_forward.6} parent=123 // pred_check
                _
              $region148: #{multi_gcn_forward.6} parent=123 // pred_check_branch
                %763 = sbr.rel target = $region150
              $region149: #{multi_gcn_forward.6} parent=123 // pred_region
                _
              $region150: #{multi_gcn_forward.6} parent=123 // pred_fallthru
                _
            $region124: #{multi_gcn_forward.6} parent=119 // pred_fallthru
              _
            // Predicated region
            $region125: #{multi_gcn_forward.6} parent=119 // pred_check
              _
            $region126: #{multi_gcn_forward.6} parent=119 // pred_check_branch
              %678 = sbr.rel target = $region128
            $region127: #{multi_gcn_forward.6} parent=119 // pred_region
              loop: start=0, step=1, limit=1
              $region129: #{multi_gcn_forward.6} parent=127 // loop_pre_header
                _
              $region130: #{multi_gcn_forward.6} parent=127 // loop_header
                %s681 = sphi 0, %s685
                %p682 = scmp.ge.s32.totalorder %s681, 1
                %s686 = sphi %s664, %s664
                %s687 = sphi %s672, %s672
              $region131: #{multi_gcn_forward.6} parent=127 // loop_header_branch
                %684 = sbr.rel (%p682) target = $region135
              $region132: #{multi_gcn_forward.6} parent=127 // loop_body
                %v688 = vld [vmem:[%s686] sm:$0xff]
                %689 = vst [vmem:[%s687] sm:$0xff] %v688
                %v690 = vld [vmem:[%s686 + $0x8] sm:$0xff]
                %691 = vst [vmem:[%s687 + $0x18] sm:$0xff] %v690
                %v692 = vld [vmem:[%s686 + $0x10] sm:$0xff]
                %693 = vst [vmem:[%s687 + $0x30] sm:$0xff] %v692
                %v694 = vld [vmem:[%s686 + $0x18] sm:$0xff]
                %695 = vst [vmem:[%s687 + $0x48] sm:$0xff] %v694
                %v696 = vld [vmem:[%s686 + $0x20] sm:$0xff]
                %697 = vst [vmem:[%s687 + $0x60] sm:$0xff] %v696
                %v698 = vld [vmem:[%s686 + $0x28] sm:$0xff]
                %699 = vst [vmem:[%s687 + $0x78] sm:$0xff] %v698
                %v700 = vld [vmem:[%s686 + $0x30] sm:$0xff]
                %701 = vst [vmem:[%s687 + $0x90] sm:$0xff] %v700
                %v702 = vld [vmem:[%s686 + $0x38] sm:$0xff]
                %703 = vst [vmem:[%s687 + $0xa8] sm:$0xff] %v702
                %v704 = vld [vmem:[%s686 + $0x40] sm:$0xff]
                %705 = vst [vmem:[%s687 + $0xc0] sm:$0xff] %v704
                %v706 = vld [vmem:[%s686 + $0x48] sm:$0xff]
                %707 = vst [vmem:[%s687 + $0xd8] sm:$0xff] %v706
                %v708 = vld [vmem:[%s686 + $0x50] sm:$0xff]
                %709 = vst [vmem:[%s687 + $0xf0] sm:$0xff] %v708
                %v710 = vld [vmem:[%s686 + $0x58] sm:$0xff]
                %711 = vst [vmem:[%s687 + $0x108] sm:$0xff] %v710
                %v712 = vld [vmem:[%s686 + $0x60] sm:$0xff]
                %713 = vst [vmem:[%s687 + $0x120] sm:$0xff] %v712
                %v714 = vld [vmem:[%s686 + $0x68] sm:$0xff]
                %715 = vst [vmem:[%s687 + $0x138] sm:$0xff] %v714
                %v716 = vld [vmem:[%s686 + $0x70] sm:$0xff]
                %717 = vst [vmem:[%s687 + $0x150] sm:$0xff] %v716
                %v718 = vld [vmem:[%s686 + $0x78] sm:$0xff]
                %719 = vst [vmem:[%s687 + $0x168] sm:$0xff] %v718
              $region133: #{multi_gcn_forward.6} parent=127 // loop_footer
                %s685 = sadd.s32 1, %s681
              $region134: #{multi_gcn_forward.6} parent=127 // loop_footer_branch
                %680 = sbr.rel target = $region130
              $region135: #{multi_gcn_forward.6} parent=127 // loop_exit
                _
            $region128: #{multi_gcn_forward.6} parent=119 // pred_fallthru
              _
          $region120: #{multi_gcn_forward.6} parent=115 // pred_fallthru
            _
          %764 = vnop
        $region116: #{multi_gcn_forward.6} parent=95 // pred_fallthru
          _
      $region96: #{multi_gcn_forward.6} parent=5 // pred_fallthru
        _
      %p765 = scmp.le.s32.totalorder 2, %s8
      // Predicated region
      $region151: #{multi_gcn_forward.6} parent=5 // pred_check
        %p766 = pneg %p765
      $region152: #{multi_gcn_forward.6} parent=5 // pred_check_branch
        %768 = sbr.rel (%p766) target = $region154
      $region153: #{multi_gcn_forward.6} parent=5 // pred_region
        %s769 = ssub.s32 %s8, 2
        // Predicated region
        $region155: #{multi_gcn_forward.6} parent=153 // pred_check
          %p770 = pneg %p114
        $region156: #{multi_gcn_forward.6} parent=153 // pred_check_branch
          %772 = sbr.rel (%p770) target = $region158
        $region157: #{multi_gcn_forward.6} parent=153 // pred_region
          %s773 = sand.u32 %s99, 1
          %s774 = sand.u32 %s99, 1
          %s775 = smul.addr %s774, 128
          %s776 = scalar_lea.vmem [#allocation5], %s775
        $region158: #{multi_gcn_forward.6} parent=153 // pred_fallthru
          _
      $region154: #{multi_gcn_forward.6} parent=5 // pred_fallthru
        _
    $region6: #{multi_gcn_forward.6} parent=1 // loop_footer
      %s12 = sadd.s32 1, %s8
    $region7: #{multi_gcn_forward.6} parent=1 // loop_footer_branch
      %7 = sbr.rel target = $region3
    $region8: #{multi_gcn_forward.6} parent=1 // loop_exit
      _

// kernel: multi_gcn_forward.7
$region0: #{multi_gcn_forward.7}
  #allocation0 [shape = 'u32[]', space=smem, size = 0x4, offset = 0x4, fixed_abs, tag = 'smem constant byte address 0x4 - core index']
  #allocation1 [shape = 'u32[144,128]{1,0:T(1,128)}', space=vmem, size = 0x12000, scoped, tag = 'internal scratch']
  #allocation2 [shape = 'f32[128,384]{1,0:T(8,128)}', space=vmem, size = 0x30000, scoped, tag = 'scratch operand']
  %s0 = inlined_call_operand.vmem [shape: f32[128,384], index: 0, kind: input, shape index: {}]
  %s1 = inlined_call_operand.vmem [shape: f32[3,128,128], index: 1, kind: input, shape index: {}]
  %s2 = inlined_call_operand.vmem [shape: f32[1,384], index: 2, kind: input, shape index: {}]
  %s3 = inlined_call_operand.vmem [shape: f32[128,128], index: 3, kind: output, shape index: {}]
  %s4 = sld [smem:[#allocation0]]
  $region30: #{multi_gcn_forward.7} parent=0
    _
  %s6 = ssub.s32 1, %s4
  %s7 = scalar_select 0, %s6, %s4
  // Predicated region
  $region2: #{multi_gcn_forward.7} parent=0 // pred_check
    _
  $region3: #{multi_gcn_forward.7} parent=0 // pred_check_branch
    %9 = sbr.rel (0) target = $region5
  $region4: #{multi_gcn_forward.7} parent=0 // pred_region
    _
  $region5: #{multi_gcn_forward.7} parent=0 // pred_fallthru
    _
  // Predicated region
  $region6: #{multi_gcn_forward.7} parent=0 // pred_check
    _
  $region7: #{multi_gcn_forward.7} parent=0 // pred_check_branch
    %11 = sbr.rel (0) target = $region9
  $region8: #{multi_gcn_forward.7} parent=0 // pred_region
    _
  $region9: #{multi_gcn_forward.7} parent=0 // pred_fallthru
    _
  // Predicated region
  $region10: #{multi_gcn_forward.7} parent=0 // pred_check
    _
  $region11: #{multi_gcn_forward.7} parent=0 // pred_check_branch
    %13 = sbr.rel (0) target = $region13
  $region12: #{multi_gcn_forward.7} parent=0 // pred_region
    _
  $region13: #{multi_gcn_forward.7} parent=0 // pred_fallthru
    _
  %p14 = scmp.eq.s32.totalorder 0, 0
  // Predicated region
  $region14: #{multi_gcn_forward.7} parent=0 // pred_check
    %p15 = pneg %p14
  $region15: #{multi_gcn_forward.7} parent=0 // pred_check_branch
    %17 = sbr.rel (%p15) target = $region17
  $region16: #{multi_gcn_forward.7} parent=0 // pred_region
    %18 = vst [vmem:[#allocation2] sm:$0xff] 0.0
    %19 = vst [vmem:[#allocation2 + $0x8] sm:$0xff] 0.0
    %20 = vst [vmem:[#allocation2 + $0x10] sm:$0xff] 0.0
    %21 = vst [vmem:[#allocation2 + $0x18] sm:$0xff] 0.0
    %22 = vst [vmem:[#allocation2 + $0x20] sm:$0xff] 0.0
    %23 = vst [vmem:[#allocation2 + $0x28] sm:$0xff] 0.0
    %24 = vst [vmem:[#allocation2 + $0x30] sm:$0xff] 0.0
    %25 = vst [vmem:[#allocation2 + $0x38] sm:$0xff] 0.0
    %26 = vst [vmem:[#allocation2 + $0x40] sm:$0xff] 0.0
    %27 = vst [vmem:[#allocation2 + $0x48] sm:$0xff] 0.0
    %28 = vst [vmem:[#allocation2 + $0x50] sm:$0xff] 0.0
    %29 = vst [vmem:[#allocation2 + $0x58] sm:$0xff] 0.0
    %30 = vst [vmem:[#allocation2 + $0x60] sm:$0xff] 0.0
    %31 = vst [vmem:[#allocation2 + $0x68] sm:$0xff] 0.0
    %32 = vst [vmem:[#allocation2 + $0x70] sm:$0xff] 0.0
    %33 = vst [vmem:[#allocation2 + $0x78] sm:$0xff] 0.0
    %34 = vst [vmem:[#allocation2 + $0x80] sm:$0xff] 0.0
    %35 = vst [vmem:[#allocation2 + $0x88] sm:$0xff] 0.0
    %36 = vst [vmem:[#allocation2 + $0x90] sm:$0xff] 0.0
    %37 = vst [vmem:[#allocation2 + $0x98] sm:$0xff] 0.0
    %38 = vst [vmem:[#allocation2 + $0xa0] sm:$0xff] 0.0
    %39 = vst [vmem:[#allocation2 + $0xa8] sm:$0xff] 0.0
    %40 = vst [vmem:[#allocation2 + $0xb0] sm:$0xff] 0.0
    %41 = vst [vmem:[#allocation2 + $0xb8] sm:$0xff] 0.0
    %42 = vst [vmem:[#allocation2 + $0xc0] sm:$0xff] 0.0
    %43 = vst [vmem:[#allocation2 + $0xc8] sm:$0xff] 0.0
    %44 = vst [vmem:[#allocation2 + $0xd0] sm:$0xff] 0.0
    %45 = vst [vmem:[#allocation2 + $0xd8] sm:$0xff] 0.0
    %46 = vst [vmem:[#allocation2 + $0xe0] sm:$0xff] 0.0
    %47 = vst [vmem:[#allocation2 + $0xe8] sm:$0xff] 0.0
    %48 = vst [vmem:[#allocation2 + $0xf0] sm:$0xff] 0.0
    %49 = vst [vmem:[#allocation2 + $0xf8] sm:$0xff] 0.0
    %50 = vst [vmem:[#allocation2 + $0x100] sm:$0xff] 0.0
    %51 = vst [vmem:[#allocation2 + $0x108] sm:$0xff] 0.0
    %52 = vst [vmem:[#allocation2 + $0x110] sm:$0xff] 0.0
    %53 = vst [vmem:[#allocation2 + $0x118] sm:$0xff] 0.0
    %54 = vst [vmem:[#allocation2 + $0x120] sm:$0xff] 0.0
    %55 = vst [vmem:[#allocation2 + $0x128] sm:$0xff] 0.0
    %56 = vst [vmem:[#allocation2 + $0x130] sm:$0xff] 0.0
    %57 = vst [vmem:[#allocation2 + $0x138] sm:$0xff] 0.0
    %58 = vst [vmem:[#allocation2 + $0x140] sm:$0xff] 0.0
    %59 = vst [vmem:[#allocation2 + $0x148] sm:$0xff] 0.0
    %60 = vst [vmem:[#allocation2 + $0x150] sm:$0xff] 0.0
    %61 = vst [vmem:[#allocation2 + $0x158] sm:$0xff] 0.0
    %62 = vst [vmem:[#allocation2 + $0x160] sm:$0xff] 0.0
    %63 = vst [vmem:[#allocation2 + $0x168] sm:$0xff] 0.0
    %64 = vst [vmem:[#allocation2 + $0x170] sm:$0xff] 0.0
    %65 = vst [vmem:[#allocation2 + $0x178] sm:$0xff] 0.0
  $region17: #{multi_gcn_forward.7} parent=0 // pred_fallthru
    _
  %s66 = smul.u32 0, 128
  %s67 = sshra.s32 %s66, 3
  %s68 = sand.u32 %s66, 7
  %s69 = smul.u32 %s67, 3
  %s70 = smul.addr %s69, 8
  %s71 = scalar_lea.vmem %s0, %s70
  %v72 = vld [vmem:[%s71] sm:$0xff]
  %v73 = vld [vmem:[%s71 + $0x18] sm:$0xff]
  %v74 = vld [vmem:[%s71 + $0x30] sm:$0xff]
  %v75 = vld [vmem:[%s71 + $0x48] sm:$0xff]
  %v76 = vld [vmem:[%s71 + $0x60] sm:$0xff]
  %v77 = vld [vmem:[%s71 + $0x78] sm:$0xff]
  %v78 = vld [vmem:[%s71 + $0x90] sm:$0xff]
  %v79 = vld [vmem:[%s71 + $0xa8] sm:$0xff]
  %v80 = vld [vmem:[%s71 + $0xc0] sm:$0xff]
  %v81 = vld [vmem:[%s71 + $0xd8] sm:$0xff]
  %v82 = vld [vmem:[%s71 + $0xf0] sm:$0xff]
  %v83 = vld [vmem:[%s71 + $0x108] sm:$0xff]
  %v84 = vld [vmem:[%s71 + $0x120] sm:$0xff]
  %v85 = vld [vmem:[%s71 + $0x138] sm:$0xff]
  %v86 = vld [vmem:[%s71 + $0x150] sm:$0xff]
  %v87 = vld [vmem:[%s71 + $0x168] sm:$0xff]
  %v88 = vld [vmem:[#allocation2] sm:$0xff]
  %v89 = vld [vmem:[#allocation2 + $0x18] sm:$0xff]
  %v90 = vld [vmem:[#allocation2 + $0x30] sm:$0xff]
  %v91 = vld [vmem:[#allocation2 + $0x48] sm:$0xff]
  %v92 = vld [vmem:[#allocation2 + $0x60] sm:$0xff]
  %v93 = vld [vmem:[#allocation2 + $0x78] sm:$0xff]
  %v94 = vld [vmem:[#allocation2 + $0x90] sm:$0xff]
  %v95 = vld [vmem:[#allocation2 + $0xa8] sm:$0xff]
  %v96 = vld [vmem:[#allocation2 + $0xc0] sm:$0xff]
  %v97 = vld [vmem:[#allocation2 + $0xd8] sm:$0xff]
  %v98 = vld [vmem:[#allocation2 + $0xf0] sm:$0xff]
  %v99 = vld [vmem:[#allocation2 + $0x108] sm:$0xff]
  %v100 = vld [vmem:[#allocation2 + $0x120] sm:$0xff]
  %v101 = vld [vmem:[#allocation2 + $0x138] sm:$0xff]
  %v102 = vld [vmem:[#allocation2 + $0x150] sm:$0xff]
  %v103 = vld [vmem:[#allocation2 + $0x168] sm:$0xff]
  %v104 = vld [vmem:[%s1] sm:$0xff]
  %v105 = vld [vmem:[%s1 + $0x8] sm:$0xff]
  %v106 = vld [vmem:[%s1 + $0x10] sm:$0xff]
  %v107 = vld [vmem:[%s1 + $0x18] sm:$0xff]
  %v108 = vld [vmem:[%s1 + $0x20] sm:$0xff]
  %v109 = vld [vmem:[%s1 + $0x28] sm:$0xff]
  %v110 = vld [vmem:[%s1 + $0x30] sm:$0xff]
  %v111 = vld [vmem:[%s1 + $0x38] sm:$0xff]
  %v112 = vld [vmem:[%s1 + $0x40] sm:$0xff]
  %v113 = vld [vmem:[%s1 + $0x48] sm:$0xff]
  %v114 = vld [vmem:[%s1 + $0x50] sm:$0xff]
  %v115 = vld [vmem:[%s1 + $0x58] sm:$0xff]
  %v116 = vld [vmem:[%s1 + $0x60] sm:$0xff]
  %v117 = vld [vmem:[%s1 + $0x68] sm:$0xff]
  %v118 = vld [vmem:[%s1 + $0x70] sm:$0xff]
  %v119 = vld [vmem:[%s1 + $0x78] sm:$0xff]
  %120 = vmatprep.subr.mxu0 0.0
  %121 = vmatpush1.msra.mxu0 %v72
  %122 = vmatprep.subr.mxu0 0.0
  %123 = vmatpush1.msra.mxu0 %v73
  %124 = vmatprep.subr.mxu0 0.0
  %125 = vmatpush1.msra.mxu0 %v74
  %126 = vmatprep.subr.mxu0 0.0
  %127 = vmatpush1.msra.mxu0 %v75
  %128 = vmatprep.subr.mxu0 0.0
  %129 = vmatpush1.msra.mxu0 %v76
  %130 = vmatprep.subr.mxu0 0.0
  %131 = vmatpush1.msra.mxu0 %v77
  %132 = vmatprep.subr.mxu0 0.0
  %133 = vmatpush1.msra.mxu0 %v78
  %134 = vmatprep.subr.mxu0 0.0
  %135 = vmatpush1.msra.mxu0 %v79
  %136 = vmatprep.subr.mxu0 0.0
  %137 = vmatpush1.msra.mxu0 %v80
  %138 = vmatprep.subr.mxu0 0.0
  %139 = vmatpush1.msra.mxu0 %v81
  %140 = vmatprep.subr.mxu0 0.0
  %141 = vmatpush1.msra.mxu0 %v82
  %142 = vmatprep.subr.mxu0 0.0
  %143 = vmatpush1.msra.mxu0 %v83
  %144 = vmatprep.subr.mxu0 0.0
  %145 = vmatpush1.msra.mxu0 %v84
  %146 = vmatprep.subr.mxu0 0.0
  %147 = vmatpush1.msra.mxu0 %v85
  %148 = vmatprep.subr.mxu0 0.0
  %149 = vmatpush1.msra.mxu0 %v86
  %150 = vmatprep.subr.mxu0 0.0
  %151 = vmatpush1.msra.mxu0 %v87
  %152 = vmatprep.subr.mxu0 0.0
  %153 = vmatpush1.msra.mxu0 0.0
  %154 = vmatprep.subr.mxu0 0.0
  %155 = vmatpush1.msra.mxu0 0.0
  %156 = vmatprep.subr.mxu0 0.0
  %157 = vmatpush1.msra.mxu0 0.0
  %158 = vmatprep.subr.mxu0 0.0
  %159 = vmatpush1.msra.mxu0 0.0
  %160 = vmatprep.subr.mxu0 0.0
  %161 = vmatpush1.msra.mxu0 0.0
  %162 = vmatprep.subr.mxu0 0.0
  %163 = vmatpush1.msra.mxu0 0.0
  %164 = vmatprep.subr.mxu0 0.0
  %165 = vmatpush1.msra.mxu0 0.0
  %166 = vmatprep.subr.mxu0 0.0
  %167 = vmatpush1.msra.mxu0 0.0
  %168 = vmatprep.subr.mxu0 0.0
  %169 = vmatpush1.msra.mxu0 0.0
  %170 = vmatprep.subr.mxu0 0.0
  %171 = vmatpush1.msra.mxu0 0.0
  %172 = vmatprep.subr.mxu0 0.0
  %173 = vmatpush1.msra.mxu0 0.0
  %174 = vmatprep.subr.mxu0 0.0
  %175 = vmatpush1.msra.mxu0 0.0
  %176 = vmatprep.subr.mxu0 0.0
  %177 = vmatpush1.msra.mxu0 0.0
  %178 = vmatprep.subr.mxu0 0.0
  %179 = vmatpush1.msra.mxu0 0.0
  %180 = vmatprep.subr.mxu0 0.0
  %181 = vmatpush1.msra.mxu0 0.0
  %182 = vmatprep.subr.mxu0 0.0
  %183 = vmatpush1.msra.mxu0 0.0
  %184 = vmatprep.mubr.f32.mxu0 0.0
  %185 = vmatmul.mubr.f32.gmra.mrb[0].mxu0 %v104
  %v186 = vpop.f32.mrb[0].mxu0
  %v187 = vadd.f32 0.0, %v186
  %v188 = vpop.f32.mrb[0].mxu0
  %189 = vmatprep.mubr.f32.mxu0 0.0
  %190 = vmatmul.mubr.f32.gmra.mrb[0].mxu0 %v105
  %v191 = vpop.f32.mrb[0].mxu0
  %v192 = vadd.f32 0.0, %v191
  %v193 = vpop.f32.mrb[0].mxu0
  %194 = vmatprep.mubr.f32.mxu0 0.0
  %195 = vmatmul.mubr.f32.gmra.mrb[0].mxu0 %v106
  %v196 = vpop.f32.mrb[0].mxu0
  %v197 = vadd.f32 0.0, %v196
  %v198 = vpop.f32.mrb[0].mxu0
  %199 = vmatprep.mubr.f32.mxu0 0.0
  %200 = vmatmul.mubr.f32.gmra.mrb[0].mxu0 %v107
  %v201 = vpop.f32.mrb[0].mxu0
  %v202 = vadd.f32 0.0, %v201
  %v203 = vpop.f32.mrb[0].mxu0
  %204 = vmatprep.mubr.f32.mxu0 0.0
  %205 = vmatmul.mubr.f32.gmra.mrb[0].mxu0 %v108
  %v206 = vpop.f32.mrb[0].mxu0
  %v207 = vadd.f32 0.0, %v206
  %v208 = vpop.f32.mrb[0].mxu0
  %209 = vmatprep.mubr.f32.mxu0 0.0
  %210 = vmatmul.mubr.f32.gmra.mrb[0].mxu0 %v109
  %v211 = vpop.f32.mrb[0].mxu0
  %v212 = vadd.f32 0.0, %v211
  %v213 = vpop.f32.mrb[0].mxu0
  %214 = vmatprep.mubr.f32.mxu0 0.0
  %215 = vmatmul.mubr.f32.gmra.mrb[0].mxu0 %v110
  %v216 = vpop.f32.mrb[0].mxu0
  %v217 = vadd.f32 0.0, %v216
  %v218 = vpop.f32.mrb[0].mxu0
  %219 = vmatprep.mubr.f32.mxu0 0.0
  %220 = vmatmul.mubr.f32.gmra.mrb[0].mxu0 %v111
  %v221 = vpop.f32.mrb[0].mxu0
  %v222 = vadd.f32 0.0, %v221
  %v223 = vpop.f32.mrb[0].mxu0
  %224 = vmatprep.mubr.f32.mxu0 0.0
  %225 = vmatmul.mubr.f32.gmra.mrb[0].mxu0 %v112
  %v226 = vpop.f32.mrb[0].mxu0
  %v227 = vadd.f32 0.0, %v226
  %v228 = vpop.f32.mrb[0].mxu0
  %229 = vmatprep.mubr.f32.mxu0 0.0
  %230 = vmatmul.mubr.f32.gmra.mrb[0].mxu0 %v113
  %v231 = vpop.f32.mrb[0].mxu0
  %v232 = vadd.f32 0.0, %v231
  %v233 = vpop.f32.mrb[0].mxu0
  %234 = vmatprep.mubr.f32.mxu0 0.0
  %235 = vmatmul.mubr.f32.gmra.mrb[0].mxu0 %v114
  %v236 = vpop.f32.mrb[0].mxu0
  %v237 = vadd.f32 0.0, %v236
  %v238 = vpop.f32.mrb[0].mxu0
  %239 = vmatprep.mubr.f32.mxu0 0.0
  %240 = vmatmul.mubr.f32.gmra.mrb[0].mxu0 %v115
  %v241 = vpop.f32.mrb[0].mxu0
  %v242 = vadd.f32 0.0, %v241
  %v243 = vpop.f32.mrb[0].mxu0
  %244 = vmatprep.mubr.f32.mxu0 0.0
  %245 = vmatmul.mubr.f32.gmra.mrb[0].mxu0 %v116
  %v246 = vpop.f32.mrb[0].mxu0
  %v247 = vadd.f32 0.0, %v246
  %v248 = vpop.f32.mrb[0].mxu0
  %249 = vmatprep.mubr.f32.mxu0 0.0
  %250 = vmatmul.mubr.f32.gmra.mrb[0].mxu0 %v117
  %v251 = vpop.f32.mrb[0].mxu0
  %v252 = vadd.f32 0.0, %v251
  %v253 = vpop.f32.mrb[0].mxu0
  %254 = vmatprep.mubr.f32.mxu0 0.0
  %255 = vmatmul.mubr.f32.gmra.mrb[0].mxu0 %v118
  %v256 = vpop.f32.mrb[0].mxu0
  %v257 = vadd.f32 0.0, %v256
  %v258 = vpop.f32.mrb[0].mxu0
  %259 = vmatprep.mubr.f32.mxu0 0.0
  %260 = vmatmul.mubr.f32.gmra.mrb[0].mxu0 %v119
  %v261 = vpop.f32.mrb[0].mxu0
  %v262 = vadd.f32 0.0, %v261
  %v263 = vpop.f32.mrb[0].mxu0
  %264 = vdwg.mxu0
  %v265 = vadd.f32 %v88, %v187
  %v266 = vadd.f32 %v89, %v192
  %v267 = vadd.f32 %v90, %v197
  %v268 = vadd.f32 %v91, %v202
  %v269 = vadd.f32 %v92, %v207
  %v270 = vadd.f32 %v93, %v212
  %v271 = vadd.f32 %v94, %v217
  %v272 = vadd.f32 %v95, %v222
  %v273 = vadd.f32 %v96, %v227
  %v274 = vadd.f32 %v97, %v232
  %v275 = vadd.f32 %v98, %v237
  %v276 = vadd.f32 %v99, %v242
  %v277 = vadd.f32 %v100, %v247
  %v278 = vadd.f32 %v101, %v252
  %v279 = vadd.f32 %v102, %v257
  %v280 = vadd.f32 %v103, %v262
  %281 = vst [vmem:[#allocation2] sm:$0xff] %v265
  %282 = vst [vmem:[#allocation2 + $0x18] sm:$0xff] %v266
  %283 = vst [vmem:[#allocation2 + $0x30] sm:$0xff] %v267
  %284 = vst [vmem:[#allocation2 + $0x48] sm:$0xff] %v268
  %285 = vst [vmem:[#allocation2 + $0x60] sm:$0xff] %v269
  %286 = vst [vmem:[#allocation2 + $0x78] sm:$0xff] %v270
  %287 = vst [vmem:[#allocation2 + $0x90] sm:$0xff] %v271
  %288 = vst [vmem:[#allocation2 + $0xa8] sm:$0xff] %v272
  %289 = vst [vmem:[#allocation2 + $0xc0] sm:$0xff] %v273
  %290 = vst [vmem:[#allocation2 + $0xd8] sm:$0xff] %v274
  %291 = vst [vmem:[#allocation2 + $0xf0] sm:$0xff] %v275
  %292 = vst [vmem:[#allocation2 + $0x108] sm:$0xff] %v276
  %293 = vst [vmem:[#allocation2 + $0x120] sm:$0xff] %v277
  %294 = vst [vmem:[#allocation2 + $0x138] sm:$0xff] %v278
  %295 = vst [vmem:[#allocation2 + $0x150] sm:$0xff] %v279
  %296 = vst [vmem:[#allocation2 + $0x168] sm:$0xff] %v280
  %v297 = vld [vmem:[%s71 + $0x8] sm:$0xff]
  %v298 = vld [vmem:[%s71 + $0x20] sm:$0xff]
  %v299 = vld [vmem:[%s71 + $0x38] sm:$0xff]
  %v300 = vld [vmem:[%s71 + $0x50] sm:$0xff]
  %v301 = vld [vmem:[%s71 + $0x68] sm:$0xff]
  %v302 = vld [vmem:[%s71 + $0x80] sm:$0xff]
  %v303 = vld [vmem:[%s71 + $0x98] sm:$0xff]
  %v304 = vld [vmem:[%s71 + $0xb0] sm:$0xff]
  %v305 = vld [vmem:[%s71 + $0xc8] sm:$0xff]
  %v306 = vld [vmem:[%s71 + $0xe0] sm:$0xff]
  %v307 = vld [vmem:[%s71 + $0xf8] sm:$0xff]
  %v308 = vld [vmem:[%s71 + $0x110] sm:$0xff]
  %v309 = vld [vmem:[%s71 + $0x128] sm:$0xff]
  %v310 = vld [vmem:[%s71 + $0x140] sm:$0xff]
  %v311 = vld [vmem:[%s71 + $0x158] sm:$0xff]
  %v312 = vld [vmem:[%s71 + $0x170] sm:$0xff]
  %v313 = vld [vmem:[#allocation2 + $0x8] sm:$0xff]
  %v314 = vld [vmem:[#allocation2 + $0x20] sm:$0xff]
  %v315 = vld [vmem:[#allocation2 + $0x38] sm:$0xff]
  %v316 = vld [vmem:[#allocation2 + $0x50] sm:$0xff]
  %v317 = vld [vmem:[#allocation2 + $0x68] sm:$0xff]
  %v318 = vld [vmem:[#allocation2 + $0x80] sm:$0xff]
  %v319 = vld [vmem:[#allocation2 + $0x98] sm:$0xff]
  %v320 = vld [vmem:[#allocation2 + $0xb0] sm:$0xff]
  %v321 = vld [vmem:[#allocation2 + $0xc8] sm:$0xff]
  %v322 = vld [vmem:[#allocation2 + $0xe0] sm:$0xff]
  %v323 = vld [vmem:[#allocation2 + $0xf8] sm:$0xff]
  %v324 = vld [vmem:[#allocation2 + $0x110] sm:$0xff]
  %v325 = vld [vmem:[#allocation2 + $0x128] sm:$0xff]
  %v326 = vld [vmem:[#allocation2 + $0x140] sm:$0xff]
  %v327 = vld [vmem:[#allocation2 + $0x158] sm:$0xff]
  %v328 = vld [vmem:[#allocation2 + $0x170] sm:$0xff]
  %s329 = scalar_lea.vmem %s1, 128
  %v330 = vld [vmem:[%s329] sm:$0xff]
  %v331 = vld [vmem:[%s329 + $0x8] sm:$0xff]
  %v332 = vld [vmem:[%s329 + $0x10] sm:$0xff]
  %v333 = vld [vmem:[%s329 + $0x18] sm:$0xff]
  %v334 = vld [vmem:[%s329 + $0x20] sm:$0xff]
  %v335 = vld [vmem:[%s329 + $0x28] sm:$0xff]
  %v336 = vld [vmem:[%s329 + $0x30] sm:$0xff]
  %v337 = vld [vmem:[%s329 + $0x38] sm:$0xff]
  %v338 = vld [vmem:[%s329 + $0x40] sm:$0xff]
  %v339 = vld [vmem:[%s329 + $0x48] sm:$0xff]
  %v340 = vld [vmem:[%s329 + $0x50] sm:$0xff]
  %v341 = vld [vmem:[%s329 + $0x58] sm:$0xff]
  %v342 = vld [vmem:[%s329 + $0x60] sm:$0xff]
  %v343 = vld [vmem:[%s329 + $0x68] sm:$0xff]
  %v344 = vld [vmem:[%s329 + $0x70] sm:$0xff]
  %v345 = vld [vmem:[%s329 + $0x78] sm:$0xff]
  %346 = vmatprep.subr.mxu0 0.0
  %347 = vmatpush1.msra.mxu0 %v297
  %348 = vmatprep.subr.mxu0 0.0
  %349 = vmatpush1.msra.mxu0 %v298
  %350 = vmatprep.subr.mxu0 0.0
  %351 = vmatpush1.msra.mxu0 %v299
  %352 = vmatprep.subr.mxu0 0.0
  %353 = vmatpush1.msra.mxu0 %v300
  %354 = vmatprep.subr.mxu0 0.0
  %355 = vmatpush1.msra.mxu0 %v301
  %356 = vmatprep.subr.mxu0 0.0
  %357 = vmatpush1.msra.mxu0 %v302
  %358 = vmatprep.subr.mxu0 0.0
  %359 = vmatpush1.msra.mxu0 %v303
  %360 = vmatprep.subr.mxu0 0.0
  %361 = vmatpush1.msra.mxu0 %v304
  %362 = vmatprep.subr.mxu0 0.0
  %363 = vmatpush1.msra.mxu0 %v305
  %364 = vmatprep.subr.mxu0 0.0
  %365 = vmatpush1.msra.mxu0 %v306
  %366 = vmatprep.subr.mxu0 0.0
  %367 = vmatpush1.msra.mxu0 %v307
  %368 = vmatprep.subr.mxu0 0.0
  %369 = vmatpush1.msra.mxu0 %v308
  %370 = vmatprep.subr.mxu0 0.0
  %371 = vmatpush1.msra.mxu0 %v309
  %372 = vmatprep.subr.mxu0 0.0
  %373 = vmatpush1.msra.mxu0 %v310
  %374 = vmatprep.subr.mxu0 0.0
  %375 = vmatpush1.msra.mxu0 %v311
  %376 = vmatprep.subr.mxu0 0.0
  %377 = vmatpush1.msra.mxu0 %v312
  %378 = vmatprep.subr.mxu0 0.0
  %379 = vmatpush1.msra.mxu0 0.0
  %380 = vmatprep.subr.mxu0 0.0
  %381 = vmatpush1.msra.mxu0 0.0
  %382 = vmatprep.subr.mxu0 0.0
  %383 = vmatpush1.msra.mxu0 0.0
  %384 = vmatprep.subr.mxu0 0.0
  %385 = vmatpush1.msra.mxu0 0.0
  %386 = vmatprep.subr.mxu0 0.0
  %387 = vmatpush1.msra.mxu0 0.0
  %388 = vmatprep.subr.mxu0 0.0
  %389 = vmatpush1.msra.mxu0 0.0
  %390 = vmatprep.subr.mxu0 0.0
  %391 = vmatpush1.msra.mxu0 0.0
  %392 = vmatprep.subr.mxu0 0.0
  %393 = vmatpush1.msra.mxu0 0.0
  %394 = vmatprep.subr.mxu0 0.0
  %395 = vmatpush1.msra.mxu0 0.0
  %396 = vmatprep.subr.mxu0 0.0
  %397 = vmatpush1.msra.mxu0 0.0
  %398 = vmatprep.subr.mxu0 0.0
  %399 = vmatpush1.msra.mxu0 0.0
  %400 = vmatprep.subr.mxu0 0.0
  %401 = vmatpush1.msra.mxu0 0.0
  %402 = vmatprep.subr.mxu0 0.0
  %403 = vmatpush1.msra.mxu0 0.0
  %404 = vmatprep.subr.mxu0 0.0
  %405 = vmatpush1.msra.mxu0 0.0
  %406 = vmatprep.subr.mxu0 0.0
  %407 = vmatpush1.msra.mxu0 0.0
  %408 = vmatprep.subr.mxu0 0.0
  %409 = vmatpush1.msra.mxu0 0.0
  %410 = vmatprep.mubr.f32.mxu0 0.0
  %411 = vmatmul.mubr.f32.gmra.mrb[0].mxu0 %v330
  %v412 = vpop.f32.mrb[0].mxu0
  %v413 = vadd.f32 0.0, %v412
  %v414 = vpop.f32.mrb[0].mxu0
  %415 = vmatprep.mubr.f32.mxu0 0.0
  %416 = vmatmul.mubr.f32.gmra.mrb[0].mxu0 %v331
  %v417 = vpop.f32.mrb[0].mxu0
  %v418 = vadd.f32 0.0, %v417
  %v419 = vpop.f32.mrb[0].mxu0
  %420 = vmatprep.mubr.f32.mxu0 0.0
  %421 = vmatmul.mubr.f32.gmra.mrb[0].mxu0 %v332
  %v422 = vpop.f32.mrb[0].mxu0
  %v423 = vadd.f32 0.0, %v422
  %v424 = vpop.f32.mrb[0].mxu0
  %425 = vmatprep.mubr.f32.mxu0 0.0
  %426 = vmatmul.mubr.f32.gmra.mrb[0].mxu0 %v333
  %v427 = vpop.f32.mrb[0].mxu0
  %v428 = vadd.f32 0.0, %v427
  %v429 = vpop.f32.mrb[0].mxu0
  %430 = vmatprep.mubr.f32.mxu0 0.0
  %431 = vmatmul.mubr.f32.gmra.mrb[0].mxu0 %v334
  %v432 = vpop.f32.mrb[0].mxu0
  %v433 = vadd.f32 0.0, %v432
  %v434 = vpop.f32.mrb[0].mxu0
  %435 = vmatprep.mubr.f32.mxu0 0.0
  %436 = vmatmul.mubr.f32.gmra.mrb[0].mxu0 %v335
  %v437 = vpop.f32.mrb[0].mxu0
  %v438 = vadd.f32 0.0, %v437
  %v439 = vpop.f32.mrb[0].mxu0
  %440 = vmatprep.mubr.f32.mxu0 0.0
  %441 = vmatmul.mubr.f32.gmra.mrb[0].mxu0 %v336
  %v442 = vpop.f32.mrb[0].mxu0
  %v443 = vadd.f32 0.0, %v442
  %v444 = vpop.f32.mrb[0].mxu0
  %445 = vmatprep.mubr.f32.mxu0 0.0
  %446 = vmatmul.mubr.f32.gmra.mrb[0].mxu0 %v337
  %v447 = vpop.f32.mrb[0].mxu0
  %v448 = vadd.f32 0.0, %v447
  %v449 = vpop.f32.mrb[0].mxu0
  %450 = vmatprep.mubr.f32.mxu0 0.0
  %451 = vmatmul.mubr.f32.gmra.mrb[0].mxu0 %v338
  %v452 = vpop.f32.mrb[0].mxu0
  %v453 = vadd.f32 0.0, %v452
  %v454 = vpop.f32.mrb[0].mxu0
  %455 = vmatprep.mubr.f32.mxu0 0.0
  %456 = vmatmul.mubr.f32.gmra.mrb[0].mxu0 %v339
  %v457 = vpop.f32.mrb[0].mxu0
  %v458 = vadd.f32 0.0, %v457
  %v459 = vpop.f32.mrb[0].mxu0
  %460 = vmatprep.mubr.f32.mxu0 0.0
  %461 = vmatmul.mubr.f32.gmra.mrb[0].mxu0 %v340
  %v462 = vpop.f32.mrb[0].mxu0
  %v463 = vadd.f32 0.0, %v462
  %v464 = vpop.f32.mrb[0].mxu0
  %465 = vmatprep.mubr.f32.mxu0 0.0
  %466 = vmatmul.mubr.f32.gmra.mrb[0].mxu0 %v341
  %v467 = vpop.f32.mrb[0].mxu0
  %v468 = vadd.f32 0.0, %v467
  %v469 = vpop.f32.mrb[0].mxu0
  %470 = vmatprep.mubr.f32.mxu0 0.0
  %471 = vmatmul.mubr.f32.gmra.mrb[0].mxu0 %v342
  %v472 = vpop.f32.mrb[0].mxu0
  %v473 = vadd.f32 0.0, %v472
  %v474 = vpop.f32.mrb[0].mxu0
  %475 = vmatprep.mubr.f32.mxu0 0.0
  %476 = vmatmul.mubr.f32.gmra.mrb[0].mxu0 %v343
  %v477 = vpop.f32.mrb[0].mxu0
  %v478 = vadd.f32 0.0, %v477
  %v479 = vpop.f32.mrb[0].mxu0
  %480 = vmatprep.mubr.f32.mxu0 0.0
  %481 = vmatmul.mubr.f32.gmra.mrb[0].mxu0 %v344
  %v482 = vpop.f32.mrb[0].mxu0
  %v483 = vadd.f32 0.0, %v482
  %v484 = vpop.f32.mrb[0].mxu0
  %485 = vmatprep.mubr.f32.mxu0 0.0
  %486 = vmatmul.mubr.f32.gmra.mrb[0].mxu0 %v345
  %v487 = vpop.f32.mrb[0].mxu0
  %v488 = vadd.f32 0.0, %v487
  %v489 = vpop.f32.mrb[0].mxu0
  %490 = vdwg.mxu0
  %v491 = vadd.f32 %v313, %v413
  %v492 = vadd.f32 %v314, %v418
  %v493 = vadd.f32 %v315, %v423
  %v494 = vadd.f32 %v316, %v428
  %v495 = vadd.f32 %v317, %v433
  %v496 = vadd.f32 %v318, %v438
  %v497 = vadd.f32 %v319, %v443
  %v498 = vadd.f32 %v320, %v448
  %v499 = vadd.f32 %v321, %v453
  %v500 = vadd.f32 %v322, %v458
  %v501 = vadd.f32 %v323, %v463
  %v502 = vadd.f32 %v324, %v468
  %v503 = vadd.f32 %v325, %v473
  %v504 = vadd.f32 %v326, %v478
  %v505 = vadd.f32 %v327, %v483
  %v506 = vadd.f32 %v328, %v488
  %507 = vst [vmem:[#allocation2 + $0x8] sm:$0xff] %v491
  %508 = vst [vmem:[#allocation2 + $0x20] sm:$0xff] %v492
  %509 = vst [vmem:[#allocation2 + $0x38] sm:$0xff] %v493
  %510 = vst [vmem:[#allocation2 + $0x50] sm:$0xff] %v494
  %511 = vst [vmem:[#allocation2 + $0x68] sm:$0xff] %v495
  %512 = vst [vmem:[#allocation2 + $0x80] sm:$0xff] %v496
  %513 = vst [vmem:[#allocation2 + $0x98] sm:$0xff] %v497
  %514 = vst [vmem:[#allocation2 + $0xb0] sm:$0xff] %v498
  %515 = vst [vmem:[#allocation2 + $0xc8] sm:$0xff] %v499
  %516 = vst [vmem:[#allocation2 + $0xe0] sm:$0xff] %v500
  %517 = vst [vmem:[#allocation2 + $0xf8] sm:$0xff] %v501
  %518 = vst [vmem:[#allocation2 + $0x110] sm:$0xff] %v502
  %519 = vst [vmem:[#allocation2 + $0x128] sm:$0xff] %v503
  %520 = vst [vmem:[#allocation2 + $0x140] sm:$0xff] %v504
  %521 = vst [vmem:[#allocation2 + $0x158] sm:$0xff] %v505
  %522 = vst [vmem:[#allocation2 + $0x170] sm:$0xff] %v506
  %v523 = vld [vmem:[%s71 + $0x10] sm:$0xff]
  %v524 = vld [vmem:[%s71 + $0x28] sm:$0xff]
  %v525 = vld [vmem:[%s71 + $0x40] sm:$0xff]
  %v526 = vld [vmem:[%s71 + $0x58] sm:$0xff]
  %v527 = vld [vmem:[%s71 + $0x70] sm:$0xff]
  %v528 = vld [vmem:[%s71 + $0x88] sm:$0xff]
  %v529 = vld [vmem:[%s71 + $0xa0] sm:$0xff]
  %v530 = vld [vmem:[%s71 + $0xb8] sm:$0xff]
  %v531 = vld [vmem:[%s71 + $0xd0] sm:$0xff]
  %v532 = vld [vmem:[%s71 + $0xe8] sm:$0xff]
  %v533 = vld [vmem:[%s71 + $0x100] sm:$0xff]
  %v534 = vld [vmem:[%s71 + $0x118] sm:$0xff]
  %v535 = vld [vmem:[%s71 + $0x130] sm:$0xff]
  %v536 = vld [vmem:[%s71 + $0x148] sm:$0xff]
  %v537 = vld [vmem:[%s71 + $0x160] sm:$0xff]
  %v538 = vld [vmem:[%s71 + $0x178] sm:$0xff]
  %v539 = vld [vmem:[#allocation2 + $0x10] sm:$0xff]
  %v540 = vld [vmem:[#allocation2 + $0x28] sm:$0xff]
  %v541 = vld [vmem:[#allocation2 + $0x40] sm:$0xff]
  %v542 = vld [vmem:[#allocation2 + $0x58] sm:$0xff]
  %v543 = vld [vmem:[#allocation2 + $0x70] sm:$0xff]
  %v544 = vld [vmem:[#allocation2 + $0x88] sm:$0xff]
  %v545 = vld [vmem:[#allocation2 + $0xa0] sm:$0xff]
  %v546 = vld [vmem:[#allocation2 + $0xb8] sm:$0xff]
  %v547 = vld [vmem:[#allocation2 + $0xd0] sm:$0xff]
  %v548 = vld [vmem:[#allocation2 + $0xe8] sm:$0xff]
  %v549 = vld [vmem:[#allocation2 + $0x100] sm:$0xff]
  %v550 = vld [vmem:[#allocation2 + $0x118] sm:$0xff]
  %v551 = vld [vmem:[#allocation2 + $0x130] sm:$0xff]
  %v552 = vld [vmem:[#allocation2 + $0x148] sm:$0xff]
  %v553 = vld [vmem:[#allocation2 + $0x160] sm:$0xff]
  %v554 = vld [vmem:[#allocation2 + $0x178] sm:$0xff]
  %s555 = scalar_lea.vmem %s1, 256
  %v556 = vld [vmem:[%s555] sm:$0xff]
  %v557 = vld [vmem:[%s555 + $0x8] sm:$0xff]
  %v558 = vld [vmem:[%s555 + $0x10] sm:$0xff]
  %v559 = vld [vmem:[%s555 + $0x18] sm:$0xff]
  %v560 = vld [vmem:[%s555 + $0x20] sm:$0xff]
  %v561 = vld [vmem:[%s555 + $0x28] sm:$0xff]
  %v562 = vld [vmem:[%s555 + $0x30] sm:$0xff]
  %v563 = vld [vmem:[%s555 + $0x38] sm:$0xff]
  %v564 = vld [vmem:[%s555 + $0x40] sm:$0xff]
  %v565 = vld [vmem:[%s555 + $0x48] sm:$0xff]
  %v566 = vld [vmem:[%s555 + $0x50] sm:$0xff]
  %v567 = vld [vmem:[%s555 + $0x58] sm:$0xff]
  %v568 = vld [vmem:[%s555 + $0x60] sm:$0xff]
  %v569 = vld [vmem:[%s555 + $0x68] sm:$0xff]
  %v570 = vld [vmem:[%s555 + $0x70] sm:$0xff]
  %v571 = vld [vmem:[%s555 + $0x78] sm:$0xff]
  %572 = vmatprep.subr.mxu0 0.0
  %573 = vmatpush1.msra.mxu0 %v523
  %574 = vmatprep.subr.mxu0 0.0
  %575 = vmatpush1.msra.mxu0 %v524
  %576 = vmatprep.subr.mxu0 0.0
  %577 = vmatpush1.msra.mxu0 %v525
  %578 = vmatprep.subr.mxu0 0.0
  %579 = vmatpush1.msra.mxu0 %v526
  %580 = vmatprep.subr.mxu0 0.0
  %581 = vmatpush1.msra.mxu0 %v527
  %582 = vmatprep.subr.mxu0 0.0
  %583 = vmatpush1.msra.mxu0 %v528
  %584 = vmatprep.subr.mxu0 0.0
  %585 = vmatpush1.msra.mxu0 %v529
  %586 = vmatprep.subr.mxu0 0.0
  %587 = vmatpush1.msra.mxu0 %v530
  %588 = vmatprep.subr.mxu0 0.0
  %589 = vmatpush1.msra.mxu0 %v531
  %590 = vmatprep.subr.mxu0 0.0
  %591 = vmatpush1.msra.mxu0 %v532
  %592 = vmatprep.subr.mxu0 0.0
  %593 = vmatpush1.msra.mxu0 %v533
  %594 = vmatprep.subr.mxu0 0.0
  %595 = vmatpush1.msra.mxu0 %v534
  %596 = vmatprep.subr.mxu0 0.0
  %597 = vmatpush1.msra.mxu0 %v535
  %598 = vmatprep.subr.mxu0 0.0
  %599 = vmatpush1.msra.mxu0 %v536
  %600 = vmatprep.subr.mxu0 0.0
  %601 = vmatpush1.msra.mxu0 %v537
  %602 = vmatprep.subr.mxu0 0.0
  %603 = vmatpush1.msra.mxu0 %v538
  %604 = vmatprep.subr.mxu0 0.0
  %605 = vmatpush1.msra.mxu0 0.0
  %606 = vmatprep.subr.mxu0 0.0
  %607 = vmatpush1.msra.mxu0 0.0
  %608 = vmatprep.subr.mxu0 0.0
  %609 = vmatpush1.msra.mxu0 0.0
  %610 = vmatprep.subr.mxu0 0.0
  %611 = vmatpush1.msra.mxu0 0.0
  %612 = vmatprep.subr.mxu0 0.0
  %613 = vmatpush1.msra.mxu0 0.0
  %614 = vmatprep.subr.mxu0 0.0
  %615 = vmatpush1.msra.mxu0 0.0
  %616 = vmatprep.subr.mxu0 0.0
  %617 = vmatpush1.msra.mxu0 0.0
  %618 = vmatprep.subr.mxu0 0.0
  %619 = vmatpush1.msra.mxu0 0.0
  %620 = vmatprep.subr.mxu0 0.0
  %621 = vmatpush1.msra.mxu0 0.0
  %622 = vmatprep.subr.mxu0 0.0
  %623 = vmatpush1.msra.mxu0 0.0
  %624 = vmatprep.subr.mxu0 0.0
  %625 = vmatpush1.msra.mxu0 0.0
  %626 = vmatprep.subr.mxu0 0.0
  %627 = vmatpush1.msra.mxu0 0.0
  %628 = vmatprep.subr.mxu0 0.0
  %629 = vmatpush1.msra.mxu0 0.0
  %630 = vmatprep.subr.mxu0 0.0
  %631 = vmatpush1.msra.mxu0 0.0
  %632 = vmatprep.subr.mxu0 0.0
  %633 = vmatpush1.msra.mxu0 0.0
  %634 = vmatprep.subr.mxu0 0.0
  %635 = vmatpush1.msra.mxu0 0.0
  %636 = vmatprep.mubr.f32.mxu0 0.0
  %637 = vmatmul.mubr.f32.gmra.mrb[0].mxu0 %v556
  %v638 = vpop.f32.mrb[0].mxu0
  %v639 = vadd.f32 0.0, %v638
  %v640 = vpop.f32.mrb[0].mxu0
  %641 = vmatprep.mubr.f32.mxu0 0.0
  %642 = vmatmul.mubr.f32.gmra.mrb[0].mxu0 %v557
  %v643 = vpop.f32.mrb[0].mxu0
  %v644 = vadd.f32 0.0, %v643
  %v645 = vpop.f32.mrb[0].mxu0
  %646 = vmatprep.mubr.f32.mxu0 0.0
  %647 = vmatmul.mubr.f32.gmra.mrb[0].mxu0 %v558
  %v648 = vpop.f32.mrb[0].mxu0
  %v649 = vadd.f32 0.0, %v648
  %v650 = vpop.f32.mrb[0].mxu0
  %651 = vmatprep.mubr.f32.mxu0 0.0
  %652 = vmatmul.mubr.f32.gmra.mrb[0].mxu0 %v559
  %v653 = vpop.f32.mrb[0].mxu0
  %v654 = vadd.f32 0.0, %v653
  %v655 = vpop.f32.mrb[0].mxu0
  %656 = vmatprep.mubr.f32.mxu0 0.0
  %657 = vmatmul.mubr.f32.gmra.mrb[0].mxu0 %v560
  %v658 = vpop.f32.mrb[0].mxu0
  %v659 = vadd.f32 0.0, %v658
  %v660 = vpop.f32.mrb[0].mxu0
  %661 = vmatprep.mubr.f32.mxu0 0.0
  %662 = vmatmul.mubr.f32.gmra.mrb[0].mxu0 %v561
  %v663 = vpop.f32.mrb[0].mxu0
  %v664 = vadd.f32 0.0, %v663
  %v665 = vpop.f32.mrb[0].mxu0
  %666 = vmatprep.mubr.f32.mxu0 0.0
  %667 = vmatmul.mubr.f32.gmra.mrb[0].mxu0 %v562
  %v668 = vpop.f32.mrb[0].mxu0
  %v669 = vadd.f32 0.0, %v668
  %v670 = vpop.f32.mrb[0].mxu0
  %671 = vmatprep.mubr.f32.mxu0 0.0
  %672 = vmatmul.mubr.f32.gmra.mrb[0].mxu0 %v563
  %v673 = vpop.f32.mrb[0].mxu0
  %v674 = vadd.f32 0.0, %v673
  %v675 = vpop.f32.mrb[0].mxu0
  %676 = vmatprep.mubr.f32.mxu0 0.0
  %677 = vmatmul.mubr.f32.gmra.mrb[0].mxu0 %v564
  %v678 = vpop.f32.mrb[0].mxu0
  %v679 = vadd.f32 0.0, %v678
  %v680 = vpop.f32.mrb[0].mxu0
  %681 = vmatprep.mubr.f32.mxu0 0.0
  %682 = vmatmul.mubr.f32.gmra.mrb[0].mxu0 %v565
  %v683 = vpop.f32.mrb[0].mxu0
  %v684 = vadd.f32 0.0, %v683
  %v685 = vpop.f32.mrb[0].mxu0
  %686 = vmatprep.mubr.f32.mxu0 0.0
  %687 = vmatmul.mubr.f32.gmra.mrb[0].mxu0 %v566
  %v688 = vpop.f32.mrb[0].mxu0
  %v689 = vadd.f32 0.0, %v688
  %v690 = vpop.f32.mrb[0].mxu0
  %691 = vmatprep.mubr.f32.mxu0 0.0
  %692 = vmatmul.mubr.f32.gmra.mrb[0].mxu0 %v567
  %v693 = vpop.f32.mrb[0].mxu0
  %v694 = vadd.f32 0.0, %v693
  %v695 = vpop.f32.mrb[0].mxu0
  %696 = vmatprep.mubr.f32.mxu0 0.0
  %697 = vmatmul.mubr.f32.gmra.mrb[0].mxu0 %v568
  %v698 = vpop.f32.mrb[0].mxu0
  %v699 = vadd.f32 0.0, %v698
  %v700 = vpop.f32.mrb[0].mxu0
  %701 = vmatprep.mubr.f32.mxu0 0.0
  %702 = vmatmul.mubr.f32.gmra.mrb[0].mxu0 %v569
  %v703 = vpop.f32.mrb[0].mxu0
  %v704 = vadd.f32 0.0, %v703
  %v705 = vpop.f32.mrb[0].mxu0
  %706 = vmatprep.mubr.f32.mxu0 0.0
  %707 = vmatmul.mubr.f32.gmra.mrb[0].mxu0 %v570
  %v708 = vpop.f32.mrb[0].mxu0
  %v709 = vadd.f32 0.0, %v708
  %v710 = vpop.f32.mrb[0].mxu0
  %711 = vmatprep.mubr.f32.mxu0 0.0
  %712 = vmatmul.mubr.f32.gmra.mrb[0].mxu0 %v571
  %v713 = vpop.f32.mrb[0].mxu0
  %v714 = vadd.f32 0.0, %v713
  %v715 = vpop.f32.mrb[0].mxu0
  %716 = vdwg.mxu0
  %v717 = vadd.f32 %v539, %v639
  %v718 = vadd.f32 %v540, %v644
  %v719 = vadd.f32 %v541, %v649
  %v720 = vadd.f32 %v542, %v654
  %v721 = vadd.f32 %v543, %v659
  %v722 = vadd.f32 %v544, %v664
  %v723 = vadd.f32 %v545, %v669
  %v724 = vadd.f32 %v546, %v674
  %v725 = vadd.f32 %v547, %v679
  %v726 = vadd.f32 %v548, %v684
  %v727 = vadd.f32 %v549, %v689
  %v728 = vadd.f32 %v550, %v694
  %v729 = vadd.f32 %v551, %v699
  %v730 = vadd.f32 %v552, %v704
  %v731 = vadd.f32 %v553, %v709
  %v732 = vadd.f32 %v554, %v714
  %733 = vst [vmem:[#allocation2 + $0x10] sm:$0xff] %v717
  %734 = vst [vmem:[#allocation2 + $0x28] sm:$0xff] %v718
  %735 = vst [vmem:[#allocation2 + $0x40] sm:$0xff] %v719
  %736 = vst [vmem:[#allocation2 + $0x58] sm:$0xff] %v720
  %737 = vst [vmem:[#allocation2 + $0x70] sm:$0xff] %v721
  %738 = vst [vmem:[#allocation2 + $0x88] sm:$0xff] %v722
  %739 = vst [vmem:[#allocation2 + $0xa0] sm:$0xff] %v723
  %740 = vst [vmem:[#allocation2 + $0xb8] sm:$0xff] %v724
  %741 = vst [vmem:[#allocation2 + $0xd0] sm:$0xff] %v725
  %742 = vst [vmem:[#allocation2 + $0xe8] sm:$0xff] %v726
  %743 = vst [vmem:[#allocation2 + $0x100] sm:$0xff] %v727
  %744 = vst [vmem:[#allocation2 + $0x118] sm:$0xff] %v728
  %745 = vst [vmem:[#allocation2 + $0x130] sm:$0xff] %v729
  %746 = vst [vmem:[#allocation2 + $0x148] sm:$0xff] %v730
  %747 = vst [vmem:[#allocation2 + $0x160] sm:$0xff] %v731
  %748 = vst [vmem:[#allocation2 + $0x178] sm:$0xff] %v732
  // Predicated region
  $region18: #{multi_gcn_forward.7} parent=0 // pred_check
    %p749 = pneg %p14
  $region19: #{multi_gcn_forward.7} parent=0 // pred_check_branch
    %751 = sbr.rel (%p749) target = $region21
  $region20: #{multi_gcn_forward.7} parent=0 // pred_region
    %v752 = vld [vmem:[#allocation2] sm:$0xff]
    %v753 = vld [vmem:[#allocation2 + $0x8] sm:$0xff]
    %v754 = vld [vmem:[#allocation2 + $0x10] sm:$0xff]
    %v755 = vld [vmem:[#allocation2 + $0x18] sm:$0xff]
    %v756 = vld [vmem:[#allocation2 + $0x20] sm:$0xff]
    %v757 = vld [vmem:[#allocation2 + $0x28] sm:$0xff]
    %v758 = vld [vmem:[#allocation2 + $0x30] sm:$0xff]
    %v759 = vld [vmem:[#allocation2 + $0x38] sm:$0xff]
    %v760 = vld [vmem:[#allocation2 + $0x40] sm:$0xff]
    %v761 = vld [vmem:[#allocation2 + $0x48] sm:$0xff]
    %v762 = vld [vmem:[#allocation2 + $0x50] sm:$0xff]
    %v763 = vld [vmem:[#allocation2 + $0x58] sm:$0xff]
    %v764 = vld [vmem:[#allocation2 + $0x60] sm:$0xff]
    %v765 = vld [vmem:[#allocation2 + $0x68] sm:$0xff]
    %v766 = vld [vmem:[#allocation2 + $0x70] sm:$0xff]
    %v767 = vld [vmem:[#allocation2 + $0x78] sm:$0xff]
    %v768 = vld [vmem:[#allocation2 + $0x80] sm:$0xff]
    %v769 = vld [vmem:[#allocation2 + $0x88] sm:$0xff]
    %v770 = vld [vmem:[#allocation2 + $0x90] sm:$0xff]
    %v771 = vld [vmem:[#allocation2 + $0x98] sm:$0xff]
    %v772 = vld [vmem:[#allocation2 + $0xa0] sm:$0xff]
    %v773 = vld [vmem:[#allocation2 + $0xa8] sm:$0xff]
    %v774 = vld [vmem:[#allocation2 + $0xb0] sm:$0xff]
    %v775 = vld [vmem:[#allocation2 + $0xb8] sm:$0xff]
    %v776 = vld [vmem:[#allocation2 + $0xc0] sm:$0xff]
    %v777 = vld [vmem:[#allocation2 + $0xc8] sm:$0xff]
    %v778 = vld [vmem:[#allocation2 + $0xd0] sm:$0xff]
    %v779 = vld [vmem:[#allocation2 + $0xd8] sm:$0xff]
    %v780 = vld [vmem:[#allocation2 + $0xe0] sm:$0xff]
    %v781 = vld [vmem:[#allocation2 + $0xe8] sm:$0xff]
    %v782 = vld [vmem:[#allocation2 + $0xf0] sm:$0xff]
    %v783 = vld [vmem:[#allocation2 + $0xf8] sm:$0xff]
    %v784 = vld [vmem:[#allocation2 + $0x100] sm:$0xff]
    %v785 = vld [vmem:[#allocation2 + $0x108] sm:$0xff]
    %v786 = vld [vmem:[#allocation2 + $0x110] sm:$0xff]
    %v787 = vld [vmem:[#allocation2 + $0x118] sm:$0xff]
    %v788 = vld [vmem:[#allocation2 + $0x120] sm:$0xff]
    %v789 = vld [vmem:[#allocation2 + $0x128] sm:$0xff]
    %v790 = vld [vmem:[#allocation2 + $0x130] sm:$0xff]
    %v791 = vld [vmem:[#allocation2 + $0x138] sm:$0xff]
    %v792 = vld [vmem:[#allocation2 + $0x140] sm:$0xff]
    %v793 = vld [vmem:[#allocation2 + $0x148] sm:$0xff]
    %v794 = vld [vmem:[#allocation2 + $0x150] sm:$0xff]
    %v795 = vld [vmem:[#allocation2 + $0x158] sm:$0xff]
    %v796 = vld [vmem:[#allocation2 + $0x160] sm:$0xff]
    %v797 = vld [vmem:[#allocation2 + $0x168] sm:$0xff]
    %v798 = vld [vmem:[#allocation2 + $0x170] sm:$0xff]
    %v799 = vld [vmem:[#allocation2 + $0x178] sm:$0xff]
    %v800 = vld [vmem:[%s2] sm:$0x7]
    %v802 = vlaneseq
    %v803 = vshrl.u32 %v802, 7
    %v804 = vsub.s32 0, %v803
    %v805 = vrot.slane %v800, %v804
    %v806 = vlaneseq
    %v807 = vshrl.u32 %v806, 7
    %v808 = vsub.s32 1, %v807
    %v809 = vrot.slane %v800, %v808
    %v810 = vlaneseq
    %v811 = vshrl.u32 %v810, 7
    %v812 = vsub.s32 2, %v811
    %v813 = vrot.slane %v800, %v812
    %v817 = vadd.f32 %v752, %v805
    %v818 = vadd.f32 %v753, %v809
    %v819 = vadd.f32 %v754, %v813
    %v820 = vadd.f32 %v755, %v805
    %v821 = vadd.f32 %v756, %v809
    %v822 = vadd.f32 %v757, %v813
    %v823 = vadd.f32 %v758, %v805
    %v824 = vadd.f32 %v759, %v809
    %v825 = vadd.f32 %v760, %v813
    %v826 = vadd.f32 %v761, %v805
    %v827 = vadd.f32 %v762, %v809
    %v828 = vadd.f32 %v763, %v813
    %v829 = vadd.f32 %v764, %v805
    %v830 = vadd.f32 %v765, %v809
    %v831 = vadd.f32 %v766, %v813
    %v832 = vadd.f32 %v767, %v805
    %v833 = vadd.f32 %v768, %v809
    %v834 = vadd.f32 %v769, %v813
    %v835 = vadd.f32 %v770, %v805
    %v836 = vadd.f32 %v771, %v809
    %v837 = vadd.f32 %v772, %v813
    %v838 = vadd.f32 %v773, %v805
    %v839 = vadd.f32 %v774, %v809
    %v840 = vadd.f32 %v775, %v813
    %v841 = vadd.f32 %v776, %v805
    %v842 = vadd.f32 %v777, %v809
    %v843 = vadd.f32 %v778, %v813
    %v844 = vadd.f32 %v779, %v805
    %v845 = vadd.f32 %v780, %v809
    %v846 = vadd.f32 %v781, %v813
    %v847 = vadd.f32 %v782, %v805
    %v848 = vadd.f32 %v783, %v809
    %v849 = vadd.f32 %v784, %v813
    %v850 = vadd.f32 %v785, %v805
    %v851 = vadd.f32 %v786, %v809
    %v852 = vadd.f32 %v787, %v813
    %v853 = vadd.f32 %v788, %v805
    %v854 = vadd.f32 %v789, %v809
    %v855 = vadd.f32 %v790, %v813
    %v856 = vadd.f32 %v791, %v805
    %v857 = vadd.f32 %v792, %v809
    %v858 = vadd.f32 %v793, %v813
    %v859 = vadd.f32 %v794, %v805
    %v860 = vadd.f32 %v795, %v809
    %v861 = vadd.f32 %v796, %v813
    %v862 = vadd.f32 %v797, %v805
    %v863 = vadd.f32 %v798, %v809
    %v864 = vadd.f32 %v799, %v813
    %v865 = vmax.f32 %v817, 0.0
    %v866 = vmax.f32 %v818, 0.0
    %v867 = vmax.f32 %v819, 0.0
    %v868 = vmax.f32 %v820, 0.0
    %v869 = vmax.f32 %v821, 0.0
    %v870 = vmax.f32 %v822, 0.0
    %v871 = vmax.f32 %v823, 0.0
    %v872 = vmax.f32 %v824, 0.0
    %v873 = vmax.f32 %v825, 0.0
    %v874 = vmax.f32 %v826, 0.0
    %v875 = vmax.f32 %v827, 0.0
    %v876 = vmax.f32 %v828, 0.0
    %v877 = vmax.f32 %v829, 0.0
    %v878 = vmax.f32 %v830, 0.0
    %v879 = vmax.f32 %v831, 0.0
    %v880 = vmax.f32 %v832, 0.0
    %v881 = vmax.f32 %v833, 0.0
    %v882 = vmax.f32 %v834, 0.0
    %v883 = vmax.f32 %v835, 0.0
    %v884 = vmax.f32 %v836, 0.0
    %v885 = vmax.f32 %v837, 0.0
    %v886 = vmax.f32 %v838, 0.0
    %v887 = vmax.f32 %v839, 0.0
    %v888 = vmax.f32 %v840, 0.0
    %v889 = vmax.f32 %v841, 0.0
    %v890 = vmax.f32 %v842, 0.0
    %v891 = vmax.f32 %v843, 0.0
    %v892 = vmax.f32 %v844, 0.0
    %v893 = vmax.f32 %v845, 0.0
    %v894 = vmax.f32 %v846, 0.0
    %v895 = vmax.f32 %v847, 0.0
    %v896 = vmax.f32 %v848, 0.0
    %v897 = vmax.f32 %v849, 0.0
    %v898 = vmax.f32 %v850, 0.0
    %v899 = vmax.f32 %v851, 0.0
    %v900 = vmax.f32 %v852, 0.0
    %v901 = vmax.f32 %v853, 0.0
    %v902 = vmax.f32 %v854, 0.0
    %v903 = vmax.f32 %v855, 0.0
    %v904 = vmax.f32 %v856, 0.0
    %v905 = vmax.f32 %v857, 0.0
    %v906 = vmax.f32 %v858, 0.0
    %v907 = vmax.f32 %v859, 0.0
    %v908 = vmax.f32 %v860, 0.0
    %v909 = vmax.f32 %v861, 0.0
    %v910 = vmax.f32 %v862, 0.0
    %v911 = vmax.f32 %v863, 0.0
    %v912 = vmax.f32 %v864, 0.0
    %v913 = vadd.f32 %v865, %v866
    %v914 = vadd.f32 %v868, %v869
    %v915 = vadd.f32 %v871, %v872
    %v916 = vadd.f32 %v874, %v875
    %v917 = vadd.f32 %v877, %v878
    %v918 = vadd.f32 %v880, %v881
    %v919 = vadd.f32 %v883, %v884
    %v920 = vadd.f32 %v886, %v887
    %v921 = vadd.f32 %v889, %v890
    %v922 = vadd.f32 %v892, %v893
    %v923 = vadd.f32 %v895, %v896
    %v924 = vadd.f32 %v898, %v899
    %v925 = vadd.f32 %v901, %v902
    %v926 = vadd.f32 %v904, %v905
    %v927 = vadd.f32 %v907, %v908
    %v928 = vadd.f32 %v910, %v911
    %v929 = vadd.f32 %v913, %v867
    %v930 = vadd.f32 %v914, %v870
    %v931 = vadd.f32 %v915, %v873
    %v932 = vadd.f32 %v916, %v876
    %v933 = vadd.f32 %v917, %v879
    %v934 = vadd.f32 %v918, %v882
    %v935 = vadd.f32 %v919, %v885
    %v936 = vadd.f32 %v920, %v888
    %v937 = vadd.f32 %v921, %v891
    %v938 = vadd.f32 %v922, %v894
    %v939 = vadd.f32 %v923, %v897
    %v940 = vadd.f32 %v924, %v900
    %v941 = vadd.f32 %v925, %v903
    %v942 = vadd.f32 %v926, %v906
    %v943 = vadd.f32 %v927, %v909
    %v944 = vadd.f32 %v928, %v912
    %v945 = vmul.f32 %v929, 0.33333334
    %v946 = vmul.f32 %v930, 0.33333334
    %v947 = vmul.f32 %v931, 0.33333334
    %v948 = vmul.f32 %v932, 0.33333334
    %v949 = vmul.f32 %v933, 0.33333334
    %v950 = vmul.f32 %v934, 0.33333334
    %v951 = vmul.f32 %v935, 0.33333334
    %v952 = vmul.f32 %v936, 0.33333334
    %v953 = vmul.f32 %v937, 0.33333334
    %v954 = vmul.f32 %v938, 0.33333334
    %v955 = vmul.f32 %v939, 0.33333334
    %v956 = vmul.f32 %v940, 0.33333334
    %v957 = vmul.f32 %v941, 0.33333334
    %v958 = vmul.f32 %v942, 0.33333334
    %v959 = vmul.f32 %v943, 0.33333334
    %v960 = vmul.f32 %v944, 0.33333334
    %961 = vst [vmem:[%s3] sm:$0xff] %v945
    %962 = vst [vmem:[%s3 + $0x8] sm:$0xff] %v946
    %963 = vst [vmem:[%s3 + $0x10] sm:$0xff] %v947
    %964 = vst [vmem:[%s3 + $0x18] sm:$0xff] %v948
    %965 = vst [vmem:[%s3 + $0x20] sm:$0xff] %v949
    %966 = vst [vmem:[%s3 + $0x28] sm:$0xff] %v950
    %967 = vst [vmem:[%s3 + $0x30] sm:$0xff] %v951
    %968 = vst [vmem:[%s3 + $0x38] sm:$0xff] %v952
    %969 = vst [vmem:[%s3 + $0x40] sm:$0xff] %v953
    %970 = vst [vmem:[%s3 + $0x48] sm:$0xff] %v954
    %971 = vst [vmem:[%s3 + $0x50] sm:$0xff] %v955
    %972 = vst [vmem:[%s3 + $0x58] sm:$0xff] %v956
    %973 = vst [vmem:[%s3 + $0x60] sm:$0xff] %v957
    %974 = vst [vmem:[%s3 + $0x68] sm:$0xff] %v958
    %975 = vst [vmem:[%s3 + $0x70] sm:$0xff] %v959
    %976 = vst [vmem:[%s3 + $0x78] sm:$0xff] %v960
  $region21: #{multi_gcn_forward.7} parent=0 // pred_fallthru
    _
  // Predicated region
  $region22: #{multi_gcn_forward.7} parent=0 // pred_check
    _
  $region23: #{multi_gcn_forward.7} parent=0 // pred_check_branch
    %978 = sbr.rel (0) target = $region25
  $region24: #{multi_gcn_forward.7} parent=0 // pred_region
    _
  $region25: #{multi_gcn_forward.7} parent=0 // pred_fallthru
    _
  // Predicated region
  $region26: #{multi_gcn_forward.7} parent=0 // pred_check
    _
  $region27: #{multi_gcn_forward.7} parent=0 // pred_check_branch
    %980 = sbr.rel (0) target = $region29
  $region28: #{multi_gcn_forward.7} parent=0 // pred_region
    _
  $region29: #{multi_gcn_forward.7} parent=0 // pred_fallthru
    _

// kernel: multi_gcn_forward.5
$region0: #{multi_gcn_forward.5}
  #allocation0 [shape = 'u32[]', space=smem, size = 0x4, offset = 0x4, fixed_abs, tag = 'smem constant byte address 0x4 - core index']
  #allocation1 [shape = 'u32[144,128]{1,0:T(1,128)}', space=vmem, size = 0x12000, scoped, tag = 'internal scratch']
  #allocation2 [shape = 'f32[128,384]{1,0:T(8,128)}', space=vmem, size = 0x30000, scoped, tag = 'scratch operand']
  %s0 = inlined_call_operand.vmem [shape: f32[128,384], index: 0, kind: input, shape index: {}]
  %s1 = inlined_call_operand.vmem [shape: f32[3,128,128], index: 1, kind: input, shape index: {}]
  %s2 = inlined_call_operand.hbm [shape: f32[1,384], index: 2, kind: input, shape index: {}]
  %s3 = inlined_call_operand.vmem [shape: f32[128,384], index: 3, kind: output, shape index: {}]
  %s4 = sld [smem:[#allocation0]]
  $region34: #{multi_gcn_forward.5} parent=0
    _
  %s6 = ssub.s32 1, %s4
  %s7 = scalar_select 0, %s6, %s4
  $region1: #{multi_gcn_forward.5} parent=0
    #allocation3 [shape = 'u8[1536]{0}', space=vmem, size = 0x800, scoped, tag = 'input window, operand 2, single buffered']
    #allocation4 [shape = 's32[1]{0}', space=sflag, size = 0x4, scoped, tag = 'scoped memory for multi_gcn_forward.5']
    %8 = vsyncpa [#allocation4], 0
    // Predicated region
    $region2: #{multi_gcn_forward.5} parent=1 // pred_check
      _
    $region3: #{multi_gcn_forward.5} parent=1 // pred_check_branch
      %10 = sbr.rel (0) target = $region5
    $region4: #{multi_gcn_forward.5} parent=1 // pred_region
      _
    $region5: #{multi_gcn_forward.5} parent=1 // pred_fallthru
      _
    // Predicated region
    $region6: #{multi_gcn_forward.5} parent=1 // pred_check
      _
    $region7: #{multi_gcn_forward.5} parent=1 // pred_check_branch
      %12 = sbr.rel (0) target = $region9
    $region8: #{multi_gcn_forward.5} parent=1 // pred_region
      _
    $region9: #{multi_gcn_forward.5} parent=1 // pred_fallthru
      _
    // Predicated region
    $region10: #{multi_gcn_forward.5} parent=1 // pred_check
      _
    $region11: #{multi_gcn_forward.5} parent=1 // pred_check_branch
      %14 = sbr.rel (0) target = $region13
    $region12: #{multi_gcn_forward.5} parent=1 // pred_region
      %s16 = ssub.s32 48, 48
      %17 = vsyncadd [#allocation4], %s16
      %s19 = sshll.u32 [#allocation3], 4
      %s20 = int_to_ptr.vmem [resolvable:$true] %s19
      %22 = dma.hbm_to_vmem [thread:$0]  %s2, 48, %s20, [#allocation4]
    $region13: #{multi_gcn_forward.5} parent=1 // pred_fallthru
      _
    // Predicated region
    $region14: #{multi_gcn_forward.5} parent=1 // pred_check
      _
    $region15: #{multi_gcn_forward.5} parent=1 // pred_check_branch
      %24 = sbr.rel (0) target = $region17
    $region16: #{multi_gcn_forward.5} parent=1 // pred_region
      %25 = dma.done [#allocation4], 48
    $region17: #{multi_gcn_forward.5} parent=1 // pred_fallthru
      _
    %p26 = scmp.eq.s32.totalorder 0, 0
    // Predicated region
    $region18: #{multi_gcn_forward.5} parent=1 // pred_check
      %p27 = pneg %p26
    $region19: #{multi_gcn_forward.5} parent=1 // pred_check_branch
      %29 = sbr.rel (%p27) target = $region21
    $region20: #{multi_gcn_forward.5} parent=1 // pred_region
      %30 = vst [vmem:[#allocation2] sm:$0xff] 0.0
      %31 = vst [vmem:[#allocation2 + $0x8] sm:$0xff] 0.0
      %32 = vst [vmem:[#allocation2 + $0x10] sm:$0xff] 0.0
      %33 = vst [vmem:[#allocation2 + $0x18] sm:$0xff] 0.0
      %34 = vst [vmem:[#allocation2 + $0x20] sm:$0xff] 0.0
      %35 = vst [vmem:[#allocation2 + $0x28] sm:$0xff] 0.0
      %36 = vst [vmem:[#allocation2 + $0x30] sm:$0xff] 0.0
      %37 = vst [vmem:[#allocation2 + $0x38] sm:$0xff] 0.0
      %38 = vst [vmem:[#allocation2 + $0x40] sm:$0xff] 0.0
      %39 = vst [vmem:[#allocation2 + $0x48] sm:$0xff] 0.0
      %40 = vst [vmem:[#allocation2 + $0x50] sm:$0xff] 0.0
      %41 = vst [vmem:[#allocation2 + $0x58] sm:$0xff] 0.0
      %42 = vst [vmem:[#allocation2 + $0x60] sm:$0xff] 0.0
      %43 = vst [vmem:[#allocation2 + $0x68] sm:$0xff] 0.0
      %44 = vst [vmem:[#allocation2 + $0x70] sm:$0xff] 0.0
      %45 = vst [vmem:[#allocation2 + $0x78] sm:$0xff] 0.0
      %46 = vst [vmem:[#allocation2 + $0x80] sm:$0xff] 0.0
      %47 = vst [vmem:[#allocation2 + $0x88] sm:$0xff] 0.0
      %48 = vst [vmem:[#allocation2 + $0x90] sm:$0xff] 0.0
      %49 = vst [vmem:[#allocation2 + $0x98] sm:$0xff] 0.0
      %50 = vst [vmem:[#allocation2 + $0xa0] sm:$0xff] 0.0
      %51 = vst [vmem:[#allocation2 + $0xa8] sm:$0xff] 0.0
      %52 = vst [vmem:[#allocation2 + $0xb0] sm:$0xff] 0.0
      %53 = vst [vmem:[#allocation2 + $0xb8] sm:$0xff] 0.0
      %54 = vst [vmem:[#allocation2 + $0xc0] sm:$0xff] 0.0
      %55 = vst [vmem:[#allocation2 + $0xc8] sm:$0xff] 0.0
      %56 = vst [vmem:[#allocation2 + $0xd0] sm:$0xff] 0.0
      %57 = vst [vmem:[#allocation2 + $0xd8] sm:$0xff] 0.0
      %58 = vst [vmem:[#allocation2 + $0xe0] sm:$0xff] 0.0
      %59 = vst [vmem:[#allocation2 + $0xe8] sm:$0xff] 0.0
      %60 = vst [vmem:[#allocation2 + $0xf0] sm:$0xff] 0.0
      %61 = vst [vmem:[#allocation2 + $0xf8] sm:$0xff] 0.0
      %62 = vst [vmem:[#allocation2 + $0x100] sm:$0xff] 0.0
      %63 = vst [vmem:[#allocation2 + $0x108] sm:$0xff] 0.0
      %64 = vst [vmem:[#allocation2 + $0x110] sm:$0xff] 0.0
      %65 = vst [vmem:[#allocation2 + $0x118] sm:$0xff] 0.0
      %66 = vst [vmem:[#allocation2 + $0x120] sm:$0xff] 0.0
      %67 = vst [vmem:[#allocation2 + $0x128] sm:$0xff] 0.0
      %68 = vst [vmem:[#allocation2 + $0x130] sm:$0xff] 0.0
      %69 = vst [vmem:[#allocation2 + $0x138] sm:$0xff] 0.0
      %70 = vst [vmem:[#allocation2 + $0x140] sm:$0xff] 0.0
      %71 = vst [vmem:[#allocation2 + $0x148] sm:$0xff] 0.0
      %72 = vst [vmem:[#allocation2 + $0x150] sm:$0xff] 0.0
      %73 = vst [vmem:[#allocation2 + $0x158] sm:$0xff] 0.0
      %74 = vst [vmem:[#allocation2 + $0x160] sm:$0xff] 0.0
      %75 = vst [vmem:[#allocation2 + $0x168] sm:$0xff] 0.0
      %76 = vst [vmem:[#allocation2 + $0x170] sm:$0xff] 0.0
      %77 = vst [vmem:[#allocation2 + $0x178] sm:$0xff] 0.0
    $region21: #{multi_gcn_forward.5} parent=1 // pred_fallthru
      _
    %s78 = smul.u32 0, 128
    %s79 = sshra.s32 %s78, 3
    %s80 = sand.u32 %s78, 7
    %s81 = smul.u32 %s79, 3
    %s82 = smul.addr %s81, 8
    %s83 = scalar_lea.vmem %s0, %s82
    %v84 = vld [vmem:[%s83] sm:$0xff]
    %v85 = vld [vmem:[%s83 + $0x18] sm:$0xff]
    %v86 = vld [vmem:[%s83 + $0x30] sm:$0xff]
    %v87 = vld [vmem:[%s83 + $0x48] sm:$0xff]
    %v88 = vld [vmem:[%s83 + $0x60] sm:$0xff]
    %v89 = vld [vmem:[%s83 + $0x78] sm:$0xff]
    %v90 = vld [vmem:[%s83 + $0x90] sm:$0xff]
    %v91 = vld [vmem:[%s83 + $0xa8] sm:$0xff]
    %v92 = vld [vmem:[%s83 + $0xc0] sm:$0xff]
    %v93 = vld [vmem:[%s83 + $0xd8] sm:$0xff]
    %v94 = vld [vmem:[%s83 + $0xf0] sm:$0xff]
    %v95 = vld [vmem:[%s83 + $0x108] sm:$0xff]
    %v96 = vld [vmem:[%s83 + $0x120] sm:$0xff]
    %v97 = vld [vmem:[%s83 + $0x138] sm:$0xff]
    %v98 = vld [vmem:[%s83 + $0x150] sm:$0xff]
    %v99 = vld [vmem:[%s83 + $0x168] sm:$0xff]
    %v100 = vld [vmem:[#allocation2] sm:$0xff]
    %v101 = vld [vmem:[#allocation2 + $0x18] sm:$0xff]
    %v102 = vld [vmem:[#allocation2 + $0x30] sm:$0xff]
    %v103 = vld [vmem:[#allocation2 + $0x48] sm:$0xff]
    %v104 = vld [vmem:[#allocation2 + $0x60] sm:$0xff]
    %v105 = vld [vmem:[#allocation2 + $0x78] sm:$0xff]
    %v106 = vld [vmem:[#allocation2 + $0x90] sm:$0xff]
    %v107 = vld [vmem:[#allocation2 + $0xa8] sm:$0xff]
    %v108 = vld [vmem:[#allocation2 + $0xc0] sm:$0xff]
    %v109 = vld [vmem:[#allocation2 + $0xd8] sm:$0xff]
    %v110 = vld [vmem:[#allocation2 + $0xf0] sm:$0xff]
    %v111 = vld [vmem:[#allocation2 + $0x108] sm:$0xff]
    %v112 = vld [vmem:[#allocation2 + $0x120] sm:$0xff]
    %v113 = vld [vmem:[#allocation2 + $0x138] sm:$0xff]
    %v114 = vld [vmem:[#allocation2 + $0x150] sm:$0xff]
    %v115 = vld [vmem:[#allocation2 + $0x168] sm:$0xff]
    %v116 = vld [vmem:[%s1] sm:$0xff]
    %v117 = vld [vmem:[%s1 + $0x8] sm:$0xff]
    %v118 = vld [vmem:[%s1 + $0x10] sm:$0xff]
    %v119 = vld [vmem:[%s1 + $0x18] sm:$0xff]
    %v120 = vld [vmem:[%s1 + $0x20] sm:$0xff]
    %v121 = vld [vmem:[%s1 + $0x28] sm:$0xff]
    %v122 = vld [vmem:[%s1 + $0x30] sm:$0xff]
    %v123 = vld [vmem:[%s1 + $0x38] sm:$0xff]
    %v124 = vld [vmem:[%s1 + $0x40] sm:$0xff]
    %v125 = vld [vmem:[%s1 + $0x48] sm:$0xff]
    %v126 = vld [vmem:[%s1 + $0x50] sm:$0xff]
    %v127 = vld [vmem:[%s1 + $0x58] sm:$0xff]
    %v128 = vld [vmem:[%s1 + $0x60] sm:$0xff]
    %v129 = vld [vmem:[%s1 + $0x68] sm:$0xff]
    %v130 = vld [vmem:[%s1 + $0x70] sm:$0xff]
    %v131 = vld [vmem:[%s1 + $0x78] sm:$0xff]
    %132 = vmatprep.subr.mxu0 0.0
    %133 = vmatpush1.msra.mxu0 %v84
    %134 = vmatprep.subr.mxu0 0.0
    %135 = vmatpush1.msra.mxu0 %v85
    %136 = vmatprep.subr.mxu0 0.0
    %137 = vmatpush1.msra.mxu0 %v86
    %138 = vmatprep.subr.mxu0 0.0
    %139 = vmatpush1.msra.mxu0 %v87
    %140 = vmatprep.subr.mxu0 0.0
    %141 = vmatpush1.msra.mxu0 %v88
    %142 = vmatprep.subr.mxu0 0.0
    %143 = vmatpush1.msra.mxu0 %v89
    %144 = vmatprep.subr.mxu0 0.0
    %145 = vmatpush1.msra.mxu0 %v90
    %146 = vmatprep.subr.mxu0 0.0
    %147 = vmatpush1.msra.mxu0 %v91
    %148 = vmatprep.subr.mxu0 0.0
    %149 = vmatpush1.msra.mxu0 %v92
    %150 = vmatprep.subr.mxu0 0.0
    %151 = vmatpush1.msra.mxu0 %v93
    %152 = vmatprep.subr.mxu0 0.0
    %153 = vmatpush1.msra.mxu0 %v94
    %154 = vmatprep.subr.mxu0 0.0
    %155 = vmatpush1.msra.mxu0 %v95
    %156 = vmatprep.subr.mxu0 0.0
    %157 = vmatpush1.msra.mxu0 %v96
    %158 = vmatprep.subr.mxu0 0.0
    %159 = vmatpush1.msra.mxu0 %v97
    %160 = vmatprep.subr.mxu0 0.0
    %161 = vmatpush1.msra.mxu0 %v98
    %162 = vmatprep.subr.mxu0 0.0
    %163 = vmatpush1.msra.mxu0 %v99
    %164 = vmatprep.subr.mxu0 0.0
    %165 = vmatpush1.msra.mxu0 0.0
    %166 = vmatprep.subr.mxu0 0.0
    %167 = vmatpush1.msra.mxu0 0.0
    %168 = vmatprep.subr.mxu0 0.0
    %169 = vmatpush1.msra.mxu0 0.0
    %170 = vmatprep.subr.mxu0 0.0
    %171 = vmatpush1.msra.mxu0 0.0
    %172 = vmatprep.subr.mxu0 0.0
    %173 = vmatpush1.msra.mxu0 0.0
    %174 = vmatprep.subr.mxu0 0.0
    %175 = vmatpush1.msra.mxu0 0.0
    %176 = vmatprep.subr.mxu0 0.0
    %177 = vmatpush1.msra.mxu0 0.0
    %178 = vmatprep.subr.mxu0 0.0
    %179 = vmatpush1.msra.mxu0 0.0
    %180 = vmatprep.subr.mxu0 0.0
    %181 = vmatpush1.msra.mxu0 0.0
    %182 = vmatprep.subr.mxu0 0.0
    %183 = vmatpush1.msra.mxu0 0.0
    %184 = vmatprep.subr.mxu0 0.0
    %185 = vmatpush1.msra.mxu0 0.0
    %186 = vmatprep.subr.mxu0 0.0
    %187 = vmatpush1.msra.mxu0 0.0
    %188 = vmatprep.subr.mxu0 0.0
    %189 = vmatpush1.msra.mxu0 0.0
    %190 = vmatprep.subr.mxu0 0.0
    %191 = vmatpush1.msra.mxu0 0.0
    %192 = vmatprep.subr.mxu0 0.0
    %193 = vmatpush1.msra.mxu0 0.0
    %194 = vmatprep.subr.mxu0 0.0
    %195 = vmatpush1.msra.mxu0 0.0
    %196 = vmatprep.mubr.f32.mxu0 0.0
    %197 = vmatmul.mubr.f32.gmra.mrb[0].mxu0 %v116
    %v198 = vpop.f32.mrb[0].mxu0
    %v199 = vadd.f32 0.0, %v198
    %v200 = vpop.f32.mrb[0].mxu0
    %201 = vmatprep.mubr.f32.mxu0 0.0
    %202 = vmatmul.mubr.f32.gmra.mrb[0].mxu0 %v117
    %v203 = vpop.f32.mrb[0].mxu0
    %v204 = vadd.f32 0.0, %v203
    %v205 = vpop.f32.mrb[0].mxu0
    %206 = vmatprep.mubr.f32.mxu0 0.0
    %207 = vmatmul.mubr.f32.gmra.mrb[0].mxu0 %v118
    %v208 = vpop.f32.mrb[0].mxu0
    %v209 = vadd.f32 0.0, %v208
    %v210 = vpop.f32.mrb[0].mxu0
    %211 = vmatprep.mubr.f32.mxu0 0.0
    %212 = vmatmul.mubr.f32.gmra.mrb[0].mxu0 %v119
    %v213 = vpop.f32.mrb[0].mxu0
    %v214 = vadd.f32 0.0, %v213
    %v215 = vpop.f32.mrb[0].mxu0
    %216 = vmatprep.mubr.f32.mxu0 0.0
    %217 = vmatmul.mubr.f32.gmra.mrb[0].mxu0 %v120
    %v218 = vpop.f32.mrb[0].mxu0
    %v219 = vadd.f32 0.0, %v218
    %v220 = vpop.f32.mrb[0].mxu0
    %221 = vmatprep.mubr.f32.mxu0 0.0
    %222 = vmatmul.mubr.f32.gmra.mrb[0].mxu0 %v121
    %v223 = vpop.f32.mrb[0].mxu0
    %v224 = vadd.f32 0.0, %v223
    %v225 = vpop.f32.mrb[0].mxu0
    %226 = vmatprep.mubr.f32.mxu0 0.0
    %227 = vmatmul.mubr.f32.gmra.mrb[0].mxu0 %v122
    %v228 = vpop.f32.mrb[0].mxu0
    %v229 = vadd.f32 0.0, %v228
    %v230 = vpop.f32.mrb[0].mxu0
    %231 = vmatprep.mubr.f32.mxu0 0.0
    %232 = vmatmul.mubr.f32.gmra.mrb[0].mxu0 %v123
    %v233 = vpop.f32.mrb[0].mxu0
    %v234 = vadd.f32 0.0, %v233
    %v235 = vpop.f32.mrb[0].mxu0
    %236 = vmatprep.mubr.f32.mxu0 0.0
    %237 = vmatmul.mubr.f32.gmra.mrb[0].mxu0 %v124
    %v238 = vpop.f32.mrb[0].mxu0
    %v239 = vadd.f32 0.0, %v238
    %v240 = vpop.f32.mrb[0].mxu0
    %241 = vmatprep.mubr.f32.mxu0 0.0
    %242 = vmatmul.mubr.f32.gmra.mrb[0].mxu0 %v125
    %v243 = vpop.f32.mrb[0].mxu0
    %v244 = vadd.f32 0.0, %v243
    %v245 = vpop.f32.mrb[0].mxu0
    %246 = vmatprep.mubr.f32.mxu0 0.0
    %247 = vmatmul.mubr.f32.gmra.mrb[0].mxu0 %v126
    %v248 = vpop.f32.mrb[0].mxu0
    %v249 = vadd.f32 0.0, %v248
    %v250 = vpop.f32.mrb[0].mxu0
    %251 = vmatprep.mubr.f32.mxu0 0.0
    %252 = vmatmul.mubr.f32.gmra.mrb[0].mxu0 %v127
    %v253 = vpop.f32.mrb[0].mxu0
    %v254 = vadd.f32 0.0, %v253
    %v255 = vpop.f32.mrb[0].mxu0
    %256 = vmatprep.mubr.f32.mxu0 0.0
    %257 = vmatmul.mubr.f32.gmra.mrb[0].mxu0 %v128
    %v258 = vpop.f32.mrb[0].mxu0
    %v259 = vadd.f32 0.0, %v258
    %v260 = vpop.f32.mrb[0].mxu0
    %261 = vmatprep.mubr.f32.mxu0 0.0
    %262 = vmatmul.mubr.f32.gmra.mrb[0].mxu0 %v129
    %v263 = vpop.f32.mrb[0].mxu0
    %v264 = vadd.f32 0.0, %v263
    %v265 = vpop.f32.mrb[0].mxu0
    %266 = vmatprep.mubr.f32.mxu0 0.0
    %267 = vmatmul.mubr.f32.gmra.mrb[0].mxu0 %v130
    %v268 = vpop.f32.mrb[0].mxu0
    %v269 = vadd.f32 0.0, %v268
    %v270 = vpop.f32.mrb[0].mxu0
    %271 = vmatprep.mubr.f32.mxu0 0.0
    %272 = vmatmul.mubr.f32.gmra.mrb[0].mxu0 %v131
    %v273 = vpop.f32.mrb[0].mxu0
    %v274 = vadd.f32 0.0, %v273
    %v275 = vpop.f32.mrb[0].mxu0
    %276 = vdwg.mxu0
    %v277 = vadd.f32 %v100, %v199
    %v278 = vadd.f32 %v101, %v204
    %v279 = vadd.f32 %v102, %v209
    %v280 = vadd.f32 %v103, %v214
    %v281 = vadd.f32 %v104, %v219
    %v282 = vadd.f32 %v105, %v224
    %v283 = vadd.f32 %v106, %v229
    %v284 = vadd.f32 %v107, %v234
    %v285 = vadd.f32 %v108, %v239
    %v286 = vadd.f32 %v109, %v244
    %v287 = vadd.f32 %v110, %v249
    %v288 = vadd.f32 %v111, %v254
    %v289 = vadd.f32 %v112, %v259
    %v290 = vadd.f32 %v113, %v264
    %v291 = vadd.f32 %v114, %v269
    %v292 = vadd.f32 %v115, %v274
    %293 = vst [vmem:[#allocation2] sm:$0xff] %v277
    %294 = vst [vmem:[#allocation2 + $0x18] sm:$0xff] %v278
    %295 = vst [vmem:[#allocation2 + $0x30] sm:$0xff] %v279
    %296 = vst [vmem:[#allocation2 + $0x48] sm:$0xff] %v280
    %297 = vst [vmem:[#allocation2 + $0x60] sm:$0xff] %v281
    %298 = vst [vmem:[#allocation2 + $0x78] sm:$0xff] %v282
    %299 = vst [vmem:[#allocation2 + $0x90] sm:$0xff] %v283
    %300 = vst [vmem:[#allocation2 + $0xa8] sm:$0xff] %v284
    %301 = vst [vmem:[#allocation2 + $0xc0] sm:$0xff] %v285
    %302 = vst [vmem:[#allocation2 + $0xd8] sm:$0xff] %v286
    %303 = vst [vmem:[#allocation2 + $0xf0] sm:$0xff] %v287
    %304 = vst [vmem:[#allocation2 + $0x108] sm:$0xff] %v288
    %305 = vst [vmem:[#allocation2 + $0x120] sm:$0xff] %v289
    %306 = vst [vmem:[#allocation2 + $0x138] sm:$0xff] %v290
    %307 = vst [vmem:[#allocation2 + $0x150] sm:$0xff] %v291
    %308 = vst [vmem:[#allocation2 + $0x168] sm:$0xff] %v292
    %v309 = vld [vmem:[%s83 + $0x8] sm:$0xff]
    %v310 = vld [vmem:[%s83 + $0x20] sm:$0xff]
    %v311 = vld [vmem:[%s83 + $0x38] sm:$0xff]
    %v312 = vld [vmem:[%s83 + $0x50] sm:$0xff]
    %v313 = vld [vmem:[%s83 + $0x68] sm:$0xff]
    %v314 = vld [vmem:[%s83 + $0x80] sm:$0xff]
    %v315 = vld [vmem:[%s83 + $0x98] sm:$0xff]
    %v316 = vld [vmem:[%s83 + $0xb0] sm:$0xff]
    %v317 = vld [vmem:[%s83 + $0xc8] sm:$0xff]
    %v318 = vld [vmem:[%s83 + $0xe0] sm:$0xff]
    %v319 = vld [vmem:[%s83 + $0xf8] sm:$0xff]
    %v320 = vld [vmem:[%s83 + $0x110] sm:$0xff]
    %v321 = vld [vmem:[%s83 + $0x128] sm:$0xff]
    %v322 = vld [vmem:[%s83 + $0x140] sm:$0xff]
    %v323 = vld [vmem:[%s83 + $0x158] sm:$0xff]
    %v324 = vld [vmem:[%s83 + $0x170] sm:$0xff]
    %v325 = vld [vmem:[#allocation2 + $0x8] sm:$0xff]
    %v326 = vld [vmem:[#allocation2 + $0x20] sm:$0xff]
    %v327 = vld [vmem:[#allocation2 + $0x38] sm:$0xff]
    %v328 = vld [vmem:[#allocation2 + $0x50] sm:$0xff]
    %v329 = vld [vmem:[#allocation2 + $0x68] sm:$0xff]
    %v330 = vld [vmem:[#allocation2 + $0x80] sm:$0xff]
    %v331 = vld [vmem:[#allocation2 + $0x98] sm:$0xff]
    %v332 = vld [vmem:[#allocation2 + $0xb0] sm:$0xff]
    %v333 = vld [vmem:[#allocation2 + $0xc8] sm:$0xff]
    %v334 = vld [vmem:[#allocation2 + $0xe0] sm:$0xff]
    %v335 = vld [vmem:[#allocation2 + $0xf8] sm:$0xff]
    %v336 = vld [vmem:[#allocation2 + $0x110] sm:$0xff]
    %v337 = vld [vmem:[#allocation2 + $0x128] sm:$0xff]
    %v338 = vld [vmem:[#allocation2 + $0x140] sm:$0xff]
    %v339 = vld [vmem:[#allocation2 + $0x158] sm:$0xff]
    %v340 = vld [vmem:[#allocation2 + $0x170] sm:$0xff]
    %s341 = scalar_lea.vmem %s1, 128
    %v342 = vld [vmem:[%s341] sm:$0xff]
    %v343 = vld [vmem:[%s341 + $0x8] sm:$0xff]
    %v344 = vld [vmem:[%s341 + $0x10] sm:$0xff]
    %v345 = vld [vmem:[%s341 + $0x18] sm:$0xff]
    %v346 = vld [vmem:[%s341 + $0x20] sm:$0xff]
    %v347 = vld [vmem:[%s341 + $0x28] sm:$0xff]
    %v348 = vld [vmem:[%s341 + $0x30] sm:$0xff]
    %v349 = vld [vmem:[%s341 + $0x38] sm:$0xff]
    %v350 = vld [vmem:[%s341 + $0x40] sm:$0xff]
    %v351 = vld [vmem:[%s341 + $0x48] sm:$0xff]
    %v352 = vld [vmem:[%s341 + $0x50] sm:$0xff]
    %v353 = vld [vmem:[%s341 + $0x58] sm:$0xff]
    %v354 = vld [vmem:[%s341 + $0x60] sm:$0xff]
    %v355 = vld [vmem:[%s341 + $0x68] sm:$0xff]
    %v356 = vld [vmem:[%s341 + $0x70] sm:$0xff]
    %v357 = vld [vmem:[%s341 + $0x78] sm:$0xff]
    %358 = vmatprep.subr.mxu0 0.0
    %359 = vmatpush1.msra.mxu0 %v309
    %360 = vmatprep.subr.mxu0 0.0
    %361 = vmatpush1.msra.mxu0 %v310
    %362 = vmatprep.subr.mxu0 0.0
    %363 = vmatpush1.msra.mxu0 %v311
    %364 = vmatprep.subr.mxu0 0.0
    %365 = vmatpush1.msra.mxu0 %v312
    %366 = vmatprep.subr.mxu0 0.0
    %367 = vmatpush1.msra.mxu0 %v313
    %368 = vmatprep.subr.mxu0 0.0
    %369 = vmatpush1.msra.mxu0 %v314
    %370 = vmatprep.subr.mxu0 0.0
    %371 = vmatpush1.msra.mxu0 %v315
    %372 = vmatprep.subr.mxu0 0.0
    %373 = vmatpush1.msra.mxu0 %v316
    %374 = vmatprep.subr.mxu0 0.0
    %375 = vmatpush1.msra.mxu0 %v317
    %376 = vmatprep.subr.mxu0 0.0
    %377 = vmatpush1.msra.mxu0 %v318
    %378 = vmatprep.subr.mxu0 0.0
    %379 = vmatpush1.msra.mxu0 %v319
    %380 = vmatprep.subr.mxu0 0.0
    %381 = vmatpush1.msra.mxu0 %v320
    %382 = vmatprep.subr.mxu0 0.0
    %383 = vmatpush1.msra.mxu0 %v321
    %384 = vmatprep.subr.mxu0 0.0
    %385 = vmatpush1.msra.mxu0 %v322
    %386 = vmatprep.subr.mxu0 0.0
    %387 = vmatpush1.msra.mxu0 %v323
    %388 = vmatprep.subr.mxu0 0.0
    %389 = vmatpush1.msra.mxu0 %v324
    %390 = vmatprep.subr.mxu0 0.0
    %391 = vmatpush1.msra.mxu0 0.0
    %392 = vmatprep.subr.mxu0 0.0
    %393 = vmatpush1.msra.mxu0 0.0
    %394 = vmatprep.subr.mxu0 0.0
    %395 = vmatpush1.msra.mxu0 0.0
    %396 = vmatprep.subr.mxu0 0.0
    %397 = vmatpush1.msra.mxu0 0.0
    %398 = vmatprep.subr.mxu0 0.0
    %399 = vmatpush1.msra.mxu0 0.0
    %400 = vmatprep.subr.mxu0 0.0
    %401 = vmatpush1.msra.mxu0 0.0
    %402 = vmatprep.subr.mxu0 0.0
    %403 = vmatpush1.msra.mxu0 0.0
    %404 = vmatprep.subr.mxu0 0.0
    %405 = vmatpush1.msra.mxu0 0.0
    %406 = vmatprep.subr.mxu0 0.0
    %407 = vmatpush1.msra.mxu0 0.0
    %408 = vmatprep.subr.mxu0 0.0
    %409 = vmatpush1.msra.mxu0 0.0
    %410 = vmatprep.subr.mxu0 0.0
    %411 = vmatpush1.msra.mxu0 0.0
    %412 = vmatprep.subr.mxu0 0.0
    %413 = vmatpush1.msra.mxu0 0.0
    %414 = vmatprep.subr.mxu0 0.0
    %415 = vmatpush1.msra.mxu0 0.0
    %416 = vmatprep.subr.mxu0 0.0
    %417 = vmatpush1.msra.mxu0 0.0
    %418 = vmatprep.subr.mxu0 0.0
    %419 = vmatpush1.msra.mxu0 0.0
    %420 = vmatprep.subr.mxu0 0.0
    %421 = vmatpush1.msra.mxu0 0.0
    %422 = vmatprep.mubr.f32.mxu0 0.0
    %423 = vmatmul.mubr.f32.gmra.mrb[0].mxu0 %v342
    %v424 = vpop.f32.mrb[0].mxu0
    %v425 = vadd.f32 0.0, %v424
    %v426 = vpop.f32.mrb[0].mxu0
    %427 = vmatprep.mubr.f32.mxu0 0.0
    %428 = vmatmul.mubr.f32.gmra.mrb[0].mxu0 %v343
    %v429 = vpop.f32.mrb[0].mxu0
    %v430 = vadd.f32 0.0, %v429
    %v431 = vpop.f32.mrb[0].mxu0
    %432 = vmatprep.mubr.f32.mxu0 0.0
    %433 = vmatmul.mubr.f32.gmra.mrb[0].mxu0 %v344
    %v434 = vpop.f32.mrb[0].mxu0
    %v435 = vadd.f32 0.0, %v434
    %v436 = vpop.f32.mrb[0].mxu0
    %437 = vmatprep.mubr.f32.mxu0 0.0
    %438 = vmatmul.mubr.f32.gmra.mrb[0].mxu0 %v345
    %v439 = vpop.f32.mrb[0].mxu0
    %v440 = vadd.f32 0.0, %v439
    %v441 = vpop.f32.mrb[0].mxu0
    %442 = vmatprep.mubr.f32.mxu0 0.0
    %443 = vmatmul.mubr.f32.gmra.mrb[0].mxu0 %v346
    %v444 = vpop.f32.mrb[0].mxu0
    %v445 = vadd.f32 0.0, %v444
    %v446 = vpop.f32.mrb[0].mxu0
    %447 = vmatprep.mubr.f32.mxu0 0.0
    %448 = vmatmul.mubr.f32.gmra.mrb[0].mxu0 %v347
    %v449 = vpop.f32.mrb[0].mxu0
    %v450 = vadd.f32 0.0, %v449
    %v451 = vpop.f32.mrb[0].mxu0
    %452 = vmatprep.mubr.f32.mxu0 0.0
    %453 = vmatmul.mubr.f32.gmra.mrb[0].mxu0 %v348
    %v454 = vpop.f32.mrb[0].mxu0
    %v455 = vadd.f32 0.0, %v454
    %v456 = vpop.f32.mrb[0].mxu0
    %457 = vmatprep.mubr.f32.mxu0 0.0
    %458 = vmatmul.mubr.f32.gmra.mrb[0].mxu0 %v349
    %v459 = vpop.f32.mrb[0].mxu0
    %v460 = vadd.f32 0.0, %v459
    %v461 = vpop.f32.mrb[0].mxu0
    %462 = vmatprep.mubr.f32.mxu0 0.0
    %463 = vmatmul.mubr.f32.gmra.mrb[0].mxu0 %v350
    %v464 = vpop.f32.mrb[0].mxu0
    %v465 = vadd.f32 0.0, %v464
    %v466 = vpop.f32.mrb[0].mxu0
    %467 = vmatprep.mubr.f32.mxu0 0.0
    %468 = vmatmul.mubr.f32.gmra.mrb[0].mxu0 %v351
    %v469 = vpop.f32.mrb[0].mxu0
    %v470 = vadd.f32 0.0, %v469
    %v471 = vpop.f32.mrb[0].mxu0
    %472 = vmatprep.mubr.f32.mxu0 0.0
    %473 = vmatmul.mubr.f32.gmra.mrb[0].mxu0 %v352
    %v474 = vpop.f32.mrb[0].mxu0
    %v475 = vadd.f32 0.0, %v474
    %v476 = vpop.f32.mrb[0].mxu0
    %477 = vmatprep.mubr.f32.mxu0 0.0
    %478 = vmatmul.mubr.f32.gmra.mrb[0].mxu0 %v353
    %v479 = vpop.f32.mrb[0].mxu0
    %v480 = vadd.f32 0.0, %v479
    %v481 = vpop.f32.mrb[0].mxu0
    %482 = vmatprep.mubr.f32.mxu0 0.0
    %483 = vmatmul.mubr.f32.gmra.mrb[0].mxu0 %v354
    %v484 = vpop.f32.mrb[0].mxu0
    %v485 = vadd.f32 0.0, %v484
    %v486 = vpop.f32.mrb[0].mxu0
    %487 = vmatprep.mubr.f32.mxu0 0.0
    %488 = vmatmul.mubr.f32.gmra.mrb[0].mxu0 %v355
    %v489 = vpop.f32.mrb[0].mxu0
    %v490 = vadd.f32 0.0, %v489
    %v491 = vpop.f32.mrb[0].mxu0
    %492 = vmatprep.mubr.f32.mxu0 0.0
    %493 = vmatmul.mubr.f32.gmra.mrb[0].mxu0 %v356
    %v494 = vpop.f32.mrb[0].mxu0
    %v495 = vadd.f32 0.0, %v494
    %v496 = vpop.f32.mrb[0].mxu0
    %497 = vmatprep.mubr.f32.mxu0 0.0
    %498 = vmatmul.mubr.f32.gmra.mrb[0].mxu0 %v357
    %v499 = vpop.f32.mrb[0].mxu0
    %v500 = vadd.f32 0.0, %v499
    %v501 = vpop.f32.mrb[0].mxu0
    %502 = vdwg.mxu0
    %v503 = vadd.f32 %v325, %v425
    %v504 = vadd.f32 %v326, %v430
    %v505 = vadd.f32 %v327, %v435
    %v506 = vadd.f32 %v328, %v440
    %v507 = vadd.f32 %v329, %v445
    %v508 = vadd.f32 %v330, %v450
    %v509 = vadd.f32 %v331, %v455
    %v510 = vadd.f32 %v332, %v460
    %v511 = vadd.f32 %v333, %v465
    %v512 = vadd.f32 %v334, %v470
    %v513 = vadd.f32 %v335, %v475
    %v514 = vadd.f32 %v336, %v480
    %v515 = vadd.f32 %v337, %v485
    %v516 = vadd.f32 %v338, %v490
    %v517 = vadd.f32 %v339, %v495
    %v518 = vadd.f32 %v340, %v500
    %519 = vst [vmem:[#allocation2 + $0x8] sm:$0xff] %v503
    %520 = vst [vmem:[#allocation2 + $0x20] sm:$0xff] %v504
    %521 = vst [vmem:[#allocation2 + $0x38] sm:$0xff] %v505
    %522 = vst [vmem:[#allocation2 + $0x50] sm:$0xff] %v506
    %523 = vst [vmem:[#allocation2 + $0x68] sm:$0xff] %v507
    %524 = vst [vmem:[#allocation2 + $0x80] sm:$0xff] %v508
    %525 = vst [vmem:[#allocation2 + $0x98] sm:$0xff] %v509
    %526 = vst [vmem:[#allocation2 + $0xb0] sm:$0xff] %v510
    %527 = vst [vmem:[#allocation2 + $0xc8] sm:$0xff] %v511
    %528 = vst [vmem:[#allocation2 + $0xe0] sm:$0xff] %v512
    %529 = vst [vmem:[#allocation2 + $0xf8] sm:$0xff] %v513
    %530 = vst [vmem:[#allocation2 + $0x110] sm:$0xff] %v514
    %531 = vst [vmem:[#allocation2 + $0x128] sm:$0xff] %v515
    %532 = vst [vmem:[#allocation2 + $0x140] sm:$0xff] %v516
    %533 = vst [vmem:[#allocation2 + $0x158] sm:$0xff] %v517
    %534 = vst [vmem:[#allocation2 + $0x170] sm:$0xff] %v518
    %v535 = vld [vmem:[%s83 + $0x10] sm:$0xff]
    %v536 = vld [vmem:[%s83 + $0x28] sm:$0xff]
    %v537 = vld [vmem:[%s83 + $0x40] sm:$0xff]
    %v538 = vld [vmem:[%s83 + $0x58] sm:$0xff]
    %v539 = vld [vmem:[%s83 + $0x70] sm:$0xff]
    %v540 = vld [vmem:[%s83 + $0x88] sm:$0xff]
    %v541 = vld [vmem:[%s83 + $0xa0] sm:$0xff]
    %v542 = vld [vmem:[%s83 + $0xb8] sm:$0xff]
    %v543 = vld [vmem:[%s83 + $0xd0] sm:$0xff]
    %v544 = vld [vmem:[%s83 + $0xe8] sm:$0xff]
    %v545 = vld [vmem:[%s83 + $0x100] sm:$0xff]
    %v546 = vld [vmem:[%s83 + $0x118] sm:$0xff]
    %v547 = vld [vmem:[%s83 + $0x130] sm:$0xff]
    %v548 = vld [vmem:[%s83 + $0x148] sm:$0xff]
    %v549 = vld [vmem:[%s83 + $0x160] sm:$0xff]
    %v550 = vld [vmem:[%s83 + $0x178] sm:$0xff]
    %v551 = vld [vmem:[#allocation2 + $0x10] sm:$0xff]
    %v552 = vld [vmem:[#allocation2 + $0x28] sm:$0xff]
    %v553 = vld [vmem:[#allocation2 + $0x40] sm:$0xff]
    %v554 = vld [vmem:[#allocation2 + $0x58] sm:$0xff]
    %v555 = vld [vmem:[#allocation2 + $0x70] sm:$0xff]
    %v556 = vld [vmem:[#allocation2 + $0x88] sm:$0xff]
    %v557 = vld [vmem:[#allocation2 + $0xa0] sm:$0xff]
    %v558 = vld [vmem:[#allocation2 + $0xb8] sm:$0xff]
    %v559 = vld [vmem:[#allocation2 + $0xd0] sm:$0xff]
    %v560 = vld [vmem:[#allocation2 + $0xe8] sm:$0xff]
    %v561 = vld [vmem:[#allocation2 + $0x100] sm:$0xff]
    %v562 = vld [vmem:[#allocation2 + $0x118] sm:$0xff]
    %v563 = vld [vmem:[#allocation2 + $0x130] sm:$0xff]
    %v564 = vld [vmem:[#allocation2 + $0x148] sm:$0xff]
    %v565 = vld [vmem:[#allocation2 + $0x160] sm:$0xff]
    %v566 = vld [vmem:[#allocation2 + $0x178] sm:$0xff]
    %s567 = scalar_lea.vmem %s1, 256
    %v568 = vld [vmem:[%s567] sm:$0xff]
    %v569 = vld [vmem:[%s567 + $0x8] sm:$0xff]
    %v570 = vld [vmem:[%s567 + $0x10] sm:$0xff]
    %v571 = vld [vmem:[%s567 + $0x18] sm:$0xff]
    %v572 = vld [vmem:[%s567 + $0x20] sm:$0xff]
    %v573 = vld [vmem:[%s567 + $0x28] sm:$0xff]
    %v574 = vld [vmem:[%s567 + $0x30] sm:$0xff]
    %v575 = vld [vmem:[%s567 + $0x38] sm:$0xff]
    %v576 = vld [vmem:[%s567 + $0x40] sm:$0xff]
    %v577 = vld [vmem:[%s567 + $0x48] sm:$0xff]
    %v578 = vld [vmem:[%s567 + $0x50] sm:$0xff]
    %v579 = vld [vmem:[%s567 + $0x58] sm:$0xff]
    %v580 = vld [vmem:[%s567 + $0x60] sm:$0xff]
    %v581 = vld [vmem:[%s567 + $0x68] sm:$0xff]
    %v582 = vld [vmem:[%s567 + $0x70] sm:$0xff]
    %v583 = vld [vmem:[%s567 + $0x78] sm:$0xff]
    %584 = vmatprep.subr.mxu0 0.0
    %585 = vmatpush1.msra.mxu0 %v535
    %586 = vmatprep.subr.mxu0 0.0
    %587 = vmatpush1.msra.mxu0 %v536
    %588 = vmatprep.subr.mxu0 0.0
    %589 = vmatpush1.msra.mxu0 %v537
    %590 = vmatprep.subr.mxu0 0.0
    %591 = vmatpush1.msra.mxu0 %v538
    %592 = vmatprep.subr.mxu0 0.0
    %593 = vmatpush1.msra.mxu0 %v539
    %594 = vmatprep.subr.mxu0 0.0
    %595 = vmatpush1.msra.mxu0 %v540
    %596 = vmatprep.subr.mxu0 0.0
    %597 = vmatpush1.msra.mxu0 %v541
    %598 = vmatprep.subr.mxu0 0.0
    %599 = vmatpush1.msra.mxu0 %v542
    %600 = vmatprep.subr.mxu0 0.0
    %601 = vmatpush1.msra.mxu0 %v543
    %602 = vmatprep.subr.mxu0 0.0
    %603 = vmatpush1.msra.mxu0 %v544
    %604 = vmatprep.subr.mxu0 0.0
    %605 = vmatpush1.msra.mxu0 %v545
    %606 = vmatprep.subr.mxu0 0.0
    %607 = vmatpush1.msra.mxu0 %v546
    %608 = vmatprep.subr.mxu0 0.0
    %609 = vmatpush1.msra.mxu0 %v547
    %610 = vmatprep.subr.mxu0 0.0
    %611 = vmatpush1.msra.mxu0 %v548
    %612 = vmatprep.subr.mxu0 0.0
    %613 = vmatpush1.msra.mxu0 %v549
    %614 = vmatprep.subr.mxu0 0.0
    %615 = vmatpush1.msra.mxu0 %v550
    %616 = vmatprep.subr.mxu0 0.0
    %617 = vmatpush1.msra.mxu0 0.0
    %618 = vmatprep.subr.mxu0 0.0
    %619 = vmatpush1.msra.mxu0 0.0
    %620 = vmatprep.subr.mxu0 0.0
    %621 = vmatpush1.msra.mxu0 0.0
    %622 = vmatprep.subr.mxu0 0.0
    %623 = vmatpush1.msra.mxu0 0.0
    %624 = vmatprep.subr.mxu0 0.0
    %625 = vmatpush1.msra.mxu0 0.0
    %626 = vmatprep.subr.mxu0 0.0
    %627 = vmatpush1.msra.mxu0 0.0
    %628 = vmatprep.subr.mxu0 0.0
    %629 = vmatpush1.msra.mxu0 0.0
    %630 = vmatprep.subr.mxu0 0.0
    %631 = vmatpush1.msra.mxu0 0.0
    %632 = vmatprep.subr.mxu0 0.0
    %633 = vmatpush1.msra.mxu0 0.0
    %634 = vmatprep.subr.mxu0 0.0
    %635 = vmatpush1.msra.mxu0 0.0
    %636 = vmatprep.subr.mxu0 0.0
    %637 = vmatpush1.msra.mxu0 0.0
    %638 = vmatprep.subr.mxu0 0.0
    %639 = vmatpush1.msra.mxu0 0.0
    %640 = vmatprep.subr.mxu0 0.0
    %641 = vmatpush1.msra.mxu0 0.0
    %642 = vmatprep.subr.mxu0 0.0
    %643 = vmatpush1.msra.mxu0 0.0
    %644 = vmatprep.subr.mxu0 0.0
    %645 = vmatpush1.msra.mxu0 0.0
    %646 = vmatprep.subr.mxu0 0.0
    %647 = vmatpush1.msra.mxu0 0.0
    %648 = vmatprep.mubr.f32.mxu0 0.0
    %649 = vmatmul.mubr.f32.gmra.mrb[0].mxu0 %v568
    %v650 = vpop.f32.mrb[0].mxu0
    %v651 = vadd.f32 0.0, %v650
    %v652 = vpop.f32.mrb[0].mxu0
    %653 = vmatprep.mubr.f32.mxu0 0.0
    %654 = vmatmul.mubr.f32.gmra.mrb[0].mxu0 %v569
    %v655 = vpop.f32.mrb[0].mxu0
    %v656 = vadd.f32 0.0, %v655
    %v657 = vpop.f32.mrb[0].mxu0
    %658 = vmatprep.mubr.f32.mxu0 0.0
    %659 = vmatmul.mubr.f32.gmra.mrb[0].mxu0 %v570
    %v660 = vpop.f32.mrb[0].mxu0
    %v661 = vadd.f32 0.0, %v660
    %v662 = vpop.f32.mrb[0].mxu0
    %663 = vmatprep.mubr.f32.mxu0 0.0
    %664 = vmatmul.mubr.f32.gmra.mrb[0].mxu0 %v571
    %v665 = vpop.f32.mrb[0].mxu0
    %v666 = vadd.f32 0.0, %v665
    %v667 = vpop.f32.mrb[0].mxu0
    %668 = vmatprep.mubr.f32.mxu0 0.0
    %669 = vmatmul.mubr.f32.gmra.mrb[0].mxu0 %v572
    %v670 = vpop.f32.mrb[0].mxu0
    %v671 = vadd.f32 0.0, %v670
    %v672 = vpop.f32.mrb[0].mxu0
    %673 = vmatprep.mubr.f32.mxu0 0.0
    %674 = vmatmul.mubr.f32.gmra.mrb[0].mxu0 %v573
    %v675 = vpop.f32.mrb[0].mxu0
    %v676 = vadd.f32 0.0, %v675
    %v677 = vpop.f32.mrb[0].mxu0
    %678 = vmatprep.mubr.f32.mxu0 0.0
    %679 = vmatmul.mubr.f32.gmra.mrb[0].mxu0 %v574
    %v680 = vpop.f32.mrb[0].mxu0
    %v681 = vadd.f32 0.0, %v680
    %v682 = vpop.f32.mrb[0].mxu0
    %683 = vmatprep.mubr.f32.mxu0 0.0
    %684 = vmatmul.mubr.f32.gmra.mrb[0].mxu0 %v575
    %v685 = vpop.f32.mrb[0].mxu0
    %v686 = vadd.f32 0.0, %v685
    %v687 = vpop.f32.mrb[0].mxu0
    %688 = vmatprep.mubr.f32.mxu0 0.0
    %689 = vmatmul.mubr.f32.gmra.mrb[0].mxu0 %v576
    %v690 = vpop.f32.mrb[0].mxu0
    %v691 = vadd.f32 0.0, %v690
    %v692 = vpop.f32.mrb[0].mxu0
    %693 = vmatprep.mubr.f32.mxu0 0.0
    %694 = vmatmul.mubr.f32.gmra.mrb[0].mxu0 %v577
    %v695 = vpop.f32.mrb[0].mxu0
    %v696 = vadd.f32 0.0, %v695
    %v697 = vpop.f32.mrb[0].mxu0
    %698 = vmatprep.mubr.f32.mxu0 0.0
    %699 = vmatmul.mubr.f32.gmra.mrb[0].mxu0 %v578
    %v700 = vpop.f32.mrb[0].mxu0
    %v701 = vadd.f32 0.0, %v700
    %v702 = vpop.f32.mrb[0].mxu0
    %703 = vmatprep.mubr.f32.mxu0 0.0
    %704 = vmatmul.mubr.f32.gmra.mrb[0].mxu0 %v579
    %v705 = vpop.f32.mrb[0].mxu0
    %v706 = vadd.f32 0.0, %v705
    %v707 = vpop.f32.mrb[0].mxu0
    %708 = vmatprep.mubr.f32.mxu0 0.0
    %709 = vmatmul.mubr.f32.gmra.mrb[0].mxu0 %v580
    %v710 = vpop.f32.mrb[0].mxu0
    %v711 = vadd.f32 0.0, %v710
    %v712 = vpop.f32.mrb[0].mxu0
    %713 = vmatprep.mubr.f32.mxu0 0.0
    %714 = vmatmul.mubr.f32.gmra.mrb[0].mxu0 %v581
    %v715 = vpop.f32.mrb[0].mxu0
    %v716 = vadd.f32 0.0, %v715
    %v717 = vpop.f32.mrb[0].mxu0
    %718 = vmatprep.mubr.f32.mxu0 0.0
    %719 = vmatmul.mubr.f32.gmra.mrb[0].mxu0 %v582
    %v720 = vpop.f32.mrb[0].mxu0
    %v721 = vadd.f32 0.0, %v720
    %v722 = vpop.f32.mrb[0].mxu0
    %723 = vmatprep.mubr.f32.mxu0 0.0
    %724 = vmatmul.mubr.f32.gmra.mrb[0].mxu0 %v583
    %v725 = vpop.f32.mrb[0].mxu0
    %v726 = vadd.f32 0.0, %v725
    %v727 = vpop.f32.mrb[0].mxu0
    %728 = vdwg.mxu0
    %v729 = vadd.f32 %v551, %v651
    %v730 = vadd.f32 %v552, %v656
    %v731 = vadd.f32 %v553, %v661
    %v732 = vadd.f32 %v554, %v666
    %v733 = vadd.f32 %v555, %v671
    %v734 = vadd.f32 %v556, %v676
    %v735 = vadd.f32 %v557, %v681
    %v736 = vadd.f32 %v558, %v686
    %v737 = vadd.f32 %v559, %v691
    %v738 = vadd.f32 %v560, %v696
    %v739 = vadd.f32 %v561, %v701
    %v740 = vadd.f32 %v562, %v706
    %v741 = vadd.f32 %v563, %v711
    %v742 = vadd.f32 %v564, %v716
    %v743 = vadd.f32 %v565, %v721
    %v744 = vadd.f32 %v566, %v726
    %745 = vst [vmem:[#allocation2 + $0x10] sm:$0xff] %v729
    %746 = vst [vmem:[#allocation2 + $0x28] sm:$0xff] %v730
    %747 = vst [vmem:[#allocation2 + $0x40] sm:$0xff] %v731
    %748 = vst [vmem:[#allocation2 + $0x58] sm:$0xff] %v732
    %749 = vst [vmem:[#allocation2 + $0x70] sm:$0xff] %v733
    %750 = vst [vmem:[#allocation2 + $0x88] sm:$0xff] %v734
    %751 = vst [vmem:[#allocation2 + $0xa0] sm:$0xff] %v735
    %752 = vst [vmem:[#allocation2 + $0xb8] sm:$0xff] %v736
    %753 = vst [vmem:[#allocation2 + $0xd0] sm:$0xff] %v737
    %754 = vst [vmem:[#allocation2 + $0xe8] sm:$0xff] %v738
    %755 = vst [vmem:[#allocation2 + $0x100] sm:$0xff] %v739
    %756 = vst [vmem:[#allocation2 + $0x118] sm:$0xff] %v740
    %757 = vst [vmem:[#allocation2 + $0x130] sm:$0xff] %v741
    %758 = vst [vmem:[#allocation2 + $0x148] sm:$0xff] %v742
    %759 = vst [vmem:[#allocation2 + $0x160] sm:$0xff] %v743
    %760 = vst [vmem:[#allocation2 + $0x178] sm:$0xff] %v744
    // Predicated region
    $region22: #{multi_gcn_forward.5} parent=1 // pred_check
      %p761 = pneg %p26
    $region23: #{multi_gcn_forward.5} parent=1 // pred_check_branch
      %763 = sbr.rel (%p761) target = $region25
    $region24: #{multi_gcn_forward.5} parent=1 // pred_region
      %v764 = vld [vmem:[#allocation2] sm:$0xff]
      %v765 = vld [vmem:[#allocation2 + $0x8] sm:$0xff]
      %v766 = vld [vmem:[#allocation2 + $0x10] sm:$0xff]
      %v767 = vld [vmem:[#allocation2 + $0x18] sm:$0xff]
      %v768 = vld [vmem:[#allocation2 + $0x20] sm:$0xff]
      %v769 = vld [vmem:[#allocation2 + $0x28] sm:$0xff]
      %v770 = vld [vmem:[#allocation2 + $0x30] sm:$0xff]
      %v771 = vld [vmem:[#allocation2 + $0x38] sm:$0xff]
      %v772 = vld [vmem:[#allocation2 + $0x40] sm:$0xff]
      %v773 = vld [vmem:[#allocation2 + $0x48] sm:$0xff]
      %v774 = vld [vmem:[#allocation2 + $0x50] sm:$0xff]
      %v775 = vld [vmem:[#allocation2 + $0x58] sm:$0xff]
      %v776 = vld [vmem:[#allocation2 + $0x60] sm:$0xff]
      %v777 = vld [vmem:[#allocation2 + $0x68] sm:$0xff]
      %v778 = vld [vmem:[#allocation2 + $0x70] sm:$0xff]
      %v779 = vld [vmem:[#allocation2 + $0x78] sm:$0xff]
      %v780 = vld [vmem:[#allocation2 + $0x80] sm:$0xff]
      %v781 = vld [vmem:[#allocation2 + $0x88] sm:$0xff]
      %v782 = vld [vmem:[#allocation2 + $0x90] sm:$0xff]
      %v783 = vld [vmem:[#allocation2 + $0x98] sm:$0xff]
      %v784 = vld [vmem:[#allocation2 + $0xa0] sm:$0xff]
      %v785 = vld [vmem:[#allocation2 + $0xa8] sm:$0xff]
      %v786 = vld [vmem:[#allocation2 + $0xb0] sm:$0xff]
      %v787 = vld [vmem:[#allocation2 + $0xb8] sm:$0xff]
      %v788 = vld [vmem:[#allocation2 + $0xc0] sm:$0xff]
      %v789 = vld [vmem:[#allocation2 + $0xc8] sm:$0xff]
      %v790 = vld [vmem:[#allocation2 + $0xd0] sm:$0xff]
      %v791 = vld [vmem:[#allocation2 + $0xd8] sm:$0xff]
      %v792 = vld [vmem:[#allocation2 + $0xe0] sm:$0xff]
      %v793 = vld [vmem:[#allocation2 + $0xe8] sm:$0xff]
      %v794 = vld [vmem:[#allocation2 + $0xf0] sm:$0xff]
      %v795 = vld [vmem:[#allocation2 + $0xf8] sm:$0xff]
      %v796 = vld [vmem:[#allocation2 + $0x100] sm:$0xff]
      %v797 = vld [vmem:[#allocation2 + $0x108] sm:$0xff]
      %v798 = vld [vmem:[#allocation2 + $0x110] sm:$0xff]
      %v799 = vld [vmem:[#allocation2 + $0x118] sm:$0xff]
      %v800 = vld [vmem:[#allocation2 + $0x120] sm:$0xff]
      %v801 = vld [vmem:[#allocation2 + $0x128] sm:$0xff]
      %v802 = vld [vmem:[#allocation2 + $0x130] sm:$0xff]
      %v803 = vld [vmem:[#allocation2 + $0x138] sm:$0xff]
      %v804 = vld [vmem:[#allocation2 + $0x140] sm:$0xff]
      %v805 = vld [vmem:[#allocation2 + $0x148] sm:$0xff]
      %v806 = vld [vmem:[#allocation2 + $0x150] sm:$0xff]
      %v807 = vld [vmem:[#allocation2 + $0x158] sm:$0xff]
      %v808 = vld [vmem:[#allocation2 + $0x160] sm:$0xff]
      %v809 = vld [vmem:[#allocation2 + $0x168] sm:$0xff]
      %v810 = vld [vmem:[#allocation2 + $0x170] sm:$0xff]
      %v811 = vld [vmem:[#allocation2 + $0x178] sm:$0xff]
      %v812 = vld [vmem:[#allocation3] sm:$0x7]
      %v814 = vlaneseq
      %v815 = vshrl.u32 %v814, 7
      %v816 = vsub.s32 0, %v815
      %v817 = vrot.slane %v812, %v816
      %v818 = vlaneseq
      %v819 = vshrl.u32 %v818, 7
      %v820 = vsub.s32 1, %v819
      %v821 = vrot.slane %v812, %v820
      %v822 = vlaneseq
      %v823 = vshrl.u32 %v822, 7
      %v824 = vsub.s32 2, %v823
      %v825 = vrot.slane %v812, %v824
      %v829 = vadd.f32 %v764, %v817
      %v830 = vadd.f32 %v765, %v821
      %v831 = vadd.f32 %v766, %v825
      %v832 = vadd.f32 %v767, %v817
      %v833 = vadd.f32 %v768, %v821
      %v834 = vadd.f32 %v769, %v825
      %v835 = vadd.f32 %v770, %v817
      %v836 = vadd.f32 %v771, %v821
      %v837 = vadd.f32 %v772, %v825
      %v838 = vadd.f32 %v773, %v817
      %v839 = vadd.f32 %v774, %v821
      %v840 = vadd.f32 %v775, %v825
      %v841 = vadd.f32 %v776, %v817
      %v842 = vadd.f32 %v777, %v821
      %v843 = vadd.f32 %v778, %v825
      %v844 = vadd.f32 %v779, %v817
      %v845 = vadd.f32 %v780, %v821
      %v846 = vadd.f32 %v781, %v825
      %v847 = vadd.f32 %v782, %v817
      %v848 = vadd.f32 %v783, %v821
      %v849 = vadd.f32 %v784, %v825
      %v850 = vadd.f32 %v785, %v817
      %v851 = vadd.f32 %v786, %v821
      %v852 = vadd.f32 %v787, %v825
      %v853 = vadd.f32 %v788, %v817
      %v854 = vadd.f32 %v789, %v821
      %v855 = vadd.f32 %v790, %v825
      %v856 = vadd.f32 %v791, %v817
      %v857 = vadd.f32 %v792, %v821
      %v858 = vadd.f32 %v793, %v825
      %v859 = vadd.f32 %v794, %v817
      %v860 = vadd.f32 %v795, %v821
      %v861 = vadd.f32 %v796, %v825
      %v862 = vadd.f32 %v797, %v817
      %v863 = vadd.f32 %v798, %v821
      %v864 = vadd.f32 %v799, %v825
      %v865 = vadd.f32 %v800, %v817
      %v866 = vadd.f32 %v801, %v821
      %v867 = vadd.f32 %v802, %v825
      %v868 = vadd.f32 %v803, %v817
      %v869 = vadd.f32 %v804, %v821
      %v870 = vadd.f32 %v805, %v825
      %v871 = vadd.f32 %v806, %v817
      %v872 = vadd.f32 %v807, %v821
      %v873 = vadd.f32 %v808, %v825
      %v874 = vadd.f32 %v809, %v817
      %v875 = vadd.f32 %v810, %v821
      %v876 = vadd.f32 %v811, %v825
      %v877 = vmax.f32 %v829, 0.0
      %v878 = vmax.f32 %v830, 0.0
      %v879 = vmax.f32 %v831, 0.0
      %v880 = vmax.f32 %v832, 0.0
      %v881 = vmax.f32 %v833, 0.0
      %v882 = vmax.f32 %v834, 0.0
      %v883 = vmax.f32 %v835, 0.0
      %v884 = vmax.f32 %v836, 0.0
      %v885 = vmax.f32 %v837, 0.0
      %v886 = vmax.f32 %v838, 0.0
      %v887 = vmax.f32 %v839, 0.0
      %v888 = vmax.f32 %v840, 0.0
      %v889 = vmax.f32 %v841, 0.0
      %v890 = vmax.f32 %v842, 0.0
      %v891 = vmax.f32 %v843, 0.0
      %v892 = vmax.f32 %v844, 0.0
      %v893 = vmax.f32 %v845, 0.0
      %v894 = vmax.f32 %v846, 0.0
      %v895 = vmax.f32 %v847, 0.0
      %v896 = vmax.f32 %v848, 0.0
      %v897 = vmax.f32 %v849, 0.0
      %v898 = vmax.f32 %v850, 0.0
      %v899 = vmax.f32 %v851, 0.0
      %v900 = vmax.f32 %v852, 0.0
      %v901 = vmax.f32 %v853, 0.0
      %v902 = vmax.f32 %v854, 0.0
      %v903 = vmax.f32 %v855, 0.0
      %v904 = vmax.f32 %v856, 0.0
      %v905 = vmax.f32 %v857, 0.0
      %v906 = vmax.f32 %v858, 0.0
      %v907 = vmax.f32 %v859, 0.0
      %v908 = vmax.f32 %v860, 0.0
      %v909 = vmax.f32 %v861, 0.0
      %v910 = vmax.f32 %v862, 0.0
      %v911 = vmax.f32 %v863, 0.0
      %v912 = vmax.f32 %v864, 0.0
      %v913 = vmax.f32 %v865, 0.0
      %v914 = vmax.f32 %v866, 0.0
      %v915 = vmax.f32 %v867, 0.0
      %v916 = vmax.f32 %v868, 0.0
      %v917 = vmax.f32 %v869, 0.0
      %v918 = vmax.f32 %v870, 0.0
      %v919 = vmax.f32 %v871, 0.0
      %v920 = vmax.f32 %v872, 0.0
      %v921 = vmax.f32 %v873, 0.0
      %v922 = vmax.f32 %v874, 0.0
      %v923 = vmax.f32 %v875, 0.0
      %v924 = vmax.f32 %v876, 0.0
      %925 = vst [vmem:[%s3] sm:$0xff] %v877
      %926 = vst [vmem:[%s3 + $0x8] sm:$0xff] %v878
      %927 = vst [vmem:[%s3 + $0x10] sm:$0xff] %v879
      %928 = vst [vmem:[%s3 + $0x18] sm:$0xff] %v880
      %929 = vst [vmem:[%s3 + $0x20] sm:$0xff] %v881
      %930 = vst [vmem:[%s3 + $0x28] sm:$0xff] %v882
      %931 = vst [vmem:[%s3 + $0x30] sm:$0xff] %v883
      %932 = vst [vmem:[%s3 + $0x38] sm:$0xff] %v884
      %933 = vst [vmem:[%s3 + $0x40] sm:$0xff] %v885
      %934 = vst [vmem:[%s3 + $0x48] sm:$0xff] %v886
      %935 = vst [vmem:[%s3 + $0x50] sm:$0xff] %v887
      %936 = vst [vmem:[%s3 + $0x58] sm:$0xff] %v888
      %937 = vst [vmem:[%s3 + $0x60] sm:$0xff] %v889
      %938 = vst [vmem:[%s3 + $0x68] sm:$0xff] %v890
      %939 = vst [vmem:[%s3 + $0x70] sm:$0xff] %v891
      %940 = vst [vmem:[%s3 + $0x78] sm:$0xff] %v892
      %941 = vst [vmem:[%s3 + $0x80] sm:$0xff] %v893
      %942 = vst [vmem:[%s3 + $0x88] sm:$0xff] %v894
      %943 = vst [vmem:[%s3 + $0x90] sm:$0xff] %v895
      %944 = vst [vmem:[%s3 + $0x98] sm:$0xff] %v896
      %945 = vst [vmem:[%s3 + $0xa0] sm:$0xff] %v897
      %946 = vst [vmem:[%s3 + $0xa8] sm:$0xff] %v898
      %947 = vst [vmem:[%s3 + $0xb0] sm:$0xff] %v899
      %948 = vst [vmem:[%s3 + $0xb8] sm:$0xff] %v900
      %949 = vst [vmem:[%s3 + $0xc0] sm:$0xff] %v901
      %950 = vst [vmem:[%s3 + $0xc8] sm:$0xff] %v902
      %951 = vst [vmem:[%s3 + $0xd0] sm:$0xff] %v903
      %952 = vst [vmem:[%s3 + $0xd8] sm:$0xff] %v904
      %953 = vst [vmem:[%s3 + $0xe0] sm:$0xff] %v905
      %954 = vst [vmem:[%s3 + $0xe8] sm:$0xff] %v906
      %955 = vst [vmem:[%s3 + $0xf0] sm:$0xff] %v907
      %956 = vst [vmem:[%s3 + $0xf8] sm:$0xff] %v908
      %957 = vst [vmem:[%s3 + $0x100] sm:$0xff] %v909
      %958 = vst [vmem:[%s3 + $0x108] sm:$0xff] %v910
      %959 = vst [vmem:[%s3 + $0x110] sm:$0xff] %v911
      %960 = vst [vmem:[%s3 + $0x118] sm:$0xff] %v912
      %961 = vst [vmem:[%s3 + $0x120] sm:$0xff] %v913
      %962 = vst [vmem:[%s3 + $0x128] sm:$0xff] %v914
      %963 = vst [vmem:[%s3 + $0x130] sm:$0xff] %v915
      %964 = vst [vmem:[%s3 + $0x138] sm:$0xff] %v916
      %965 = vst [vmem:[%s3 + $0x140] sm:$0xff] %v917
      %966 = vst [vmem:[%s3 + $0x148] sm:$0xff] %v918
      %967 = vst [vmem:[%s3 + $0x150] sm:$0xff] %v919
      %968 = vst [vmem:[%s3 + $0x158] sm:$0xff] %v920
      %969 = vst [vmem:[%s3 + $0x160] sm:$0xff] %v921
      %970 = vst [vmem:[%s3 + $0x168] sm:$0xff] %v922
      %971 = vst [vmem:[%s3 + $0x170] sm:$0xff] %v923
      %972 = vst [vmem:[%s3 + $0x178] sm:$0xff] %v924
    $region25: #{multi_gcn_forward.5} parent=1 // pred_fallthru
      _
    // Predicated region
    $region26: #{multi_gcn_forward.5} parent=1 // pred_check
      _
    $region27: #{multi_gcn_forward.5} parent=1 // pred_check_branch
      %974 = sbr.rel (0) target = $region29
    $region28: #{multi_gcn_forward.5} parent=1 // pred_region
      _
    $region29: #{multi_gcn_forward.5} parent=1 // pred_fallthru
      _
    // Predicated region
    $region30: #{multi_gcn_forward.5} parent=1 // pred_check
      _
    $region31: #{multi_gcn_forward.5} parent=1 // pred_check_branch
      %976 = sbr.rel (0) target = $region33
    $region32: #{multi_gcn_forward.5} parent=1 // pred_region
      _
    $region33: #{multi_gcn_forward.5} parent=1 // pred_fallthru
      _
    %977 = vsyncpa [#allocation4], 1

</llo_original>
